<compile_context>
chip_gen: v7x
topology: tpu7x:2x2x1
jax: 0.10.0
libtpu: 0.0.40
codegen_flags: <defaults>
</compile_context>

<pallas_src>
import math
from functools import partial

import numpy as np
import jax
import jax.numpy as jnp
from jax.experimental import pallas as pl
from jax.experimental.pallas import tpu as pltpu

# ----------------------------- configuration --------------------------------
IMG, PATCH, CHANS = 16, 4, 4
D_MODEL, N_HEADS, N_LAYERS = 32, 4, 2
N_CLASSES = 10
BATCH = 2

N_PATCHES = (IMG // PATCH) ** 2          # 16
SEQ = N_PATCHES + 1                      # 17 (cls token + patches)
HEAD = D_MODEL // N_HEADS                # 8
MLP_HID = 4 * D_MODEL                    # 128
PATCH_DIM = CHANS * PATCH * PATCH        # 64
LN_EPS = 1e-5
F32 = jnp.float32


# ------------------------------ fused kernel ---------------------------------
def _layernorm(x, w, b):
    mu = jnp.mean(x, axis=-1, keepdims=True)
    var = jnp.mean((x - mu) ** 2, axis=-1, keepdims=True)
    return (x - mu) * jax.lax.rsqrt(var + LN_EPS) * w + b


def vit_fused_kernel(
    patches_ref,   # (1, SEQ, PATCH_DIM)  row 0 is zeros (cls slot)
    w_patch_ref,   # (PATCH_DIM, D)
    pos_bias_ref,  # (SEQ, D)  row0 = cls + pe[0], rows1: = pe + b_patch
    ln_ref,        # (L, 4, D) rows: ln1w, ln1b, ln2w, ln2b
    wqkv_ref,      # (L, D+1, 3D) rows 0..D-1 = [Wq*s | Wk | Wv], row D = biases
    wo_ref,        # (L, D+1, D)  rows 0..D-1 = Wo, row D = bo
    w1_ref,        # (L, D+1, MLP_HID)
    w2_ref,        # (L, MLP_HID+1, D)
    wcls_ref,      # (D+1, N_CLASSES)
    o_ref,         # (1, 1, N_CLASSES)
):
    # ---- patch embedding + cls token + positional encoding (one matmul) ----
    x = jnp.dot(patches_ref[0], w_patch_ref[...],
                preferred_element_type=jnp.float32) + pos_bias_ref[...]   # (SEQ, D)

    inv_sqrt2 = 1.0 / math.sqrt(2.0)
    for l in range(N_LAYERS):                       # static unroll over layers
        # ---- pre-norm 1 + fused-QKV multi-head attention ----
        xn = _layernorm(x, ln_ref[l, 0:1, :], ln_ref[l, 1:2, :])
        qkv = (
            jnp.dot(xn, wqkv_ref[l, :D_MODEL, :],
                    preferred_element_type=jnp.float32)
            + wqkv_ref[l, D_MODEL:D_MODEL + 1, :]
        )                                           # (SEQ, 3D); Q already scaled

        attn = wo_ref[l, D_MODEL:D_MODEL + 1, :]    # start from output-proj bias
        for h in range(N_HEADS):                    # static loop, H small
            lo = h * HEAD
            qh = qkv[:, lo:lo + HEAD]
            kh = qkv[:, D_MODEL + lo:D_MODEL + lo + HEAD]
            vh = qkv[:, 2 * D_MODEL + lo:2 * D_MODEL + lo + HEAD]
            s = jax.lax.dot_general(
                qh, kh, (((1,), (1,)), ((), ())),
                preferred_element_type=jnp.float32,
            )                                       # (SEQ, SEQ)
            s = s - jnp.max(s, axis=-1, keepdims=True)
            p = jnp.exp(s)
            p = p * pl.reciprocal(jnp.sum(p, axis=-1, keepdims=True), approx=True)
            oh = jnp.dot(p, vh, preferred_element_type=jnp.float32)  # (SEQ, HEAD)
            # accumulate through W_o (no head concatenation)
            attn = attn + jnp.dot(oh, wo_ref[l, lo:lo + HEAD, :],
                                  preferred_element_type=jnp.float32)
        x1 = attn + x                               # residual 1

        # ---- norm 2 + MLP (residual adds the *normalized* tensor, as in spec) ----
        x2 = _layernorm(x1, ln_ref[l, 2:3, :], ln_ref[l, 3:4, :])
        h1 = (
            jnp.dot(x2, w1_ref[l, :D_MODEL, :],
                    preferred_element_type=jnp.float32)
            + w1_ref[l, D_MODEL:D_MODEL + 1, :]
        )
        # exact GELU (nn.GELU default)
        h1 = 0.5 * h1 * (1.0 + jax.lax.erf(h1 * inv_sqrt2))
        mlp = (
            jnp.dot(h1, w2_ref[l, :MLP_HID, :],
                    preferred_element_type=jnp.float32)
            + w2_ref[l, MLP_HID:MLP_HID + 1, :]
        )
        x = mlp + x2

    # ---- classifier head (cls token) + softmax ----
    cls_tok = x[0:1, :]                                           # (1, D)
    logits = (
        jnp.dot(cls_tok, wcls_ref[:D_MODEL, :],
                preferred_element_type=jnp.float32)
        + wcls_ref[D_MODEL:D_MODEL + 1, :]
    )
    logits = logits - jnp.max(logits, axis=-1, keepdims=True)
    e = jnp.exp(logits)
    o_ref[0] = e * pl.reciprocal(jnp.sum(e, axis=-1, keepdims=True), approx=True)


# ------------------------------ wrappers / glue -------------------------------
def extract_patches(images):
    # images: (B, C, H, W) NCHW -> (B, n_patches, C*P*P); per-patch flatten order
    # (c, ph, pw) == Conv2d-as-matmul.  Pure layout glue (kept outside the kernel).
    B = images.shape[0]
    x = images.reshape(B, CHANS, IMG // PATCH, PATCH, IMG // PATCH, PATCH)
    x = x.transpose(0, 2, 4, 1, 3, 5)
    return x.reshape(B, N_PATCHES, PATCH_DIM)


def vit_forward(images, packed):
    B = images.shape[0]
    patches = extract_patches(images)                           # (B, 16, 64)
    # zero row 0 = cls slot; its embedding comes entirely from pos_bias row 0
    patches = jnp.pad(patches, ((0, 0), (1, 0), (0, 0)))        # (B, SEQ, 64)

    out = pl.pallas_call(
        vit_fused_kernel,
        out_shape=jax.ShapeDtypeStruct((B, 1, N_CLASSES), F32),
        grid=(B,),
        in_specs=[
            pl.BlockSpec((1, SEQ, PATCH_DIM), lambda b: (b, 0, 0)),
            pl.BlockSpec((PATCH_DIM, D_MODEL), lambda b: (0, 0)),
            pl.BlockSpec((SEQ, D_MODEL), lambda b: (0, 0)),
            pl.BlockSpec((N_LAYERS, 4, D_MODEL), lambda b: (0, 0, 0)),
            pl.BlockSpec((N_LAYERS, D_MODEL + 1, 3 * D_MODEL), lambda b: (0, 0, 0)),
            pl.BlockSpec((N_LAYERS, D_MODEL + 1, D_MODEL), lambda b: (0, 0, 0)),
            pl.BlockSpec((N_LAYERS, D_MODEL + 1, MLP_HID), lambda b: (0, 0, 0)),
            pl.BlockSpec((N_LAYERS, MLP_HID + 1, D_MODEL), lambda b: (0, 0, 0)),
            pl.BlockSpec((D_MODEL + 1, N_CLASSES), lambda b: (0, 0)),
        ],
        out_specs=pl.BlockSpec((1, 1, N_CLASSES), lambda b: (b, 0, 0)),
        compiler_params=pltpu.CompilerParams(
            dimension_semantics=("parallel",)),
    )(patches, packed["w_patch"], packed["pos_bias"], packed["ln"],
      packed["wqkv"], packed["wo"], packed["w1"], packed["w2"], packed["wcls"])
    return out.reshape(B, N_CLASSES)


# --------------------------- parameter construction ---------------------------
def make_params(key):
    def normal(k, shape, scale=0.02):
        return scale * jax.random.normal(k, shape, F32)

    keys = iter(jax.random.split(key, 64))
    params = {
        "w_patch": normal(next(keys), (PATCH_DIM, D_MODEL), 0.05),
        "b_patch": normal(next(keys), (1, D_MODEL), 0.05),
        "cls": jax.random.normal(next(keys), (1, 1, D_MODEL), F32),
        "w_cls": normal(next(keys), (D_MODEL, N_CLASSES), 0.05),
        "b_cls": jnp.zeros((1, N_CLASSES), F32),
    }

    # sinusoidal positional encoding (same formula as the reference module)
    position = np.arange(SEQ, dtype=np.float32)[:, None]
    div_term = np.exp(
        np.arange(0, D_MODEL, 2, dtype=np.float32) * (-np.log(10000.0) / D_MODEL)
    )
    pe = np.zeros((SEQ, D_MODEL), np.float32)
    pe[:, 0::2] = np.sin(position * div_term)
    pe[:, 1::2] = np.cos(position * div_term)
    params["pe"] = jnp.asarray(pe)

    layers = []
    for _ in range(N_LAYERS):
        ln1w = jnp.ones((1, D_MODEL), F32)
        ln1b = jnp.zeros((1, D_MODEL), F32)
        wq = normal(next(keys), (D_MODEL, D_MODEL))
        bq = jnp.zeros((1, D_MODEL), F32)
        wk = normal(next(keys), (D_MODEL, D_MODEL))
        bk = jnp.zeros((1, D_MODEL), F32)
        wv = normal(next(keys), (D_MODEL, D_MODEL))
        bv = jnp.zeros((1, D_MODEL), F32)
        wo = normal(next(keys), (D_MODEL, D_MODEL))
        bo = jnp.zeros((1, D_MODEL), F32)
        ln2w = jnp.ones((1, D_MODEL), F32)
        ln2b = jnp.zeros((1, D_MODEL), F32)
        w1 = normal(next(keys), (D_MODEL, MLP_HID))
        b1 = jnp.zeros((1, MLP_HID), F32)
        w2 = normal(next(keys), (MLP_HID, D_MODEL))
        b2 = jnp.zeros((1, D_MODEL), F32)
        layers.append(
            (ln1w, ln1b, wq, bq, wk, bk, wv, bv, wo, bo,
             ln2w, ln2b, w1, b1, w2, b2)
        )
    params["layers"] = layers
    return params


def pack_params(params):
    """Pack weights for the fused kernel (done once, outside the hot path)."""
    scale = 1.0 / math.sqrt(HEAD)

    # cls token + positional encoding + patch-embed bias as one additive term.
    pe = params["pe"][:SEQ]
    row0 = pe[0:1] + params["cls"][0]                 # (1, D)
    rest = pe[1:] + params["b_patch"]                 # (N_PATCHES, D)
    pos_bias = jnp.concatenate([row0, rest], axis=0)  # (SEQ, D)

    ln_all, wqkv_all, wo_all, w1_all, w2_all = [], [], [], [], []
    for (ln1w, ln1b, wq, bq, wk, bk, wv, bv, wo, bo,
         ln2w, ln2b, w1, b1, w2, b2) in params["layers"]:
        ln_all.append(jnp.concatenate([ln1w, ln1b, ln2w, ln2b], axis=0))
        # fold 1/sqrt(head) into the Q columns; bias as an extra weight row
        w_row = jnp.concatenate([wq * scale, wk, wv], axis=1)     # (D, 3D)
        b_row = jnp.concatenate([bq * scale, bk, bv], axis=1)     # (1, 3D)
        wqkv_all.append(jnp.concatenate([w_row, b_row], axis=0))  # (D+1, 3D)
        wo_all.append(jnp.concatenate([wo, bo], axis=0))          # (D+1, D)
        w1_all.append(jnp.concatenate([w1, b1], axis=0))          # (D+1, 4D)
        w2_all.append(jnp.concatenate([w2, b2], axis=0))          # (4D+1, D)

    return {
        "w_patch": params["w_patch"],
        "pos_bias": pos_bias,
        "ln": jnp.stack(ln_all),
        "wqkv": jnp.stack(wqkv_all),
        "wo": jnp.stack(wo_all),
        "w1": jnp.stack(w1_all),
        "w2": jnp.stack(w2_all),
        "wcls": jnp.concatenate([params["w_cls"], params["b_cls"]], axis=0),
    }


# ----------------------------- pure-JAX reference ------------------------------
def reference_forward(images, params):
    dot = partial(jnp.dot, precision=jax.lax.Precision.HIGHEST)

    def ln(x, w, b):
        mu = x.mean(-1, keepdims=True)
        var = ((x - mu) ** 2).mean(-1, keepdims=True)
        return (x - mu) / jnp.sqrt(var + LN_EPS) * w + b

    B = images.shape[0]
    patches = extract_patches(images)
    emb = dot(patches, params["w_patch"]) + params["b_patch"]
    cls = jnp.broadcast_to(params["cls"], (B, 1, D_MODEL))
    x = jnp.concatenate([cls, emb], axis=1) + params["pe"][None, :SEQ, :]

    for (ln1w, ln1b, wq, bq, wk, bk, wv, bv, wo, bo,
         ln2w, ln2b, w1, b1, w2, b2) in params["layers"]:
        xn = ln(x, ln1w, ln1b)
        q = dot(xn, wq) + bq
        k = dot(xn, wk) + bk
        v = dot(xn, wv) + bv
        heads = []
        for h in range(N_HEADS):
            lo, hi = h * HEAD, (h + 1) * HEAD
            s = jnp.einsum("bqe,bte->bqt", q[..., lo:hi], k[..., lo:hi],
                           precision=jax.lax.Precision.HIGHEST) / math.sqrt(HEAD)
            p = jax.nn.softmax(s, axis=-1)
            heads.append(jnp.einsum("bqt,bte->bqe", p, v[..., lo:hi],
                                    precision=jax.lax.Precision.HIGHEST))
        attn = dot(jnp.concatenate(heads, axis=-1), wo) + bo
        x1 = attn + x
        x2 = ln(x1, ln2w, ln2b)
        h1 = dot(x2, w1) + b1
        h1 = 0.5 * h1 * (1.0 + jax.lax.erf(h1 / math.sqrt(2.0)))
        x = dot(h1, w2) + b2 + x2

    logits = dot(x[:, 0, :], params["w_cls"]) + params["b_cls"]
    return jax.nn.softmax(logits, axis=-1)


# ------------------------------------ main --------------------------------------
if __name__ == "__main__":
    key = jax.random.PRNGKey(0)
    k_img, k_par = jax.random.split(key)
    images = jax.random.normal(k_img, (BATCH, CHANS, IMG, IMG), F32)
    params = make_params(k_par)
    packed = pack_params(params)

    out = vit_forward(images, packed)
    out = jax.block_until_ready(out)

    ref = reference_forward(images, params)
    assert out.shape == (BATCH, N_CLASSES)
    assert np.allclose(np.asarray(out), np.asarray(ref), rtol=2e-3, atol=2e-3), (
        "Pallas output mismatch vs pure-JAX reference"
    )
    print("KERNEL_OK")
</pallas_src>

<mosaic_0001>
module attributes {stable_mosaic.version = 11 : i64} {
  func.func @vit_fused_kernel(%arg0: i32, %arg1: memref<1x17x64xf32, #tpu.memory_space<vmem>>, %arg2: memref<64x32xf32, #tpu.memory_space<vmem>>, %arg3: memref<17x32xf32, #tpu.memory_space<vmem>>, %arg4: memref<2x4x32xf32, #tpu.memory_space<vmem>>, %arg5: memref<2x33x96xf32, #tpu.memory_space<vmem>>, %arg6: memref<2x33x32xf32, #tpu.memory_space<vmem>>, %arg7: memref<2x33x128xf32, #tpu.memory_space<vmem>>, %arg8: memref<2x129x32xf32, #tpu.memory_space<vmem>>, %arg9: memref<33x10xf32, #tpu.memory_space<vmem>>, %arg10: memref<1x1x10xf32, #tpu.memory_space<vmem>>) attributes {dimension_semantics = [#tpu.dimension_semantics<parallel>], iteration_bounds = array<i64: 2>, scalar_prefetch = 0 : i64, scratch_operands = 0 : i64, tpu.core_type = #tpu.core_type<tc>, window_params = [{transform_indices = @transform_0, window_bounds = array<i64: 1, 17, 64>}, {pipeline_mode = #tpu.pipeline_mode<synchronous>, transform_indices = @transform_1, window_bounds = array<i64: 64, 32>}, {pipeline_mode = #tpu.pipeline_mode<synchronous>, transform_indices = @transform_2, window_bounds = array<i64: 17, 32>}, {pipeline_mode = #tpu.pipeline_mode<synchronous>, transform_indices = @transform_3, window_bounds = array<i64: 2, 4, 32>}, {pipeline_mode = #tpu.pipeline_mode<synchronous>, transform_indices = @transform_4, window_bounds = array<i64: 2, 33, 96>}, {pipeline_mode = #tpu.pipeline_mode<synchronous>, transform_indices = @transform_5, window_bounds = array<i64: 2, 33, 32>}, {pipeline_mode = #tpu.pipeline_mode<synchronous>, transform_indices = @transform_6, window_bounds = array<i64: 2, 33, 128>}, {pipeline_mode = #tpu.pipeline_mode<synchronous>, transform_indices = @transform_7, window_bounds = array<i64: 2, 129, 32>}, {pipeline_mode = #tpu.pipeline_mode<synchronous>, transform_indices = @transform_8, window_bounds = array<i64: 33, 10>}, {transform_indices = @transform_9, window_bounds = array<i64: 1, 1, 10>}]} {
    %c0 = arith.constant 0 : index
    %c0_0 = arith.constant 0 : index
    %c0_1 = arith.constant 0 : index
    %0 = vector.load %arg1[%c0, %c0_0, %c0_1] : memref<1x17x64xf32, #tpu.memory_space<vmem>>, vector<1x17x64xf32>
    %1 = vector.shape_cast %0 : vector<1x17x64xf32> to vector<17x64xf32>
    %c0_2 = arith.constant 0 : index
    %c0_3 = arith.constant 0 : index
    %2 = vector.load %arg2[%c0_2, %c0_3] : memref<64x32xf32, #tpu.memory_space<vmem>>, vector<64x32xf32>
    %cst = arith.constant dense<0.000000e+00> : vector<17x32xf32>
    %3 = tpu.matmul %1, %2, %cst {dimension_numbers = #tpu.dot_dimension_numbers<[1], [0], [0], [1], [0, 0, 1, 1], [], []>} : vector<17x64xf32>, vector<64x32xf32>, vector<17x32xf32> -> vector<17x32xf32>
    %c0_4 = arith.constant 0 : index
    %c0_5 = arith.constant 0 : index
    %4 = vector.load %arg3[%c0_4, %c0_5] : memref<17x32xf32, #tpu.memory_space<vmem>>, vector<17x32xf32>
    %5 = arith.addf %3, %4 : vector<17x32xf32>
    %c0_6 = arith.constant 0 : index
    %c0_7 = arith.constant 0 : index
    %c0_8 = arith.constant 0 : index
    %6 = vector.load %arg4[%c0_6, %c0_7, %c0_8] : memref<2x4x32xf32, #tpu.memory_space<vmem>>, vector<1x1x32xf32>
    %7 = vector.shape_cast %6 : vector<1x1x32xf32> to vector<1x32xf32>
    %c0_9 = arith.constant 0 : index
    %c1 = arith.constant 1 : index
    %c0_10 = arith.constant 0 : index
    %8 = vector.load %arg4[%c0_9, %c1, %c0_10] : memref<2x4x32xf32, #tpu.memory_space<vmem>>, vector<1x1x32xf32>
    %9 = vector.shape_cast %8 : vector<1x1x32xf32> to vector<1x32xf32>
    %cst_11 = arith.constant dense<0.000000e+00> : vector<17xf32>
    %10 = vector.multi_reduction <add>, %5, %cst_11 [1] : vector<17x32xf32> to vector<17xf32>
    %11 = vector.shape_cast %10 : vector<17xf32> to vector<17x1xf32>
    %cst_12 = arith.constant 3.200000e+01 : f32
    %12 = vector.broadcast %cst_12 : f32 to vector<17x1xf32>
    %13 = arith.divf %11, %12 : vector<17x1xf32>
    %14 = vector.broadcast %13 : vector<17x1xf32> to vector<17x32xf32>
    %15 = arith.subf %5, %14 : vector<17x32xf32>
    %16 = arith.mulf %15, %15 : vector<17x32xf32>
    %cst_13 = arith.constant dense<0.000000e+00> : vector<17xf32>
    %17 = vector.multi_reduction <add>, %16, %cst_13 [1] : vector<17x32xf32> to vector<17xf32>
    %18 = vector.shape_cast %17 : vector<17xf32> to vector<17x1xf32>
    %cst_14 = arith.constant 3.200000e+01 : f32
    %19 = vector.broadcast %cst_14 : f32 to vector<17x1xf32>
    %20 = arith.divf %18, %19 : vector<17x1xf32>
    %21 = vector.broadcast %13 : vector<17x1xf32> to vector<17x32xf32>
    %22 = arith.subf %5, %21 : vector<17x32xf32>
    %cst_15 = arith.constant 9.99999974E-6 : f32
    %23 = vector.broadcast %cst_15 : f32 to vector<17x1xf32>
    %24 = arith.addf %20, %23 : vector<17x1xf32>
    %25 = math.rsqrt %24 : vector<17x1xf32>
    %26 = vector.broadcast %25 : vector<17x1xf32> to vector<17x32xf32>
    %27 = arith.mulf %22, %26 : vector<17x32xf32>
    %28 = vector.broadcast %7 : vector<1x32xf32> to vector<17x32xf32>
    %29 = arith.mulf %27, %28 : vector<17x32xf32>
    %30 = vector.broadcast %9 : vector<1x32xf32> to vector<17x32xf32>
    %31 = arith.addf %29, %30 : vector<17x32xf32>
    %c0_16 = arith.constant 0 : index
    %c0_17 = arith.constant 0 : index
    %c0_18 = arith.constant 0 : index
    %32 = vector.load %arg5[%c0_16, %c0_17, %c0_18] : memref<2x33x96xf32, #tpu.memory_space<vmem>>, vector<1x32x96xf32>
    %33 = vector.shape_cast %32 : vector<1x32x96xf32> to vector<32x96xf32>
    %cst_19 = arith.constant dense<0.000000e+00> : vector<17x96xf32>
    %34 = tpu.matmul %31, %33, %cst_19 {dimension_numbers = #tpu.dot_dimension_numbers<[1], [0], [0], [1], [0, 0, 1, 1], [], []>} : vector<17x32xf32>, vector<32x96xf32>, vector<17x96xf32> -> vector<17x96xf32>
    %c0_20 = arith.constant 0 : index
    %c32 = arith.constant 32 : index
    %c0_21 = arith.constant 0 : index
    %35 = vector.load %arg5[%c0_20, %c32, %c0_21] : memref<2x33x96xf32, #tpu.memory_space<vmem>>, vector<1x1x96xf32>
    %36 = vector.shape_cast %35 : vector<1x1x96xf32> to vector<1x96xf32>
    %37 = vector.broadcast %36 : vector<1x96xf32> to vector<17x96xf32>
    %38 = arith.addf %34, %37 : vector<17x96xf32>
    %c0_22 = arith.constant 0 : index
    %c32_23 = arith.constant 32 : index
    %c0_24 = arith.constant 0 : index
    %39 = vector.load %arg6[%c0_22, %c32_23, %c0_24] : memref<2x33x32xf32, #tpu.memory_space<vmem>>, vector<1x1x32xf32>
    %40 = vector.shape_cast %39 : vector<1x1x32xf32> to vector<1x32xf32>
    %41 = vector.extract_strided_slice %38 {offsets = [0, 0], sizes = [17, 8], strides = [1, 1]} : vector<17x96xf32> to vector<17x8xf32>
    %42 = vector.extract_strided_slice %38 {offsets = [0, 32], sizes = [17, 8], strides = [1, 1]} : vector<17x96xf32> to vector<17x8xf32>
    %43 = vector.extract_strided_slice %38 {offsets = [0, 64], sizes = [17, 8], strides = [1, 1]} : vector<17x96xf32> to vector<17x8xf32>
    %cst_25 = arith.constant dense<0.000000e+00> : vector<17x17xf32>
    %44 = tpu.matmul %41, %42, %cst_25 {dimension_numbers = #tpu.dot_dimension_numbers<[1], [1], [0], [0], [0, 0, 1, 0], [], []>} : vector<17x8xf32>, vector<17x8xf32>, vector<17x17xf32> -> vector<17x17xf32>
    %cst_26 = arith.constant dense<0xFF800000> : vector<17xf32>
    %45 = vector.multi_reduction <maximumf>, %44, %cst_26 [1] : vector<17x17xf32> to vector<17xf32>
    %46 = vector.shape_cast %45 : vector<17xf32> to vector<17x1xf32>
    %47 = vector.broadcast %46 : vector<17x1xf32> to vector<17x17xf32>
    %48 = arith.subf %44, %47 : vector<17x17xf32>
    %49 = math.exp %48 : vector<17x17xf32>
    %cst_27 = arith.constant dense<0.000000e+00> : vector<17xf32>
    %50 = vector.multi_reduction <add>, %49, %cst_27 [1] : vector<17x17xf32> to vector<17xf32>
    %51 = vector.shape_cast %50 : vector<17xf32> to vector<17x1xf32>
    %52 = tpu.reciprocal %51 {approx = true} : vector<17x1xf32> -> vector<17x1xf32>
    %53 = vector.broadcast %52 : vector<17x1xf32> to vector<17x17xf32>
    %54 = arith.mulf %49, %53 : vector<17x17xf32>
    %cst_28 = arith.constant dense<0.000000e+00> : vector<17x8xf32>
    %55 = tpu.matmul %54, %43, %cst_28 {dimension_numbers = #tpu.dot_dimension_numbers<[1], [0], [0], [1], [0, 0, 1, 1], [], []>} : vector<17x17xf32>, vector<17x8xf32>, vector<17x8xf32> -> vector<17x8xf32>
    %c0_29 = arith.constant 0 : index
    %c0_30 = arith.constant 0 : index
    %c0_31 = arith.constant 0 : index
    %56 = vector.load %arg6[%c0_29, %c0_30, %c0_31] : memref<2x33x32xf32, #tpu.memory_space<vmem>>, vector<1x8x32xf32>
    %57 = vector.shape_cast %56 : vector<1x8x32xf32> to vector<8x32xf32>
    %cst_32 = arith.constant dense<0.000000e+00> : vector<17x32xf32>
    %58 = tpu.matmul %55, %57, %cst_32 {dimension_numbers = #tpu.dot_dimension_numbers<[1], [0], [0], [1], [0, 0, 1, 1], [], []>} : vector<17x8xf32>, vector<8x32xf32>, vector<17x32xf32> -> vector<17x32xf32>
    %59 = vector.broadcast %40 : vector<1x32xf32> to vector<17x32xf32>
    %60 = arith.addf %59, %58 : vector<17x32xf32>
    %61 = vector.extract_strided_slice %38 {offsets = [0, 8], sizes = [17, 8], strides = [1, 1]} : vector<17x96xf32> to vector<17x8xf32>
    %62 = vector.extract_strided_slice %38 {offsets = [0, 40], sizes = [17, 8], strides = [1, 1]} : vector<17x96xf32> to vector<17x8xf32>
    %63 = vector.extract_strided_slice %38 {offsets = [0, 72], sizes = [17, 8], strides = [1, 1]} : vector<17x96xf32> to vector<17x8xf32>
    %cst_33 = arith.constant dense<0.000000e+00> : vector<17x17xf32>
    %64 = tpu.matmul %61, %62, %cst_33 {dimension_numbers = #tpu.dot_dimension_numbers<[1], [1], [0], [0], [0, 0, 1, 0], [], []>} : vector<17x8xf32>, vector<17x8xf32>, vector<17x17xf32> -> vector<17x17xf32>
    %cst_34 = arith.constant dense<0xFF800000> : vector<17xf32>
    %65 = vector.multi_reduction <maximumf>, %64, %cst_34 [1] : vector<17x17xf32> to vector<17xf32>
    %66 = vector.shape_cast %65 : vector<17xf32> to vector<17x1xf32>
    %67 = vector.broadcast %66 : vector<17x1xf32> to vector<17x17xf32>
    %68 = arith.subf %64, %67 : vector<17x17xf32>
    %69 = math.exp %68 : vector<17x17xf32>
    %cst_35 = arith.constant dense<0.000000e+00> : vector<17xf32>
    %70 = vector.multi_reduction <add>, %69, %cst_35 [1] : vector<17x17xf32> to vector<17xf32>
    %71 = vector.shape_cast %70 : vector<17xf32> to vector<17x1xf32>
    %72 = tpu.reciprocal %71 {approx = true} : vector<17x1xf32> -> vector<17x1xf32>
    %73 = vector.broadcast %72 : vector<17x1xf32> to vector<17x17xf32>
    %74 = arith.mulf %69, %73 : vector<17x17xf32>
    %cst_36 = arith.constant dense<0.000000e+00> : vector<17x8xf32>
    %75 = tpu.matmul %74, %63, %cst_36 {dimension_numbers = #tpu.dot_dimension_numbers<[1], [0], [0], [1], [0, 0, 1, 1], [], []>} : vector<17x17xf32>, vector<17x8xf32>, vector<17x8xf32> -> vector<17x8xf32>
    %c0_37 = arith.constant 0 : index
    %c8 = arith.constant 8 : index
    %c0_38 = arith.constant 0 : index
    %76 = vector.load %arg6[%c0_37, %c8, %c0_38] : memref<2x33x32xf32, #tpu.memory_space<vmem>>, vector<1x8x32xf32>
    %77 = vector.shape_cast %76 : vector<1x8x32xf32> to vector<8x32xf32>
    %cst_39 = arith.constant dense<0.000000e+00> : vector<17x32xf32>
    %78 = tpu.matmul %75, %77, %cst_39 {dimension_numbers = #tpu.dot_dimension_numbers<[1], [0], [0], [1], [0, 0, 1, 1], [], []>} : vector<17x8xf32>, vector<8x32xf32>, vector<17x32xf32> -> vector<17x32xf32>
    %79 = arith.addf %60, %78 : vector<17x32xf32>
    %80 = vector.extract_strided_slice %38 {offsets = [0, 16], sizes = [17, 8], strides = [1, 1]} : vector<17x96xf32> to vector<17x8xf32>
    %81 = vector.extract_strided_slice %38 {offsets = [0, 48], sizes = [17, 8], strides = [1, 1]} : vector<17x96xf32> to vector<17x8xf32>
    %82 = vector.extract_strided_slice %38 {offsets = [0, 80], sizes = [17, 8], strides = [1, 1]} : vector<17x96xf32> to vector<17x8xf32>
    %cst_40 = arith.constant dense<0.000000e+00> : vector<17x17xf32>
    %83 = tpu.matmul %80, %81, %cst_40 {dimension_numbers = #tpu.dot_dimension_numbers<[1], [1], [0], [0], [0, 0, 1, 0], [], []>} : vector<17x8xf32>, vector<17x8xf32>, vector<17x17xf32> -> vector<17x17xf32>
    %cst_41 = arith.constant dense<0xFF800000> : vector<17xf32>
    %84 = vector.multi_reduction <maximumf>, %83, %cst_41 [1] : vector<17x17xf32> to vector<17xf32>
    %85 = vector.shape_cast %84 : vector<17xf32> to vector<17x1xf32>
    %86 = vector.broadcast %85 : vector<17x1xf32> to vector<17x17xf32>
    %87 = arith.subf %83, %86 : vector<17x17xf32>
    %88 = math.exp %87 : vector<17x17xf32>
    %cst_42 = arith.constant dense<0.000000e+00> : vector<17xf32>
    %89 = vector.multi_reduction <add>, %88, %cst_42 [1] : vector<17x17xf32> to vector<17xf32>
    %90 = vector.shape_cast %89 : vector<17xf32> to vector<17x1xf32>
    %91 = tpu.reciprocal %90 {approx = true} : vector<17x1xf32> -> vector<17x1xf32>
    %92 = vector.broadcast %91 : vector<17x1xf32> to vector<17x17xf32>
    %93 = arith.mulf %88, %92 : vector<17x17xf32>
    %cst_43 = arith.constant dense<0.000000e+00> : vector<17x8xf32>
    %94 = tpu.matmul %93, %82, %cst_43 {dimension_numbers = #tpu.dot_dimension_numbers<[1], [0], [0], [1], [0, 0, 1, 1], [], []>} : vector<17x17xf32>, vector<17x8xf32>, vector<17x8xf32> -> vector<17x8xf32>
    %c0_44 = arith.constant 0 : index
    %c16 = arith.constant 16 : index
    %c0_45 = arith.constant 0 : index
    %95 = vector.load %arg6[%c0_44, %c16, %c0_45] : memref<2x33x32xf32, #tpu.memory_space<vmem>>, vector<1x8x32xf32>
    %96 = vector.shape_cast %95 : vector<1x8x32xf32> to vector<8x32xf32>
    %cst_46 = arith.constant dense<0.000000e+00> : vector<17x32xf32>
    %97 = tpu.matmul %94, %96, %cst_46 {dimension_numbers = #tpu.dot_dimension_numbers<[1], [0], [0], [1], [0, 0, 1, 1], [], []>} : vector<17x8xf32>, vector<8x32xf32>, vector<17x32xf32> -> vector<17x32xf32>
    %98 = arith.addf %79, %97 : vector<17x32xf32>
    %99 = vector.extract_strided_slice %38 {offsets = [0, 24], sizes = [17, 8], strides = [1, 1]} : vector<17x96xf32> to vector<17x8xf32>
    %100 = vector.extract_strided_slice %38 {offsets = [0, 56], sizes = [17, 8], strides = [1, 1]} : vector<17x96xf32> to vector<17x8xf32>
    %101 = vector.extract_strided_slice %38 {offsets = [0, 88], sizes = [17, 8], strides = [1, 1]} : vector<17x96xf32> to vector<17x8xf32>
    %cst_47 = arith.constant dense<0.000000e+00> : vector<17x17xf32>
    %102 = tpu.matmul %99, %100, %cst_47 {dimension_numbers = #tpu.dot_dimension_numbers<[1], [1], [0], [0], [0, 0, 1, 0], [], []>} : vector<17x8xf32>, vector<17x8xf32>, vector<17x17xf32> -> vector<17x17xf32>
    %cst_48 = arith.constant dense<0xFF800000> : vector<17xf32>
    %103 = vector.multi_reduction <maximumf>, %102, %cst_48 [1] : vector<17x17xf32> to vector<17xf32>
    %104 = vector.shape_cast %103 : vector<17xf32> to vector<17x1xf32>
    %105 = vector.broadcast %104 : vector<17x1xf32> to vector<17x17xf32>
    %106 = arith.subf %102, %105 : vector<17x17xf32>
    %107 = math.exp %106 : vector<17x17xf32>
    %cst_49 = arith.constant dense<0.000000e+00> : vector<17xf32>
    %108 = vector.multi_reduction <add>, %107, %cst_49 [1] : vector<17x17xf32> to vector<17xf32>
    %109 = vector.shape_cast %108 : vector<17xf32> to vector<17x1xf32>
    %110 = tpu.reciprocal %109 {approx = true} : vector<17x1xf32> -> vector<17x1xf32>
    %111 = vector.broadcast %110 : vector<17x1xf32> to vector<17x17xf32>
    %112 = arith.mulf %107, %111 : vector<17x17xf32>
    %cst_50 = arith.constant dense<0.000000e+00> : vector<17x8xf32>
    %113 = tpu.matmul %112, %101, %cst_50 {dimension_numbers = #tpu.dot_dimension_numbers<[1], [0], [0], [1], [0, 0, 1, 1], [], []>} : vector<17x17xf32>, vector<17x8xf32>, vector<17x8xf32> -> vector<17x8xf32>
    %c0_51 = arith.constant 0 : index
    %c24 = arith.constant 24 : index
    %c0_52 = arith.constant 0 : index
    %114 = vector.load %arg6[%c0_51, %c24, %c0_52] : memref<2x33x32xf32, #tpu.memory_space<vmem>>, vector<1x8x32xf32>
    %115 = vector.shape_cast %114 : vector<1x8x32xf32> to vector<8x32xf32>
    %cst_53 = arith.constant dense<0.000000e+00> : vector<17x32xf32>
    %116 = tpu.matmul %113, %115, %cst_53 {dimension_numbers = #tpu.dot_dimension_numbers<[1], [0], [0], [1], [0, 0, 1, 1], [], []>} : vector<17x8xf32>, vector<8x32xf32>, vector<17x32xf32> -> vector<17x32xf32>
    %117 = arith.addf %98, %116 : vector<17x32xf32>
    %118 = arith.addf %117, %5 : vector<17x32xf32>
    %c0_54 = arith.constant 0 : index
    %c2 = arith.constant 2 : index
    %c0_55 = arith.constant 0 : index
    %119 = vector.load %arg4[%c0_54, %c2, %c0_55] : memref<2x4x32xf32, #tpu.memory_space<vmem>>, vector<1x1x32xf32>
    %120 = vector.shape_cast %119 : vector<1x1x32xf32> to vector<1x32xf32>
    %c0_56 = arith.constant 0 : index
    %c3 = arith.constant 3 : index
    %c0_57 = arith.constant 0 : index
    %121 = vector.load %arg4[%c0_56, %c3, %c0_57] : memref<2x4x32xf32, #tpu.memory_space<vmem>>, vector<1x1x32xf32>
    %122 = vector.shape_cast %121 : vector<1x1x32xf32> to vector<1x32xf32>
    %cst_58 = arith.constant dense<0.000000e+00> : vector<17xf32>
    %123 = vector.multi_reduction <add>, %118, %cst_58 [1] : vector<17x32xf32> to vector<17xf32>
    %124 = vector.shape_cast %123 : vector<17xf32> to vector<17x1xf32>
    %cst_59 = arith.constant 3.200000e+01 : f32
    %125 = vector.broadcast %cst_59 : f32 to vector<17x1xf32>
    %126 = arith.divf %124, %125 : vector<17x1xf32>
    %127 = vector.broadcast %126 : vector<17x1xf32> to vector<17x32xf32>
    %128 = arith.subf %118, %127 : vector<17x32xf32>
    %129 = arith.mulf %128, %128 : vector<17x32xf32>
    %cst_60 = arith.constant dense<0.000000e+00> : vector<17xf32>
    %130 = vector.multi_reduction <add>, %129, %cst_60 [1] : vector<17x32xf32> to vector<17xf32>
    %131 = vector.shape_cast %130 : vector<17xf32> to vector<17x1xf32>
    %cst_61 = arith.constant 3.200000e+01 : f32
    %132 = vector.broadcast %cst_61 : f32 to vector<17x1xf32>
    %133 = arith.divf %131, %132 : vector<17x1xf32>
    %134 = vector.broadcast %126 : vector<17x1xf32> to vector<17x32xf32>
    %135 = arith.subf %118, %134 : vector<17x32xf32>
    %cst_62 = arith.constant 9.99999974E-6 : f32
    %136 = vector.broadcast %cst_62 : f32 to vector<17x1xf32>
    %137 = arith.addf %133, %136 : vector<17x1xf32>
    %138 = math.rsqrt %137 : vector<17x1xf32>
    %139 = vector.broadcast %138 : vector<17x1xf32> to vector<17x32xf32>
    %140 = arith.mulf %135, %139 : vector<17x32xf32>
    %141 = vector.broadcast %120 : vector<1x32xf32> to vector<17x32xf32>
    %142 = arith.mulf %140, %141 : vector<17x32xf32>
    %143 = vector.broadcast %122 : vector<1x32xf32> to vector<17x32xf32>
    %144 = arith.addf %142, %143 : vector<17x32xf32>
    %c0_63 = arith.constant 0 : index
    %c0_64 = arith.constant 0 : index
    %c0_65 = arith.constant 0 : index
    %145 = vector.load %arg7[%c0_63, %c0_64, %c0_65] : memref<2x33x128xf32, #tpu.memory_space<vmem>>, vector<1x32x128xf32>
    %146 = vector.shape_cast %145 : vector<1x32x128xf32> to vector<32x128xf32>
    %cst_66 = arith.constant dense<0.000000e+00> : vector<17x128xf32>
    %147 = tpu.matmul %144, %146, %cst_66 {dimension_numbers = #tpu.dot_dimension_numbers<[1], [0], [0], [1], [0, 0, 1, 1], [], []>} : vector<17x32xf32>, vector<32x128xf32>, vector<17x128xf32> -> vector<17x128xf32>
    %c0_67 = arith.constant 0 : index
    %c32_68 = arith.constant 32 : index
    %c0_69 = arith.constant 0 : index
    %148 = vector.load %arg7[%c0_67, %c32_68, %c0_69] : memref<2x33x128xf32, #tpu.memory_space<vmem>>, vector<1x1x128xf32>
    %149 = vector.shape_cast %148 : vector<1x1x128xf32> to vector<1x128xf32>
    %150 = vector.broadcast %149 : vector<1x128xf32> to vector<17x128xf32>
    %151 = arith.addf %147, %150 : vector<17x128xf32>
    %cst_70 = arith.constant 5.000000e-01 : f32
    %152 = vector.broadcast %cst_70 : f32 to vector<17x128xf32>
    %153 = arith.mulf %152, %151 : vector<17x128xf32>
    %cst_71 = arith.constant 0.707106769 : f32
    %154 = vector.broadcast %cst_71 : f32 to vector<17x128xf32>
    %155 = arith.mulf %151, %154 : vector<17x128xf32>
    %156 = math.erf %155 : vector<17x128xf32>
    %cst_72 = arith.constant 1.000000e+00 : f32
    %157 = vector.broadcast %cst_72 : f32 to vector<17x128xf32>
    %158 = arith.addf %157, %156 : vector<17x128xf32>
    %159 = arith.mulf %153, %158 : vector<17x128xf32>
    %c0_73 = arith.constant 0 : index
    %c0_74 = arith.constant 0 : index
    %c0_75 = arith.constant 0 : index
    %160 = vector.load %arg8[%c0_73, %c0_74, %c0_75] : memref<2x129x32xf32, #tpu.memory_space<vmem>>, vector<1x128x32xf32>
    %161 = vector.shape_cast %160 : vector<1x128x32xf32> to vector<128x32xf32>
    %cst_76 = arith.constant dense<0.000000e+00> : vector<17x32xf32>
    %162 = tpu.matmul %159, %161, %cst_76 {dimension_numbers = #tpu.dot_dimension_numbers<[1], [0], [0], [1], [0, 0, 1, 1], [], []>} : vector<17x128xf32>, vector<128x32xf32>, vector<17x32xf32> -> vector<17x32xf32>
    %c0_77 = arith.constant 0 : index
    %c128 = arith.constant 128 : index
    %c0_78 = arith.constant 0 : index
    %163 = vector.load %arg8[%c0_77, %c128, %c0_78] : memref<2x129x32xf32, #tpu.memory_space<vmem>>, vector<1x1x32xf32>
    %164 = vector.shape_cast %163 : vector<1x1x32xf32> to vector<1x32xf32>
    %165 = vector.broadcast %164 : vector<1x32xf32> to vector<17x32xf32>
    %166 = arith.addf %162, %165 : vector<17x32xf32>
    %167 = arith.addf %166, %144 : vector<17x32xf32>
    %c1_79 = arith.constant 1 : index
    %c0_80 = arith.constant 0 : index
    %c0_81 = arith.constant 0 : index
    %168 = vector.load %arg4[%c1_79, %c0_80, %c0_81] : memref<2x4x32xf32, #tpu.memory_space<vmem>>, vector<1x1x32xf32>
    %169 = vector.shape_cast %168 : vector<1x1x32xf32> to vector<1x32xf32>
    %c1_82 = arith.constant 1 : index
    %c1_83 = arith.constant 1 : index
    %c0_84 = arith.constant 0 : index
    %170 = vector.load %arg4[%c1_82, %c1_83, %c0_84] : memref<2x4x32xf32, #tpu.memory_space<vmem>>, vector<1x1x32xf32>
    %171 = vector.shape_cast %170 : vector<1x1x32xf32> to vector<1x32xf32>
    %cst_85 = arith.constant dense<0.000000e+00> : vector<17xf32>
    %172 = vector.multi_reduction <add>, %167, %cst_85 [1] : vector<17x32xf32> to vector<17xf32>
    %173 = vector.shape_cast %172 : vector<17xf32> to vector<17x1xf32>
    %cst_86 = arith.constant 3.200000e+01 : f32
    %174 = vector.broadcast %cst_86 : f32 to vector<17x1xf32>
    %175 = arith.divf %173, %174 : vector<17x1xf32>
    %176 = vector.broadcast %175 : vector<17x1xf32> to vector<17x32xf32>
    %177 = arith.subf %167, %176 : vector<17x32xf32>
    %178 = arith.mulf %177, %177 : vector<17x32xf32>
    %cst_87 = arith.constant dense<0.000000e+00> : vector<17xf32>
    %179 = vector.multi_reduction <add>, %178, %cst_87 [1] : vector<17x32xf32> to vector<17xf32>
    %180 = vector.shape_cast %179 : vector<17xf32> to vector<17x1xf32>
    %cst_88 = arith.constant 3.200000e+01 : f32
    %181 = vector.broadcast %cst_88 : f32 to vector<17x1xf32>
    %182 = arith.divf %180, %181 : vector<17x1xf32>
    %183 = vector.broadcast %175 : vector<17x1xf32> to vector<17x32xf32>
    %184 = arith.subf %167, %183 : vector<17x32xf32>
    %cst_89 = arith.constant 9.99999974E-6 : f32
    %185 = vector.broadcast %cst_89 : f32 to vector<17x1xf32>
    %186 = arith.addf %182, %185 : vector<17x1xf32>
    %187 = math.rsqrt %186 : vector<17x1xf32>
    %188 = vector.broadcast %187 : vector<17x1xf32> to vector<17x32xf32>
    %189 = arith.mulf %184, %188 : vector<17x32xf32>
    %190 = vector.broadcast %169 : vector<1x32xf32> to vector<17x32xf32>
    %191 = arith.mulf %189, %190 : vector<17x32xf32>
    %192 = vector.broadcast %171 : vector<1x32xf32> to vector<17x32xf32>
    %193 = arith.addf %191, %192 : vector<17x32xf32>
    %c1_90 = arith.constant 1 : index
    %c0_91 = arith.constant 0 : index
    %c0_92 = arith.constant 0 : index
    %194 = vector.load %arg5[%c1_90, %c0_91, %c0_92] : memref<2x33x96xf32, #tpu.memory_space<vmem>>, vector<1x32x96xf32>
    %195 = vector.shape_cast %194 : vector<1x32x96xf32> to vector<32x96xf32>
    %cst_93 = arith.constant dense<0.000000e+00> : vector<17x96xf32>
    %196 = tpu.matmul %193, %195, %cst_93 {dimension_numbers = #tpu.dot_dimension_numbers<[1], [0], [0], [1], [0, 0, 1, 1], [], []>} : vector<17x32xf32>, vector<32x96xf32>, vector<17x96xf32> -> vector<17x96xf32>
    %c1_94 = arith.constant 1 : index
    %c32_95 = arith.constant 32 : index
    %c0_96 = arith.constant 0 : index
    %197 = vector.load %arg5[%c1_94, %c32_95, %c0_96] : memref<2x33x96xf32, #tpu.memory_space<vmem>>, vector<1x1x96xf32>
    %198 = vector.shape_cast %197 : vector<1x1x96xf32> to vector<1x96xf32>
    %199 = vector.broadcast %198 : vector<1x96xf32> to vector<17x96xf32>
    %200 = arith.addf %196, %199 : vector<17x96xf32>
    %c1_97 = arith.constant 1 : index
    %c32_98 = arith.constant 32 : index
    %c0_99 = arith.constant 0 : index
    %201 = vector.load %arg6[%c1_97, %c32_98, %c0_99] : memref<2x33x32xf32, #tpu.memory_space<vmem>>, vector<1x1x32xf32>
    %202 = vector.shape_cast %201 : vector<1x1x32xf32> to vector<1x32xf32>
    %203 = vector.extract_strided_slice %200 {offsets = [0, 0], sizes = [17, 8], strides = [1, 1]} : vector<17x96xf32> to vector<17x8xf32>
    %204 = vector.extract_strided_slice %200 {offsets = [0, 32], sizes = [17, 8], strides = [1, 1]} : vector<17x96xf32> to vector<17x8xf32>
    %205 = vector.extract_strided_slice %200 {offsets = [0, 64], sizes = [17, 8], strides = [1, 1]} : vector<17x96xf32> to vector<17x8xf32>
    %cst_100 = arith.constant dense<0.000000e+00> : vector<17x17xf32>
    %206 = tpu.matmul %203, %204, %cst_100 {dimension_numbers = #tpu.dot_dimension_numbers<[1], [1], [0], [0], [0, 0, 1, 0], [], []>} : vector<17x8xf32>, vector<17x8xf32>, vector<17x17xf32> -> vector<17x17xf32>
    %cst_101 = arith.constant dense<0xFF800000> : vector<17xf32>
    %207 = vector.multi_reduction <maximumf>, %206, %cst_101 [1] : vector<17x17xf32> to vector<17xf32>
    %208 = vector.shape_cast %207 : vector<17xf32> to vector<17x1xf32>
    %209 = vector.broadcast %208 : vector<17x1xf32> to vector<17x17xf32>
    %210 = arith.subf %206, %209 : vector<17x17xf32>
    %211 = math.exp %210 : vector<17x17xf32>
    %cst_102 = arith.constant dense<0.000000e+00> : vector<17xf32>
    %212 = vector.multi_reduction <add>, %211, %cst_102 [1] : vector<17x17xf32> to vector<17xf32>
    %213 = vector.shape_cast %212 : vector<17xf32> to vector<17x1xf32>
    %214 = tpu.reciprocal %213 {approx = true} : vector<17x1xf32> -> vector<17x1xf32>
    %215 = vector.broadcast %214 : vector<17x1xf32> to vector<17x17xf32>
    %216 = arith.mulf %211, %215 : vector<17x17xf32>
    %cst_103 = arith.constant dense<0.000000e+00> : vector<17x8xf32>
    %217 = tpu.matmul %216, %205, %cst_103 {dimension_numbers = #tpu.dot_dimension_numbers<[1], [0], [0], [1], [0, 0, 1, 1], [], []>} : vector<17x17xf32>, vector<17x8xf32>, vector<17x8xf32> -> vector<17x8xf32>
    %c1_104 = arith.constant 1 : index
    %c0_105 = arith.constant 0 : index
    %c0_106 = arith.constant 0 : index
    %218 = vector.load %arg6[%c1_104, %c0_105, %c0_106] : memref<2x33x32xf32, #tpu.memory_space<vmem>>, vector<1x8x32xf32>
    %219 = vector.shape_cast %218 : vector<1x8x32xf32> to vector<8x32xf32>
    %cst_107 = arith.constant dense<0.000000e+00> : vector<17x32xf32>
    %220 = tpu.matmul %217, %219, %cst_107 {dimension_numbers = #tpu.dot_dimension_numbers<[1], [0], [0], [1], [0, 0, 1, 1], [], []>} : vector<17x8xf32>, vector<8x32xf32>, vector<17x32xf32> -> vector<17x32xf32>
    %221 = vector.broadcast %202 : vector<1x32xf32> to vector<17x32xf32>
    %222 = arith.addf %221, %220 : vector<17x32xf32>
    %223 = vector.extract_strided_slice %200 {offsets = [0, 8], sizes = [17, 8], strides = [1, 1]} : vector<17x96xf32> to vector<17x8xf32>
    %224 = vector.extract_strided_slice %200 {offsets = [0, 40], sizes = [17, 8], strides = [1, 1]} : vector<17x96xf32> to vector<17x8xf32>
    %225 = vector.extract_strided_slice %200 {offsets = [0, 72], sizes = [17, 8], strides = [1, 1]} : vector<17x96xf32> to vector<17x8xf32>
    %cst_108 = arith.constant dense<0.000000e+00> : vector<17x17xf32>
    %226 = tpu.matmul %223, %224, %cst_108 {dimension_numbers = #tpu.dot_dimension_numbers<[1], [1], [0], [0], [0, 0, 1, 0], [], []>} : vector<17x8xf32>, vector<17x8xf32>, vector<17x17xf32> -> vector<17x17xf32>
    %cst_109 = arith.constant dense<0xFF800000> : vector<17xf32>
    %227 = vector.multi_reduction <maximumf>, %226, %cst_109 [1] : vector<17x17xf32> to vector<17xf32>
    %228 = vector.shape_cast %227 : vector<17xf32> to vector<17x1xf32>
    %229 = vector.broadcast %228 : vector<17x1xf32> to vector<17x17xf32>
    %230 = arith.subf %226, %229 : vector<17x17xf32>
    %231 = math.exp %230 : vector<17x17xf32>
    %cst_110 = arith.constant dense<0.000000e+00> : vector<17xf32>
    %232 = vector.multi_reduction <add>, %231, %cst_110 [1] : vector<17x17xf32> to vector<17xf32>
    %233 = vector.shape_cast %232 : vector<17xf32> to vector<17x1xf32>
    %234 = tpu.reciprocal %233 {approx = true} : vector<17x1xf32> -> vector<17x1xf32>
    %235 = vector.broadcast %234 : vector<17x1xf32> to vector<17x17xf32>
    %236 = arith.mulf %231, %235 : vector<17x17xf32>
    %cst_111 = arith.constant dense<0.000000e+00> : vector<17x8xf32>
    %237 = tpu.matmul %236, %225, %cst_111 {dimension_numbers = #tpu.dot_dimension_numbers<[1], [0], [0], [1], [0, 0, 1, 1], [], []>} : vector<17x17xf32>, vector<17x8xf32>, vector<17x8xf32> -> vector<17x8xf32>
    %c1_112 = arith.constant 1 : index
    %c8_113 = arith.constant 8 : index
    %c0_114 = arith.constant 0 : index
    %238 = vector.load %arg6[%c1_112, %c8_113, %c0_114] : memref<2x33x32xf32, #tpu.memory_space<vmem>>, vector<1x8x32xf32>
    %239 = vector.shape_cast %238 : vector<1x8x32xf32> to vector<8x32xf32>
    %cst_115 = arith.constant dense<0.000000e+00> : vector<17x32xf32>
    %240 = tpu.matmul %237, %239, %cst_115 {dimension_numbers = #tpu.dot_dimension_numbers<[1], [0], [0], [1], [0, 0, 1, 1], [], []>} : vector<17x8xf32>, vector<8x32xf32>, vector<17x32xf32> -> vector<17x32xf32>
    %241 = arith.addf %222, %240 : vector<17x32xf32>
    %242 = vector.extract_strided_slice %200 {offsets = [0, 16], sizes = [17, 8], strides = [1, 1]} : vector<17x96xf32> to vector<17x8xf32>
    %243 = vector.extract_strided_slice %200 {offsets = [0, 48], sizes = [17, 8], strides = [1, 1]} : vector<17x96xf32> to vector<17x8xf32>
    %244 = vector.extract_strided_slice %200 {offsets = [0, 80], sizes = [17, 8], strides = [1, 1]} : vector<17x96xf32> to vector<17x8xf32>
    %cst_116 = arith.constant dense<0.000000e+00> : vector<17x17xf32>
    %245 = tpu.matmul %242, %243, %cst_116 {dimension_numbers = #tpu.dot_dimension_numbers<[1], [1], [0], [0], [0, 0, 1, 0], [], []>} : vector<17x8xf32>, vector<17x8xf32>, vector<17x17xf32> -> vector<17x17xf32>
    %cst_117 = arith.constant dense<0xFF800000> : vector<17xf32>
    %246 = vector.multi_reduction <maximumf>, %245, %cst_117 [1] : vector<17x17xf32> to vector<17xf32>
    %247 = vector.shape_cast %246 : vector<17xf32> to vector<17x1xf32>
    %248 = vector.broadcast %247 : vector<17x1xf32> to vector<17x17xf32>
    %249 = arith.subf %245, %248 : vector<17x17xf32>
    %250 = math.exp %249 : vector<17x17xf32>
    %cst_118 = arith.constant dense<0.000000e+00> : vector<17xf32>
    %251 = vector.multi_reduction <add>, %250, %cst_118 [1] : vector<17x17xf32> to vector<17xf32>
    %252 = vector.shape_cast %251 : vector<17xf32> to vector<17x1xf32>
    %253 = tpu.reciprocal %252 {approx = true} : vector<17x1xf32> -> vector<17x1xf32>
    %254 = vector.broadcast %253 : vector<17x1xf32> to vector<17x17xf32>
    %255 = arith.mulf %250, %254 : vector<17x17xf32>
    %cst_119 = arith.constant dense<0.000000e+00> : vector<17x8xf32>
    %256 = tpu.matmul %255, %244, %cst_119 {dimension_numbers = #tpu.dot_dimension_numbers<[1], [0], [0], [1], [0, 0, 1, 1], [], []>} : vector<17x17xf32>, vector<17x8xf32>, vector<17x8xf32> -> vector<17x8xf32>
    %c1_120 = arith.constant 1 : index
    %c16_121 = arith.constant 16 : index
    %c0_122 = arith.constant 0 : index
    %257 = vector.load %arg6[%c1_120, %c16_121, %c0_122] : memref<2x33x32xf32, #tpu.memory_space<vmem>>, vector<1x8x32xf32>
    %258 = vector.shape_cast %257 : vector<1x8x32xf32> to vector<8x32xf32>
    %cst_123 = arith.constant dense<0.000000e+00> : vector<17x32xf32>
    %259 = tpu.matmul %256, %258, %cst_123 {dimension_numbers = #tpu.dot_dimension_numbers<[1], [0], [0], [1], [0, 0, 1, 1], [], []>} : vector<17x8xf32>, vector<8x32xf32>, vector<17x32xf32> -> vector<17x32xf32>
    %260 = arith.addf %241, %259 : vector<17x32xf32>
    %261 = vector.extract_strided_slice %200 {offsets = [0, 24], sizes = [17, 8], strides = [1, 1]} : vector<17x96xf32> to vector<17x8xf32>
    %262 = vector.extract_strided_slice %200 {offsets = [0, 56], sizes = [17, 8], strides = [1, 1]} : vector<17x96xf32> to vector<17x8xf32>
    %263 = vector.extract_strided_slice %200 {offsets = [0, 88], sizes = [17, 8], strides = [1, 1]} : vector<17x96xf32> to vector<17x8xf32>
    %cst_124 = arith.constant dense<0.000000e+00> : vector<17x17xf32>
    %264 = tpu.matmul %261, %262, %cst_124 {dimension_numbers = #tpu.dot_dimension_numbers<[1], [1], [0], [0], [0, 0, 1, 0], [], []>} : vector<17x8xf32>, vector<17x8xf32>, vector<17x17xf32> -> vector<17x17xf32>
    %cst_125 = arith.constant dense<0xFF800000> : vector<17xf32>
    %265 = vector.multi_reduction <maximumf>, %264, %cst_125 [1] : vector<17x17xf32> to vector<17xf32>
    %266 = vector.shape_cast %265 : vector<17xf32> to vector<17x1xf32>
    %267 = vector.broadcast %266 : vector<17x1xf32> to vector<17x17xf32>
    %268 = arith.subf %264, %267 : vector<17x17xf32>
    %269 = math.exp %268 : vector<17x17xf32>
    %cst_126 = arith.constant dense<0.000000e+00> : vector<17xf32>
    %270 = vector.multi_reduction <add>, %269, %cst_126 [1] : vector<17x17xf32> to vector<17xf32>
    %271 = vector.shape_cast %270 : vector<17xf32> to vector<17x1xf32>
    %272 = tpu.reciprocal %271 {approx = true} : vector<17x1xf32> -> vector<17x1xf32>
    %273 = vector.broadcast %272 : vector<17x1xf32> to vector<17x17xf32>
    %274 = arith.mulf %269, %273 : vector<17x17xf32>
    %cst_127 = arith.constant dense<0.000000e+00> : vector<17x8xf32>
    %275 = tpu.matmul %274, %263, %cst_127 {dimension_numbers = #tpu.dot_dimension_numbers<[1], [0], [0], [1], [0, 0, 1, 1], [], []>} : vector<17x17xf32>, vector<17x8xf32>, vector<17x8xf32> -> vector<17x8xf32>
    %c1_128 = arith.constant 1 : index
    %c24_129 = arith.constant 24 : index
    %c0_130 = arith.constant 0 : index
    %276 = vector.load %arg6[%c1_128, %c24_129, %c0_130] : memref<2x33x32xf32, #tpu.memory_space<vmem>>, vector<1x8x32xf32>
    %277 = vector.shape_cast %276 : vector<1x8x32xf32> to vector<8x32xf32>
    %cst_131 = arith.constant dense<0.000000e+00> : vector<17x32xf32>
    %278 = tpu.matmul %275, %277, %cst_131 {dimension_numbers = #tpu.dot_dimension_numbers<[1], [0], [0], [1], [0, 0, 1, 1], [], []>} : vector<17x8xf32>, vector<8x32xf32>, vector<17x32xf32> -> vector<17x32xf32>
    %279 = arith.addf %260, %278 : vector<17x32xf32>
    %280 = arith.addf %279, %167 : vector<17x32xf32>
    %c1_132 = arith.constant 1 : index
    %c2_133 = arith.constant 2 : index
    %c0_134 = arith.constant 0 : index
    %281 = vector.load %arg4[%c1_132, %c2_133, %c0_134] : memref<2x4x32xf32, #tpu.memory_space<vmem>>, vector<1x1x32xf32>
    %282 = vector.shape_cast %281 : vector<1x1x32xf32> to vector<1x32xf32>
    %c1_135 = arith.constant 1 : index
    %c3_136 = arith.constant 3 : index
    %c0_137 = arith.constant 0 : index
    %283 = vector.load %arg4[%c1_135, %c3_136, %c0_137] : memref<2x4x32xf32, #tpu.memory_space<vmem>>, vector<1x1x32xf32>
    %284 = vector.shape_cast %283 : vector<1x1x32xf32> to vector<1x32xf32>
    %cst_138 = arith.constant dense<0.000000e+00> : vector<17xf32>
    %285 = vector.multi_reduction <add>, %280, %cst_138 [1] : vector<17x32xf32> to vector<17xf32>
    %286 = vector.shape_cast %285 : vector<17xf32> to vector<17x1xf32>
    %cst_139 = arith.constant 3.200000e+01 : f32
    %287 = vector.broadcast %cst_139 : f32 to vector<17x1xf32>
    %288 = arith.divf %286, %287 : vector<17x1xf32>
    %289 = vector.broadcast %288 : vector<17x1xf32> to vector<17x32xf32>
    %290 = arith.subf %280, %289 : vector<17x32xf32>
    %291 = arith.mulf %290, %290 : vector<17x32xf32>
    %cst_140 = arith.constant dense<0.000000e+00> : vector<17xf32>
    %292 = vector.multi_reduction <add>, %291, %cst_140 [1] : vector<17x32xf32> to vector<17xf32>
    %293 = vector.shape_cast %292 : vector<17xf32> to vector<17x1xf32>
    %cst_141 = arith.constant 3.200000e+01 : f32
    %294 = vector.broadcast %cst_141 : f32 to vector<17x1xf32>
    %295 = arith.divf %293, %294 : vector<17x1xf32>
    %296 = vector.broadcast %288 : vector<17x1xf32> to vector<17x32xf32>
    %297 = arith.subf %280, %296 : vector<17x32xf32>
    %cst_142 = arith.constant 9.99999974E-6 : f32
    %298 = vector.broadcast %cst_142 : f32 to vector<17x1xf32>
    %299 = arith.addf %295, %298 : vector<17x1xf32>
    %300 = math.rsqrt %299 : vector<17x1xf32>
    %301 = vector.broadcast %300 : vector<17x1xf32> to vector<17x32xf32>
    %302 = arith.mulf %297, %301 : vector<17x32xf32>
    %303 = vector.broadcast %282 : vector<1x32xf32> to vector<17x32xf32>
    %304 = arith.mulf %302, %303 : vector<17x32xf32>
    %305 = vector.broadcast %284 : vector<1x32xf32> to vector<17x32xf32>
    %306 = arith.addf %304, %305 : vector<17x32xf32>
    %c1_143 = arith.constant 1 : index
    %c0_144 = arith.constant 0 : index
    %c0_145 = arith.constant 0 : index
    %307 = vector.load %arg7[%c1_143, %c0_144, %c0_145] : memref<2x33x128xf32, #tpu.memory_space<vmem>>, vector<1x32x128xf32>
    %308 = vector.shape_cast %307 : vector<1x32x128xf32> to vector<32x128xf32>
    %cst_146 = arith.constant dense<0.000000e+00> : vector<17x128xf32>
    %309 = tpu.matmul %306, %308, %cst_146 {dimension_numbers = #tpu.dot_dimension_numbers<[1], [0], [0], [1], [0, 0, 1, 1], [], []>} : vector<17x32xf32>, vector<32x128xf32>, vector<17x128xf32> -> vector<17x128xf32>
    %c1_147 = arith.constant 1 : index
    %c32_148 = arith.constant 32 : index
    %c0_149 = arith.constant 0 : index
    %310 = vector.load %arg7[%c1_147, %c32_148, %c0_149] : memref<2x33x128xf32, #tpu.memory_space<vmem>>, vector<1x1x128xf32>
    %311 = vector.shape_cast %310 : vector<1x1x128xf32> to vector<1x128xf32>
    %312 = vector.broadcast %311 : vector<1x128xf32> to vector<17x128xf32>
    %313 = arith.addf %309, %312 : vector<17x128xf32>
    %cst_150 = arith.constant 5.000000e-01 : f32
    %314 = vector.broadcast %cst_150 : f32 to vector<17x128xf32>
    %315 = arith.mulf %314, %313 : vector<17x128xf32>
    %cst_151 = arith.constant 0.707106769 : f32
    %316 = vector.broadcast %cst_151 : f32 to vector<17x128xf32>
    %317 = arith.mulf %313, %316 : vector<17x128xf32>
    %318 = math.erf %317 : vector<17x128xf32>
    %cst_152 = arith.constant 1.000000e+00 : f32
    %319 = vector.broadcast %cst_152 : f32 to vector<17x128xf32>
    %320 = arith.addf %319, %318 : vector<17x128xf32>
    %321 = arith.mulf %315, %320 : vector<17x128xf32>
    %c1_153 = arith.constant 1 : index
    %c0_154 = arith.constant 0 : index
    %c0_155 = arith.constant 0 : index
    %322 = vector.load %arg8[%c1_153, %c0_154, %c0_155] : memref<2x129x32xf32, #tpu.memory_space<vmem>>, vector<1x128x32xf32>
    %323 = vector.shape_cast %322 : vector<1x128x32xf32> to vector<128x32xf32>
    %cst_156 = arith.constant dense<0.000000e+00> : vector<17x32xf32>
    %324 = tpu.matmul %321, %323, %cst_156 {dimension_numbers = #tpu.dot_dimension_numbers<[1], [0], [0], [1], [0, 0, 1, 1], [], []>} : vector<17x128xf32>, vector<128x32xf32>, vector<17x32xf32> -> vector<17x32xf32>
    %c1_157 = arith.constant 1 : index
    %c128_158 = arith.constant 128 : index
    %c0_159 = arith.constant 0 : index
    %325 = vector.load %arg8[%c1_157, %c128_158, %c0_159] : memref<2x129x32xf32, #tpu.memory_space<vmem>>, vector<1x1x32xf32>
    %326 = vector.shape_cast %325 : vector<1x1x32xf32> to vector<1x32xf32>
    %327 = vector.broadcast %326 : vector<1x32xf32> to vector<17x32xf32>
    %328 = arith.addf %324, %327 : vector<17x32xf32>
    %329 = arith.addf %328, %306 : vector<17x32xf32>
    %330 = vector.extract_strided_slice %329 {offsets = [0, 0], sizes = [1, 32], strides = [1, 1]} : vector<17x32xf32> to vector<1x32xf32>
    %c0_160 = arith.constant 0 : index
    %c0_161 = arith.constant 0 : index
    %331 = vector.load %arg9[%c0_160, %c0_161] : memref<33x10xf32, #tpu.memory_space<vmem>>, vector<32x10xf32>
    %cst_162 = arith.constant dense<0.000000e+00> : vector<1x10xf32>
    %332 = tpu.matmul %330, %331, %cst_162 {dimension_numbers = #tpu.dot_dimension_numbers<[1], [0], [0], [1], [0, 0, 1, 1], [], []>} : vector<1x32xf32>, vector<32x10xf32>, vector<1x10xf32> -> vector<1x10xf32>
    %c32_163 = arith.constant 32 : index
    %c0_164 = arith.constant 0 : index
    %333 = vector.load %arg9[%c32_163, %c0_164] : memref<33x10xf32, #tpu.memory_space<vmem>>, vector<1x10xf32>
    %334 = arith.addf %332, %333 : vector<1x10xf32>
    %cst_165 = arith.constant dense<0xFF800000> : vector<1xf32>
    %335 = vector.multi_reduction <maximumf>, %334, %cst_165 [1] : vector<1x10xf32> to vector<1xf32>
    %336 = vector.shape_cast %335 : vector<1xf32> to vector<1x1xf32>
    %337 = vector.broadcast %336 : vector<1x1xf32> to vector<1x10xf32>
    %338 = arith.subf %334, %337 : vector<1x10xf32>
    %339 = math.exp %338 : vector<1x10xf32>
    %cst_166 = arith.constant dense<0.000000e+00> : vector<1xf32>
    %340 = vector.multi_reduction <add>, %339, %cst_166 [1] : vector<1x10xf32> to vector<1xf32>
    %341 = vector.shape_cast %340 : vector<1xf32> to vector<1x1xf32>
    %342 = tpu.reciprocal %341 {approx = true} : vector<1x1xf32> -> vector<1x1xf32>
    %343 = vector.broadcast %342 : vector<1x1xf32> to vector<1x10xf32>
    %344 = arith.mulf %339, %343 : vector<1x10xf32>
    %c0_167 = arith.constant 0 : index
    %c0_168 = arith.constant 0 : index
    %c0_169 = arith.constant 0 : index
    %345 = vector.load %arg10[%c0_167, %c0_168, %c0_169] : memref<1x1x10xf32, #tpu.memory_space<vmem>>, vector<1x1x10xf32>
    %346 = vector.shape_cast %345 : vector<1x1x10xf32> to vector<1x10xf32>
    %347 = vector.shape_cast %344 : vector<1x10xf32> to vector<1x1x10xf32>
    tpu.vector_store %arg10[%c0_167, %c0_168, %c0_169], %347 {strides = array<i32>} : memref<1x1x10xf32, #tpu.memory_space<vmem>>, vector<1x1x10xf32>,
    return
  }
  func.func @transform_0(%arg0: i32) -> (i32, i32, i32) {
    %c0_i32 = arith.constant 0 : i32
    %c0_i32_0 = arith.constant 0 : i32
    %c0_i32_1 = arith.constant 0 : i32
    return %arg0, %c0_i32, %c0_i32_0 : i32, i32, i32
  }
  func.func @transform_1(%arg0: i32) -> (i32, i32) {
    %c0_i32 = arith.constant 0 : i32
    %c0_i32_0 = arith.constant 0 : i32
    %c0_i32_1 = arith.constant 0 : i32
    return %c0_i32, %c0_i32_0 : i32, i32
  }
  func.func @transform_2(%arg0: i32) -> (i32, i32) {
    %c0_i32 = arith.constant 0 : i32
    %c0_i32_0 = arith.constant 0 : i32
    %c0_i32_1 = arith.constant 0 : i32
    return %c0_i32, %c0_i32_0 : i32, i32
  }
  func.func @transform_3(%arg0: i32) -> (i32, i32, i32) {
    %c0_i32 = arith.constant 0 : i32
    %c0_i32_0 = arith.constant 0 : i32
    %c0_i32_1 = arith.constant 0 : i32
    %c0_i32_2 = arith.constant 0 : i32
    return %c0_i32, %c0_i32_0, %c0_i32_1 : i32, i32, i32
  }
  func.func @transform_4(%arg0: i32) -> (i32, i32, i32) {
    %c0_i32 = arith.constant 0 : i32
    %c0_i32_0 = arith.constant 0 : i32
    %c0_i32_1 = arith.constant 0 : i32
    %c0_i32_2 = arith.constant 0 : i32
    return %c0_i32, %c0_i32_0, %c0_i32_1 : i32, i32, i32
  }
  func.func @transform_5(%arg0: i32) -> (i32, i32, i32) {
    %c0_i32 = arith.constant 0 : i32
    %c0_i32_0 = arith.constant 0 : i32
    %c0_i32_1 = arith.constant 0 : i32
    %c0_i32_2 = arith.constant 0 : i32
    return %c0_i32, %c0_i32_0, %c0_i32_1 : i32, i32, i32
  }
  func.func @transform_6(%arg0: i32) -> (i32, i32, i32) {
    %c0_i32 = arith.constant 0 : i32
    %c0_i32_0 = arith.constant 0 : i32
    %c0_i32_1 = arith.constant 0 : i32
    %c0_i32_2 = arith.constant 0 : i32
    return %c0_i32, %c0_i32_0, %c0_i32_1 : i32, i32, i32
  }
  func.func @transform_7(%arg0: i32) -> (i32, i32, i32) {
    %c0_i32 = arith.constant 0 : i32
    %c0_i32_0 = arith.constant 0 : i32
    %c0_i32_1 = arith.constant 0 : i32
    %c0_i32_2 = arith.constant 0 : i32
    return %c0_i32, %c0_i32_0, %c0_i32_1 : i32, i32, i32
  }
  func.func @transform_8(%arg0: i32) -> (i32, i32) {
    %c0_i32 = arith.constant 0 : i32
    %c0_i32_0 = arith.constant 0 : i32
    %c0_i32_1 = arith.constant 0 : i32
    return %c0_i32, %c0_i32_0 : i32, i32
  }
  func.func @transform_9(%arg0: i32) -> (i32, i32, i32) {
    %c0_i32 = arith.constant 0 : i32
    %c0_i32_0 = arith.constant 0 : i32
    %c0_i32_1 = arith.constant 0 : i32
    return %arg0, %c0_i32, %c0_i32_0 : i32, i32, i32
  }
}

</mosaic_0001>

<llo_original>
// kernel: tpu_custom_call.1
$region0: #{tpu_custom_call.1}
  #allocation0 [shape = 'u32[]', space=smem, size = 0x4, offset = 0x4, fixed_abs, tag = 'smem constant byte address 0x4 - core index']
  #allocation1 [shape = 'u32[144,128]{1,0:T(1,128)}', space=vmem, size = 0x12000, scoped, tag = 'internal scratch']
  %s0 = inlined_call_operand.vmem [shape: f32[2,17,64], index: 0, kind: input, shape index: {}]
  %s1 = inlined_call_operand.vmem [shape: f32[64,32], index: 1, kind: input, shape index: {}]
  %s2 = inlined_call_operand.vmem [shape: f32[17,32], index: 2, kind: input, shape index: {}]
  %s3 = inlined_call_operand.vmem [shape: f32[2,4,32], index: 3, kind: input, shape index: {}]
  %s4 = inlined_call_operand.vmem [shape: f32[2,33,96], index: 4, kind: input, shape index: {}]
  %s5 = inlined_call_operand.vmem [shape: f32[2,33,32], index: 5, kind: input, shape index: {}]
  %s6 = inlined_call_operand.vmem [shape: f32[2,33,128], index: 6, kind: input, shape index: {}]
  %s7 = inlined_call_operand.vmem [shape: f32[2,129,32], index: 7, kind: input, shape index: {}]
  %s8 = inlined_call_operand.vmem [shape: f32[33,10], index: 8, kind: input, shape index: {}]
  %s9 = inlined_call_operand.hbm [shape: f32[2,1,10], index: 9, kind: output, shape index: {}]
  %s10 = sld [smem:[#allocation0]]
  $region69: #{tpu_custom_call.1} parent=0
    _
  %s12 = ssub.s32 1, %s10
  %s13 = scalar_select 0, %s12, %s10
  $region1: #{tpu_custom_call.1} parent=0
    #allocation2 [shape = 'u8[1024]{0}', space=vmem, size = 0x400, scoped, tag = 'output window, operand 0']
    #allocation3 [shape = 's32[2]{0}', space=sflag, size = 0x8, scoped, tag = 'scoped memory for tpu_custom_call.1']
    %14 = vsyncpa [#allocation3], 0
    %s15 = scalar_lea.sflag [#allocation3], 1
    %16 = vsyncpa %s15, 0
    loop: start=0, step=1, limit=4
    $region2: #{tpu_custom_call.1} parent=1 // loop_pre_header
      _
    $region3: #{tpu_custom_call.1} parent=1 // loop_header
      %s18 = sphi 0, %s22
      %p19 = scmp.ge.s32.totalorder %s18, 4
      %s28 = sphi 0, %s30
      %s31 = sphi 0, %s28
      %s32 = sphi 0, %s31
      %s48 = sphi 0, %s32
      %s52 = sphi 0, %s52
      %s54 = sphi 0, %s52
      %s55 = sphi 0, %s54
      %s69 = sphi 0, %s55
      %s73 = sphi 0, %s73
      %s75 = sphi 0, %s73
      %s76 = sphi 0, %s75
      %s90 = sphi 0, %s76
      %s94 = sphi 0, %s94
      %s96 = sphi 0, %s94
      %s97 = sphi 0, %s96
      %s111 = sphi 0, %s97
      %s115 = sphi 0, %s115
      %s117 = sphi 0, %s115
      %s118 = sphi 0, %s117
      %s132 = sphi 0, %s118
      %s136 = sphi 0, %s136
      %s138 = sphi 0, %s136
      %s139 = sphi 0, %s138
      %s153 = sphi 0, %s139
      %s157 = sphi 0, %s157
      %s159 = sphi 0, %s157
      %s160 = sphi 0, %s159
      %s174 = sphi 0, %s160
      %s178 = sphi 0, %s178
      %s180 = sphi 0, %s178
      %s181 = sphi 0, %s180
      %s195 = sphi 0, %s181
      %s199 = sphi 0, %s199
      %s201 = sphi 0, %s199
      %s202 = sphi 0, %s201
      %s216 = sphi 0, %s202
      %s222 = sphi 0, %s224
      %s225 = sphi 0, %s222
      %s226 = sphi 0, %s225
      %s242 = sphi 0, %s226
    $region4: #{tpu_custom_call.1} parent=1 // loop_header_branch
      %21 = sbr.rel (%p19) target = $region8
    $region5: #{tpu_custom_call.1} parent=1 // loop_body
      %s23 = ssub.s32 %s18, 1
      %s24 = ssub.s32 %s18, 2
      %s25 = sadd.s32 %s18, 1
      %s26 = ssub.s32 %s18, %s25
      %p27 = scmp.eq.s32.totalorder %s26, 0
      %s29 = sadd.s32 %s28, 1
      %s30 = scalar_select %p27, %s28, %s29
      %p33 = pneg %p27
      %p34 = scmp.eq.s32.totalorder %s18, 1
      %p35 = por %p33, %p34
      %p36 = scmp.ne.s32.totalorder %s28, %s31
      %p37 = scmp.eq.s32.totalorder %s18, 0
      %p38 = por %p36, %p37
      %p39 = scmp.ne.s32.totalorder %s28, %s31
      %p40 = scmp.eq.s32.totalorder %s23, 1
      %p41 = por %p39, %p40
      %p42 = scmp.ne.s32.totalorder %s31, %s32
      %p43 = scmp.eq.s32.totalorder %s23, 0
      %p44 = por %p42, %p43
      %p45 = scmp.ne.s32.totalorder %s31, %s32
      %p46 = scmp.eq.s32.totalorder %s24, 1
      %p47 = por %p45, %p46
      %p49 = scmp.ne.s32.totalorder %s32, %s48
      %p50 = scmp.eq.s32.totalorder %s24, 0
      %p51 = por %p49, %p50
      %s53 = sadd.s32 %s52, 1
      %p56 = scmp.eq.s32.totalorder %s18, 1
      %p57 = scmp.ne.s32.totalorder %s52, %s54
      %p58 = scmp.eq.s32.totalorder %s18, 0
      %p59 = por %p57, %p58
      %p60 = scmp.ne.s32.totalorder %s52, %s54
      %p61 = scmp.eq.s32.totalorder %s23, 1
      %p62 = por %p60, %p61
      %p63 = scmp.ne.s32.totalorder %s54, %s55
      %p64 = scmp.eq.s32.totalorder %s23, 0
      %p65 = por %p63, %p64
      %p66 = scmp.ne.s32.totalorder %s54, %s55
      %p67 = scmp.eq.s32.totalorder %s24, 1
      %p68 = por %p66, %p67
      %p70 = scmp.ne.s32.totalorder %s55, %s69
      %p71 = scmp.eq.s32.totalorder %s24, 0
      %p72 = por %p70, %p71
      %s74 = sadd.s32 %s73, 1
      %p77 = scmp.eq.s32.totalorder %s18, 1
      %p78 = scmp.ne.s32.totalorder %s73, %s75
      %p79 = scmp.eq.s32.totalorder %s18, 0
      %p80 = por %p78, %p79
      %p81 = scmp.ne.s32.totalorder %s73, %s75
      %p82 = scmp.eq.s32.totalorder %s23, 1
      %p83 = por %p81, %p82
      %p84 = scmp.ne.s32.totalorder %s75, %s76
      %p85 = scmp.eq.s32.totalorder %s23, 0
      %p86 = por %p84, %p85
      %p87 = scmp.ne.s32.totalorder %s75, %s76
      %p88 = scmp.eq.s32.totalorder %s24, 1
      %p89 = por %p87, %p88
      %p91 = scmp.ne.s32.totalorder %s76, %s90
      %p92 = scmp.eq.s32.totalorder %s24, 0
      %p93 = por %p91, %p92
      %s95 = sadd.s32 %s94, 1
      %p98 = scmp.eq.s32.totalorder %s18, 1
      %p99 = scmp.ne.s32.totalorder %s94, %s96
      %p100 = scmp.eq.s32.totalorder %s18, 0
      %p101 = por %p99, %p100
      %p102 = scmp.ne.s32.totalorder %s94, %s96
      %p103 = scmp.eq.s32.totalorder %s23, 1
      %p104 = por %p102, %p103
      %p105 = scmp.ne.s32.totalorder %s96, %s97
      %p106 = scmp.eq.s32.totalorder %s23, 0
      %p107 = por %p105, %p106
      %p108 = scmp.ne.s32.totalorder %s96, %s97
      %p109 = scmp.eq.s32.totalorder %s24, 1
      %p110 = por %p108, %p109
      %p112 = scmp.ne.s32.totalorder %s97, %s111
      %p113 = scmp.eq.s32.totalorder %s24, 0
      %p114 = por %p112, %p113
      %s116 = sadd.s32 %s115, 1
      %p119 = scmp.eq.s32.totalorder %s18, 1
      %p120 = scmp.ne.s32.totalorder %s115, %s117
      %p121 = scmp.eq.s32.totalorder %s18, 0
      %p122 = por %p120, %p121
      %p123 = scmp.ne.s32.totalorder %s115, %s117
      %p124 = scmp.eq.s32.totalorder %s23, 1
      %p125 = por %p123, %p124
      %p126 = scmp.ne.s32.totalorder %s117, %s118
      %p127 = scmp.eq.s32.totalorder %s23, 0
      %p128 = por %p126, %p127
      %p129 = scmp.ne.s32.totalorder %s117, %s118
      %p130 = scmp.eq.s32.totalorder %s24, 1
      %p131 = por %p129, %p130
      %p133 = scmp.ne.s32.totalorder %s118, %s132
      %p134 = scmp.eq.s32.totalorder %s24, 0
      %p135 = por %p133, %p134
      %s137 = sadd.s32 %s136, 1
      %p140 = scmp.eq.s32.totalorder %s18, 1
      %p141 = scmp.ne.s32.totalorder %s136, %s138
      %p142 = scmp.eq.s32.totalorder %s18, 0
      %p143 = por %p141, %p142
      %p144 = scmp.ne.s32.totalorder %s136, %s138
      %p145 = scmp.eq.s32.totalorder %s23, 1
      %p146 = por %p144, %p145
      %p147 = scmp.ne.s32.totalorder %s138, %s139
      %p148 = scmp.eq.s32.totalorder %s23, 0
      %p149 = por %p147, %p148
      %p150 = scmp.ne.s32.totalorder %s138, %s139
      %p151 = scmp.eq.s32.totalorder %s24, 1
      %p152 = por %p150, %p151
      %p154 = scmp.ne.s32.totalorder %s139, %s153
      %p155 = scmp.eq.s32.totalorder %s24, 0
      %p156 = por %p154, %p155
      %s158 = sadd.s32 %s157, 1
      %p161 = scmp.eq.s32.totalorder %s18, 1
      %p162 = scmp.ne.s32.totalorder %s157, %s159
      %p163 = scmp.eq.s32.totalorder %s18, 0
      %p164 = por %p162, %p163
      %p165 = scmp.ne.s32.totalorder %s157, %s159
      %p166 = scmp.eq.s32.totalorder %s23, 1
      %p167 = por %p165, %p166
      %p168 = scmp.ne.s32.totalorder %s159, %s160
      %p169 = scmp.eq.s32.totalorder %s23, 0
      %p170 = por %p168, %p169
      %p171 = scmp.ne.s32.totalorder %s159, %s160
      %p172 = scmp.eq.s32.totalorder %s24, 1
      %p173 = por %p171, %p172
      %p175 = scmp.ne.s32.totalorder %s160, %s174
      %p176 = scmp.eq.s32.totalorder %s24, 0
      %p177 = por %p175, %p176
      %s179 = sadd.s32 %s178, 1
      %p182 = scmp.eq.s32.totalorder %s18, 1
      %p183 = scmp.ne.s32.totalorder %s178, %s180
      %p184 = scmp.eq.s32.totalorder %s18, 0
      %p185 = por %p183, %p184
      %p186 = scmp.ne.s32.totalorder %s178, %s180
      %p187 = scmp.eq.s32.totalorder %s23, 1
      %p188 = por %p186, %p187
      %p189 = scmp.ne.s32.totalorder %s180, %s181
      %p190 = scmp.eq.s32.totalorder %s23, 0
      %p191 = por %p189, %p190
      %p192 = scmp.ne.s32.totalorder %s180, %s181
      %p193 = scmp.eq.s32.totalorder %s24, 1
      %p194 = por %p192, %p193
      %p196 = scmp.ne.s32.totalorder %s181, %s195
      %p197 = scmp.eq.s32.totalorder %s24, 0
      %p198 = por %p196, %p197
      %s200 = sadd.s32 %s199, 1
      %p203 = scmp.eq.s32.totalorder %s18, 1
      %p204 = scmp.ne.s32.totalorder %s199, %s201
      %p205 = scmp.eq.s32.totalorder %s18, 0
      %p206 = por %p204, %p205
      %p207 = scmp.ne.s32.totalorder %s199, %s201
      %p208 = scmp.eq.s32.totalorder %s23, 1
      %p209 = por %p207, %p208
      %p210 = scmp.ne.s32.totalorder %s201, %s202
      %p211 = scmp.eq.s32.totalorder %s23, 0
      %p212 = por %p210, %p211
      %p213 = scmp.ne.s32.totalorder %s201, %s202
      %p214 = scmp.eq.s32.totalorder %s24, 1
      %p215 = por %p213, %p214
      %p217 = scmp.ne.s32.totalorder %s202, %s216
      %p218 = scmp.eq.s32.totalorder %s24, 0
      %p219 = por %p217, %p218
      %s220 = ssub.s32 %s18, %s25
      %p221 = scmp.eq.s32.totalorder %s220, 0
      %s223 = sadd.s32 %s222, 1
      %s224 = scalar_select %p221, %s222, %s223
      %p227 = pneg %p221
      %p228 = scmp.eq.s32.totalorder %s18, 1
      %p229 = por %p227, %p228
      %p230 = scmp.ne.s32.totalorder %s222, %s225
      %p231 = scmp.eq.s32.totalorder %s18, 0
      %p232 = por %p230, %p231
      %p233 = scmp.ne.s32.totalorder %s222, %s225
      %p234 = scmp.eq.s32.totalorder %s23, 1
      %p235 = por %p233, %p234
      %p236 = scmp.ne.s32.totalorder %s225, %s226
      %p237 = scmp.eq.s32.totalorder %s23, 0
      %p238 = por %p236, %p237
      %p239 = scmp.ne.s32.totalorder %s225, %s226
      %p240 = scmp.eq.s32.totalorder %s24, 1
      %p241 = por %p239, %p240
      %p243 = scmp.ne.s32.totalorder %s226, %s242
      %p244 = scmp.eq.s32.totalorder %s24, 0
      %p245 = por %p243, %p244
      %p246 = scmp.le.s32.totalorder 1, %s18
      %p247 = scmp.lt.s32.totalorder %s18, 3
      %p248 = pnand %p246, %p247
      %p249 = pneg %p248
      // Predicated region
      $region9: #{tpu_custom_call.1} parent=5 // pred_check
        _
      $region10: #{tpu_custom_call.1} parent=5 // pred_check_branch
        %251 = sbr.rel (%p248) target = $region12
      $region11: #{tpu_custom_call.1} parent=5 // pred_region
        %s252 = ssub.s32 %s18, 1
        // Predicated region
        $region13: #{tpu_custom_call.1} parent=11 // pred_check
          %p253 = pneg %p65
        $region14: #{tpu_custom_call.1} parent=11 // pred_check_branch
          %255 = sbr.rel (%p253) target = $region16
        $region15: #{tpu_custom_call.1} parent=11 // pred_region
          _
        $region16: #{tpu_custom_call.1} parent=11 // pred_fallthru
          _
        // Predicated region
        $region17: #{tpu_custom_call.1} parent=11 // pred_check
          %p256 = pneg %p86
        $region18: #{tpu_custom_call.1} parent=11 // pred_check_branch
          %258 = sbr.rel (%p256) target = $region20
        $region19: #{tpu_custom_call.1} parent=11 // pred_region
          _
        $region20: #{tpu_custom_call.1} parent=11 // pred_fallthru
          _
        // Predicated region
        $region21: #{tpu_custom_call.1} parent=11 // pred_check
          %p259 = pneg %p107
        $region22: #{tpu_custom_call.1} parent=11 // pred_check_branch
          %261 = sbr.rel (%p259) target = $region24
        $region23: #{tpu_custom_call.1} parent=11 // pred_region
          _
        $region24: #{tpu_custom_call.1} parent=11 // pred_fallthru
          _
        // Predicated region
        $region25: #{tpu_custom_call.1} parent=11 // pred_check
          %p262 = pneg %p128
        $region26: #{tpu_custom_call.1} parent=11 // pred_check_branch
          %264 = sbr.rel (%p262) target = $region28
        $region27: #{tpu_custom_call.1} parent=11 // pred_region
          _
        $region28: #{tpu_custom_call.1} parent=11 // pred_fallthru
          _
        // Predicated region
        $region29: #{tpu_custom_call.1} parent=11 // pred_check
          %p265 = pneg %p149
        $region30: #{tpu_custom_call.1} parent=11 // pred_check_branch
          %267 = sbr.rel (%p265) target = $region32
        $region31: #{tpu_custom_call.1} parent=11 // pred_region
          _
        $region32: #{tpu_custom_call.1} parent=11 // pred_fallthru
          _
        // Predicated region
        $region33: #{tpu_custom_call.1} parent=11 // pred_check
          %p268 = pneg %p170
        $region34: #{tpu_custom_call.1} parent=11 // pred_check_branch
          %270 = sbr.rel (%p268) target = $region36
        $region35: #{tpu_custom_call.1} parent=11 // pred_region
          _
        $region36: #{tpu_custom_call.1} parent=11 // pred_fallthru
          _
        // Predicated region
        $region37: #{tpu_custom_call.1} parent=11 // pred_check
          %p271 = pneg %p191
        $region38: #{tpu_custom_call.1} parent=11 // pred_check_branch
          %273 = sbr.rel (%p271) target = $region40
        $region39: #{tpu_custom_call.1} parent=11 // pred_region
          _
        $region40: #{tpu_custom_call.1} parent=11 // pred_fallthru
          _
        // Predicated region
        $region41: #{tpu_custom_call.1} parent=11 // pred_check
          %p274 = pneg %p212
        $region42: #{tpu_custom_call.1} parent=11 // pred_check_branch
          %276 = sbr.rel (%p274) target = $region44
        $region43: #{tpu_custom_call.1} parent=11 // pred_region
          _
        $region44: #{tpu_custom_call.1} parent=11 // pred_fallthru
          _
      $region12: #{tpu_custom_call.1} parent=5 // pred_fallthru
        _
      %p277 = scmp.lt.s32.totalorder %s18, 2
      // Predicated region
      $region45: #{tpu_custom_call.1} parent=5 // pred_check
        %p278 = pneg %p277
      $region46: #{tpu_custom_call.1} parent=5 // pred_check_branch
        %280 = sbr.rel (%p278) target = $region48
      $region47: #{tpu_custom_call.1} parent=5 // pred_region
        // Predicated region
        $region49: #{tpu_custom_call.1} parent=47 // pred_check
          %p281 = pneg %p38
        $region50: #{tpu_custom_call.1} parent=47 // pred_check_branch
          %283 = sbr.rel (%p281) target = $region52
        $region51: #{tpu_custom_call.1} parent=47 // pred_region
          %p284 = scmp.lt.s32.totalorder %s18, 1
          %s285 = scalar_select %p284, %s18, 1
          %s286 = smul.addr %s285, 3
          %s287 = smul.addr %s286, 8
          %s288 = scalar_lea.vmem %s0, %s287
        $region52: #{tpu_custom_call.1} parent=47 // pred_fallthru
          _
      $region48: #{tpu_custom_call.1} parent=5 // pred_fallthru
        _
      %p289 = scmp.le.s32.totalorder 1, %s18
      %p290 = scmp.lt.s32.totalorder %s18, 3
      %p291 = pnand %p289, %p290
      %p292 = pneg %p291
      // Predicated region
      $region53: #{tpu_custom_call.1} parent=5 // pred_check
        _
      $region54: #{tpu_custom_call.1} parent=5 // pred_check_branch
        %294 = sbr.rel (%p291) target = $region56
      $region55: #{tpu_custom_call.1} parent=5 // pred_region
        %s295 = ssub.s32 %s18, 1
        %p296 = scmp.lt.s32.totalorder %s23, 1
        %s297 = scalar_select %p296, %s23, 1
        %s298 = smul.addr %s297, 3
        %s299 = smul.addr %s298, 8
        %s300 = scalar_lea.vmem %s0, %s299
        %p301 = pneg %p44
        %p302 = pneg %p41
        %p303 = pneg %p65
        %p304 = pneg %p62
        %p305 = pneg %p86
        %p306 = pneg %p83
        %p307 = pneg %p107
        %p308 = pneg %p104
        %p309 = pneg %p128
        %p310 = pneg %p125
        %p311 = pneg %p149
        %p312 = pneg %p146
        %p313 = pneg %p170
        %p314 = pneg %p167
        %p315 = pneg %p191
        %p316 = pneg %p188
        %p317 = pneg %p212
        %p318 = pneg %p209
        %p319 = pneg %p238
        %p320 = pneg %p235
        %s321 = sand.u32 %s225, 1
        %s322 = scalar_lea.sflag [#allocation3], %s321
        %s323 = sand.u32 %s225, 1
        %s324 = scalar_lea.vmem [#allocation2], %s323
        %p325 = scmp.lt.s32.totalorder %s23, 1
        %s326 = scalar_select %p325, %s23, 1
        %s327 = smul.addr %s326, 3
        %s328 = smul.addr %s327, 8
        %s329 = scalar_lea.vmem %s0, %s328
        %v330 = vld [vmem:[%s329] sm:$0xff]
        %v331 = vld [vmem:[%s329 + $0x8] sm:$0xff]
        %v332 = vld [vmem:[%s329 + $0x10] sm:$0x1]
        %v333 = vld [vmem:[%s1] sm:$0xff]
        %v334 = vld [vmem:[%s1 + $0x8] sm:$0xff]
        %v335 = vld [vmem:[%s1 + $0x10] sm:$0xff]
        %v336 = vld [vmem:[%s1 + $0x18] sm:$0xff]
        %v337 = vld [vmem:[%s1 + $0x20] sm:$0xff]
        %v338 = vld [vmem:[%s1 + $0x28] sm:$0xff]
        %v339 = vld [vmem:[%s1 + $0x30] sm:$0xff]
        %v340 = vld [vmem:[%s1 + $0x38] sm:$0xff]
        %v341 = vld [vmem:[%s2] sm:$0xff]
        %v342 = vld [vmem:[%s2 + $0x8] sm:$0xff]
        %v343 = vld [vmem:[%s2 + $0x10] sm:$0x1]
        %vm344 = vcmask 523264
        %v346 = vsel %vm344, %v330, 0
        %v349 = vsel %vm344, %v331, 0
        %v352 = vsel %vm344, %v332, 0
        %354 = vmatprep.subr.mxu0 0.0
        %355 = vmatpush1.msra.mxu0 %v333
        %356 = vmatprep.subr.mxu0 0.0
        %357 = vmatpush1.msra.mxu0 %v334
        %358 = vmatprep.subr.mxu0 0.0
        %359 = vmatpush1.msra.mxu0 %v335
        %360 = vmatprep.subr.mxu0 0.0
        %361 = vmatpush1.msra.mxu0 %v336
        %362 = vmatprep.subr.mxu0 0.0
        %363 = vmatpush1.msra.mxu0 %v337
        %364 = vmatprep.subr.mxu0 0.0
        %365 = vmatpush1.msra.mxu0 %v338
        %366 = vmatprep.subr.mxu0 0.0
        %367 = vmatpush1.msra.mxu0 %v339
        %368 = vmatprep.subr.mxu0 0.0
        %369 = vmatpush1.msra.mxu0 %v340
        %370 = vmatprep.subr.mxu0 0.0
        %371 = vmatpush1.msra.mxu0 0.0
        %372 = vmatprep.subr.mxu0 0.0
        %373 = vmatpush1.msra.mxu0 0.0
        %374 = vmatprep.subr.mxu0 0.0
        %375 = vmatpush1.msra.mxu0 0.0
        %376 = vmatprep.subr.mxu0 0.0
        %377 = vmatpush1.msra.mxu0 0.0
        %378 = vmatprep.subr.mxu0 0.0
        %379 = vmatpush1.msra.mxu0 0.0
        %380 = vmatprep.subr.mxu0 0.0
        %381 = vmatpush1.msra.mxu0 0.0
        %382 = vmatprep.subr.mxu0 0.0
        %383 = vmatpush1.msra.mxu0 0.0
        %384 = vmatprep.subr.mxu0 0.0
        %385 = vmatpush1.msra.mxu0 0.0
        %386 = vmatprep.subr.mxu0 0.0
        %387 = vmatpush1.msra.mxu0 0.0
        %388 = vmatprep.subr.mxu0 0.0
        %389 = vmatpush1.msra.mxu0 0.0
        %390 = vmatprep.subr.mxu0 0.0
        %391 = vmatpush1.msra.mxu0 0.0
        %392 = vmatprep.subr.mxu0 0.0
        %393 = vmatpush1.msra.mxu0 0.0
        %394 = vmatprep.subr.mxu0 0.0
        %395 = vmatpush1.msra.mxu0 0.0
        %396 = vmatprep.subr.mxu0 0.0
        %397 = vmatpush1.msra.mxu0 0.0
        %398 = vmatprep.subr.mxu0 0.0
        %399 = vmatpush1.msra.mxu0 0.0
        %400 = vmatprep.subr.mxu0 0.0
        %401 = vmatpush1.msra.mxu0 0.0
        %402 = vmatprep.subr.mxu0 0.0
        %403 = vmatpush1.msra.mxu0 0.0
        %404 = vmatprep.subr.mxu0 0.0
        %405 = vmatpush1.msra.mxu0 0.0
        %406 = vmatprep.subr.mxu0 0.0
        %407 = vmatpush1.msra.mxu0 0.0
        %408 = vmatprep.subr.mxu0 0.0
        %409 = vmatpush1.msra.mxu0 0.0
        %410 = vmatprep.subr.mxu0 0.0
        %411 = vmatpush1.msra.mxu0 0.0
        %412 = vmatprep.subr.mxu0 0.0
        %413 = vmatpush1.msra.mxu0 0.0
        %414 = vmatprep.subr.mxu0 0.0
        %415 = vmatpush1.msra.mxu0 0.0
        %416 = vmatprep.subr.mxu0 0.0
        %417 = vmatpush1.msra.mxu0 0.0
        %418 = vmatprep.mubr.f32.mxu0 0.0
        %419 = vmatmul.mubr.f32.gmra.mrb[0].mxu0 %v346
        %v420 = vpop.f32.mrb[0].mxu0
        %v421 = vadd.f32 %v341, %v420
        %v422 = vpop.f32.mrb[0].mxu0
        %423 = vmatprep.mubr.f32.mxu0 0.0
        %424 = vmatmul.mubr.f32.gmra.mrb[0].mxu0 %v349
        %v425 = vpop.f32.mrb[0].mxu0
        %v426 = vadd.f32 %v342, %v425
        %v427 = vpop.f32.mrb[0].mxu0
        %428 = vmatprep.mubr.f32.mxu0 0.0
        %429 = vmatmul.mubr.f32.gmra.mrb[0].mxu0 %v352
        %v430 = vpop.f32.mrb[0].mxu0
        %v431 = vadd.f32 %v343, %v430
        %v432 = vpop.f32.mrb[0].mxu0
        %433 = vdwg.mxu0
        %v434 = vld [vmem:[%s3] sm:$0x1]
        %v435 = vld [vmem:[%s3 + $0x1] sm:$0x1]
        %vm436 = vcmask 261120
        %v437 = vsel %vm436, %v421, 0.0
        %438 = vadd.xlane.f32.xlu0 %v437
        %v439 = vpop.xlane.xlu0 %438
        %v440 = vsel %vm436, %v426, 0.0
        %441 = vadd.xlane.f32.xlu0 %v440
        %v442 = vpop.xlane.xlu0 %441
        %vm443 = vcmask 253952
        %v444 = vsel %vm443, %v431, 0.0
        %445 = vadd.xlane.f32.xlu0 %v444
        %v446 = vpop.xlane.xlu0 %445
        %v447 = vrcp.pop 32.0
        %v448 = vmul.f32 %v439, %v447
        %v449 = vmul.f32 %v442, %v447
        %v450 = vmul.f32 %v446, %v447
        %v451 = vsub.f32 %v421, %v448
        %v452 = vsub.f32 %v426, %v449
        %v453 = vsub.f32 %v431, %v450
        %v454 = vmul.f32 %v451, %v451
        %v455 = vmul.f32 %v452, %v452
        %v456 = vmul.f32 %v453, %v453
        %v457 = vsel %vm436, %v454, 0.0
        %458 = vadd.xlane.f32.xlu0 %v457
        %v459 = vpop.xlane.xlu0 %458
        %v460 = vsel %vm436, %v455, 0.0
        %461 = vadd.xlane.f32.xlu0 %v460
        %v462 = vpop.xlane.xlu0 %461
        %v463 = vsel %vm443, %v456, 0.0
        %464 = vadd.xlane.f32.xlu0 %v463
        %v465 = vpop.xlane.xlu0 %464
        %v466 = vmul.f32 %v459, %v447
        %v467 = vmul.f32 %v462, %v447
        %v468 = vmul.f32 %v465, %v447
        %v469 = vadd.f32 %v466, 1e-05
        %v470 = vadd.f32 %v467, 1e-05
        %v471 = vadd.f32 %v468, 1e-05
        %v472 = vrsqrt.pop %v469
        %v473 = vrsqrt.pop %v470
        %v474 = vrsqrt.pop %v471
        %v475 = vmul.f32 %v451, %v472
        %v476 = vmul.f32 %v452, %v473
        %v477 = vmul.f32 %v453, %v474
        %v478 = vlaneseq
        %v479 = vshrl.u32 %v478, 7
        %v480 = vsub.s32 0, %v479
        %v481 = vrot.slane %v434, %v480
        %v482 = vmul.f32 %v475, %v481
        %v483 = vmul.f32 %v476, %v481
        %v484 = vmul.f32 %v477, %v481
        %v485 = vlaneseq
        %v486 = vshrl.u32 %v485, 7
        %v487 = vsub.s32 0, %v486
        %v488 = vrot.slane %v435, %v487
        %v489 = vadd.f32 %v482, %v488
        %v490 = vadd.f32 %v483, %v488
        %v491 = vadd.f32 %v484, %v488
        %v492 = vld [vmem:[%s4] sm:$0xff]
        %v493 = vld [vmem:[%s4 + $0x8] sm:$0xff]
        %v494 = vld [vmem:[%s4 + $0x10] sm:$0xff]
        %v495 = vld [vmem:[%s4 + $0x18] sm:$0xff]
        %v496 = vld [vmem:[%s4 + $0x20] sm:$0x1]
        %v497 = vlaneseq
        %v498 = vshrl.u32 %v497, 7
        %v499 = vsub.s32 0, %v498
        %v500 = vrot.slane %v496, %v499
        %v502 = vsel %vm436, %v489, 0
        %v505 = vsel %vm436, %v490, 0
        %v508 = vsel %vm436, %v491, 0
        %510 = vmatprep.subr.mxu0 0.0
        %511 = vmatpush1.msra.mxu0 %v492
        %512 = vmatprep.subr.mxu0 0.0
        %513 = vmatpush1.msra.mxu0 %v493
        %514 = vmatprep.subr.mxu0 0.0
        %515 = vmatpush1.msra.mxu0 %v494
        %516 = vmatprep.subr.mxu0 0.0
        %517 = vmatpush1.msra.mxu0 %v495
        %518 = vmatprep.subr.mxu0 0.0
        %519 = vmatpush1.msra.mxu0 0.0
        %520 = vmatprep.subr.mxu0 0.0
        %521 = vmatpush1.msra.mxu0 0.0
        %522 = vmatprep.subr.mxu0 0.0
        %523 = vmatpush1.msra.mxu0 0.0
        %524 = vmatprep.subr.mxu0 0.0
        %525 = vmatpush1.msra.mxu0 0.0
        %526 = vmatprep.subr.mxu0 0.0
        %527 = vmatpush1.msra.mxu0 0.0
        %528 = vmatprep.subr.mxu0 0.0
        %529 = vmatpush1.msra.mxu0 0.0
        %530 = vmatprep.subr.mxu0 0.0
        %531 = vmatpush1.msra.mxu0 0.0
        %532 = vmatprep.subr.mxu0 0.0
        %533 = vmatpush1.msra.mxu0 0.0
        %534 = vmatprep.subr.mxu0 0.0
        %535 = vmatpush1.msra.mxu0 0.0
        %536 = vmatprep.subr.mxu0 0.0
        %537 = vmatpush1.msra.mxu0 0.0
        %538 = vmatprep.subr.mxu0 0.0
        %539 = vmatpush1.msra.mxu0 0.0
        %540 = vmatprep.subr.mxu0 0.0
        %541 = vmatpush1.msra.mxu0 0.0
        %542 = vmatprep.subr.mxu0 0.0
        %543 = vmatpush1.msra.mxu0 0.0
        %544 = vmatprep.subr.mxu0 0.0
        %545 = vmatpush1.msra.mxu0 0.0
        %546 = vmatprep.subr.mxu0 0.0
        %547 = vmatpush1.msra.mxu0 0.0
        %548 = vmatprep.subr.mxu0 0.0
        %549 = vmatpush1.msra.mxu0 0.0
        %550 = vmatprep.subr.mxu0 0.0
        %551 = vmatpush1.msra.mxu0 0.0
        %552 = vmatprep.subr.mxu0 0.0
        %553 = vmatpush1.msra.mxu0 0.0
        %554 = vmatprep.subr.mxu0 0.0
        %555 = vmatpush1.msra.mxu0 0.0
        %556 = vmatprep.subr.mxu0 0.0
        %557 = vmatpush1.msra.mxu0 0.0
        %558 = vmatprep.subr.mxu0 0.0
        %559 = vmatpush1.msra.mxu0 0.0
        %560 = vmatprep.subr.mxu0 0.0
        %561 = vmatpush1.msra.mxu0 0.0
        %562 = vmatprep.subr.mxu0 0.0
        %563 = vmatpush1.msra.mxu0 0.0
        %564 = vmatprep.subr.mxu0 0.0
        %565 = vmatpush1.msra.mxu0 0.0
        %566 = vmatprep.subr.mxu0 0.0
        %567 = vmatpush1.msra.mxu0 0.0
        %568 = vmatprep.subr.mxu0 0.0
        %569 = vmatpush1.msra.mxu0 0.0
        %570 = vmatprep.subr.mxu0 0.0
        %571 = vmatpush1.msra.mxu0 0.0
        %572 = vmatprep.subr.mxu0 0.0
        %573 = vmatpush1.msra.mxu0 0.0
        %574 = vmatprep.mubr.f32.mxu0 0.0
        %575 = vmatmul.mubr.f32.gmra.mrb[0].mxu0 %v502
        %v576 = vpop.f32.mrb[0].mxu0
        %v577 = vadd.f32 %v500, %v576
        %v578 = vpop.f32.mrb[0].mxu0
        %579 = vmatprep.mubr.f32.mxu0 0.0
        %580 = vmatmul.mubr.f32.gmra.mrb[0].mxu0 %v505
        %v581 = vpop.f32.mrb[0].mxu0
        %v582 = vadd.f32 %v500, %v581
        %v583 = vpop.f32.mrb[0].mxu0
        %584 = vmatprep.mubr.f32.mxu0 0.0
        %585 = vmatmul.mubr.f32.gmra.mrb[0].mxu0 %v508
        %v586 = vpop.f32.mrb[0].mxu0
        %v587 = vadd.f32 %v500, %v586
        %v588 = vpop.f32.mrb[0].mxu0
        %589 = vdwg.mxu0
        %v590 = vld [vmem:[%s5 + $0x20] sm:$0x1]
        %594 = vrot.lane.b32.xlu0 %v577, 96
        %v595 = vpop.permute.xlu0 %594
        %596 = vrot.lane.b32.xlu0 %v582, 96
        %v597 = vpop.permute.xlu0 %596
        %598 = vrot.lane.b32.xlu0 %v587, 96
        %v599 = vpop.permute.xlu0 %598
        %vm600 = vcmask 64512
        %v601 = vsel %vm600, %v577, 0
        %v603 = vsel %vm600, %v582, 0
        %v605 = vsel %vm600, %v587, 0
        %v607 = vsel %vm600, %v595, 0
        %v609 = vsel %vm600, %v597, 0
        %v611 = vsel %vm600, %v599, 0
        %613 = vmatprep.subr.mxu0 0.0
        %614 = vmatpush1.xpose.msra.mxu0 %v607
        %615 = vmatprep.subr.mxu0 0.0
        %616 = vmatpush1.xpose.msra.mxu0 %v609
        %617 = vmatprep.subr.mxu0 0.0
        %618 = vmatpush1.xpose.msra.mxu0 %v611
        %619 = vmatprep.subr.mxu0 0.0
        %620 = vmatpush1.xpose.msra.mxu0 0.0
        %621 = vmatprep.subr.mxu0 0.0
        %622 = vmatpush1.xpose.msra.mxu0 0.0
        %623 = vmatprep.subr.mxu0 0.0
        %624 = vmatpush1.xpose.msra.mxu0 0.0
        %625 = vmatprep.subr.mxu0 0.0
        %626 = vmatpush1.xpose.msra.mxu0 0.0
        %627 = vmatprep.subr.mxu0 0.0
        %628 = vmatpush1.xpose.msra.mxu0 0.0
        %629 = vmatprep.subr.mxu0 0.0
        %630 = vmatpush1.xpose.msra.mxu0 0.0
        %631 = vmatprep.subr.mxu0 0.0
        %632 = vmatpush1.xpose.msra.mxu0 0.0
        %633 = vmatprep.subr.mxu0 0.0
        %634 = vmatpush1.xpose.msra.mxu0 0.0
        %635 = vmatprep.subr.mxu0 0.0
        %636 = vmatpush1.xpose.msra.mxu0 0.0
        %637 = vmatprep.subr.mxu0 0.0
        %638 = vmatpush1.xpose.msra.mxu0 0.0
        %639 = vmatprep.subr.mxu0 0.0
        %640 = vmatpush1.xpose.msra.mxu0 0.0
        %641 = vmatprep.subr.mxu0 0.0
        %642 = vmatpush1.xpose.msra.mxu0 0.0
        %643 = vmatprep.subr.mxu0 0.0
        %644 = vmatpush1.xpose.msra.mxu0 0.0
        %645 = vmatprep.subr.mxu0 0.0
        %646 = vmatpush1.xpose.msra.mxu0 0.0
        %647 = vmatprep.subr.mxu0 0.0
        %648 = vmatpush1.xpose.msra.mxu0 0.0
        %649 = vmatprep.subr.mxu0 0.0
        %650 = vmatpush1.xpose.msra.mxu0 0.0
        %651 = vmatprep.subr.mxu0 0.0
        %652 = vmatpush1.xpose.msra.mxu0 0.0
        %653 = vmatprep.subr.mxu0 0.0
        %654 = vmatpush1.xpose.msra.mxu0 0.0
        %655 = vmatprep.subr.mxu0 0.0
        %656 = vmatpush1.xpose.msra.mxu0 0.0
        %657 = vmatprep.subr.mxu0 0.0
        %658 = vmatpush1.xpose.msra.mxu0 0.0
        %659 = vmatprep.subr.mxu0 0.0
        %660 = vmatpush1.xpose.msra.mxu0 0.0
        %661 = vmatprep.subr.mxu0 0.0
        %662 = vmatpush1.xpose.msra.mxu0 0.0
        %663 = vmatprep.subr.mxu0 0.0
        %664 = vmatpush1.xpose.msra.mxu0 0.0
        %665 = vmatprep.subr.mxu0 0.0
        %666 = vmatpush1.xpose.msra.mxu0 0.0
        %667 = vmatprep.subr.mxu0 0.0
        %668 = vmatpush1.xpose.msra.mxu0 0.0
        %669 = vmatprep.subr.mxu0 0.0
        %670 = vmatpush1.xpose.msra.mxu0 0.0
        %671 = vmatprep.subr.mxu0 0.0
        %672 = vmatpush1.xpose.msra.mxu0 0.0
        %673 = vmatprep.subr.mxu0 0.0
        %674 = vmatpush1.xpose.msra.mxu0 0.0
        %675 = vmatprep.subr.mxu0 0.0
        %676 = vmatpush1.xpose.msra.mxu0 0.0
        %677 = vmatprep.mubr.f32.mxu0 0.0
        %678 = vmatmul.mubr.f32.gmra.mrb[0].mxu0 %v601
        %v679 = vpop.f32.mrb[0].mxu0
        %v680 = vadd.f32 0.0, %v679
        %v681 = vpop.f32.mrb[0].mxu0
        %682 = vmatprep.mubr.f32.mxu0 0.0
        %683 = vmatmul.mubr.f32.gmra.mrb[0].mxu0 %v603
        %v684 = vpop.f32.mrb[0].mxu0
        %v685 = vadd.f32 0.0, %v684
        %v686 = vpop.f32.mrb[0].mxu0
        %687 = vmatprep.mubr.f32.mxu0 0.0
        %688 = vmatmul.mubr.f32.gmra.mrb[0].mxu0 %v605
        %v689 = vpop.f32.mrb[0].mxu0
        %v690 = vadd.f32 0.0, %v689
        %v691 = vpop.f32.mrb[0].mxu0
        %692 = vdwg.mxu0
        %vm693 = vcmask 138240
        %v694 = vsel %vm693, %v680, -inf
        %695 = vmax.xlane.f32.xlu0 %v694
        %v696 = vpop.xlane.xlu0 %695
        %v697 = vsel %vm693, %v685, -inf
        %698 = vmax.xlane.f32.xlu0 %v697
        %v699 = vpop.xlane.xlu0 %698
        %vm700 = vcmask 131072
        %v701 = vsel %vm700, %v690, -inf
        %702 = vmax.xlane.f32.xlu0 %v701
        %v703 = vpop.xlane.xlu0 %702
        %v704 = vsub.f32 %v680, %v696
        %v705 = vsub.f32 %v685, %v699
        %v706 = vsub.f32 %v690, %v703
        %v707 = vmul.f32 %v704, 1.442695
        %v708 = vpow.pop %v707
        %v709 = vmul.f32 %v705, 1.442695
        %v710 = vpow.pop %v709
        %v711 = vmul.f32 %v706, 1.442695
        %v712 = vpow.pop %v711
        %v713 = vsel %vm693, %v708, 0.0
        %714 = vadd.xlane.f32.xlu0 %v713
        %v715 = vpop.xlane.xlu0 %714
        %v716 = vsel %vm693, %v710, 0.0
        %717 = vadd.xlane.f32.xlu0 %v716
        %v718 = vpop.xlane.xlu0 %717
        %v719 = vsel %vm700, %v712, 0.0
        %720 = vadd.xlane.f32.xlu0 %v719
        %v721 = vpop.xlane.xlu0 %720
        %v722 = vrcp.pop %v715
        %v723 = vrcp.pop %v718
        %v724 = vrcp.pop %v721
        %v725 = vmul.f32 %v708, %v722
        %v726 = vmul.f32 %v710, %v723
        %v727 = vmul.f32 %v712, %v724
        %728 = vrot.lane.b32.xlu0 %v577, 64
        %v729 = vpop.permute.xlu0 %728
        %730 = vrot.lane.b32.xlu0 %v582, 64
        %v731 = vpop.permute.xlu0 %730
        %732 = vrot.lane.b32.xlu0 %v587, 64
        %v733 = vpop.permute.xlu0 %732
        %v737 = vsel %vm693, %v725, 0
        %v740 = vsel %vm693, %v726, 0
        %v743 = vsel %vm693, %v727, 0
        %vm745 = vcmask 1040384
        %v746 = vsel %vm745, %v733, 0
        %748 = vmatprep.subr.mxu0 0.0
        %749 = vmatpush1.msra.mxu0 %v729
        %750 = vmatprep.subr.mxu0 0.0
        %751 = vmatpush1.msra.mxu0 %v731
        %752 = vmatprep.subr.mxu0 0.0
        %753 = vmatpush1.msra.mxu0 %v746
        %754 = vmatprep.subr.mxu0 0.0
        %755 = vmatpush1.msra.mxu0 0.0
        %756 = vmatprep.subr.mxu0 0.0
        %757 = vmatpush1.msra.mxu0 0.0
        %758 = vmatprep.subr.mxu0 0.0
        %759 = vmatpush1.msra.mxu0 0.0
        %760 = vmatprep.subr.mxu0 0.0
        %761 = vmatpush1.msra.mxu0 0.0
        %762 = vmatprep.subr.mxu0 0.0
        %763 = vmatpush1.msra.mxu0 0.0
        %764 = vmatprep.subr.mxu0 0.0
        %765 = vmatpush1.msra.mxu0 0.0
        %766 = vmatprep.subr.mxu0 0.0
        %767 = vmatpush1.msra.mxu0 0.0
        %768 = vmatprep.subr.mxu0 0.0
        %769 = vmatpush1.msra.mxu0 0.0
        %770 = vmatprep.subr.mxu0 0.0
        %771 = vmatpush1.msra.mxu0 0.0
        %772 = vmatprep.subr.mxu0 0.0
        %773 = vmatpush1.msra.mxu0 0.0
        %774 = vmatprep.subr.mxu0 0.0
        %775 = vmatpush1.msra.mxu0 0.0
        %776 = vmatprep.subr.mxu0 0.0
        %777 = vmatpush1.msra.mxu0 0.0
        %778 = vmatprep.subr.mxu0 0.0
        %779 = vmatpush1.msra.mxu0 0.0
        %780 = vmatprep.subr.mxu0 0.0
        %781 = vmatpush1.msra.mxu0 0.0
        %782 = vmatprep.subr.mxu0 0.0
        %783 = vmatpush1.msra.mxu0 0.0
        %784 = vmatprep.subr.mxu0 0.0
        %785 = vmatpush1.msra.mxu0 0.0
        %786 = vmatprep.subr.mxu0 0.0
        %787 = vmatpush1.msra.mxu0 0.0
        %788 = vmatprep.subr.mxu0 0.0
        %789 = vmatpush1.msra.mxu0 0.0
        %790 = vmatprep.subr.mxu0 0.0
        %791 = vmatpush1.msra.mxu0 0.0
        %792 = vmatprep.subr.mxu0 0.0
        %793 = vmatpush1.msra.mxu0 0.0
        %794 = vmatprep.subr.mxu0 0.0
        %795 = vmatpush1.msra.mxu0 0.0
        %796 = vmatprep.subr.mxu0 0.0
        %797 = vmatpush1.msra.mxu0 0.0
        %798 = vmatprep.subr.mxu0 0.0
        %799 = vmatpush1.msra.mxu0 0.0
        %800 = vmatprep.subr.mxu0 0.0
        %801 = vmatpush1.msra.mxu0 0.0
        %802 = vmatprep.subr.mxu0 0.0
        %803 = vmatpush1.msra.mxu0 0.0
        %804 = vmatprep.subr.mxu0 0.0
        %805 = vmatpush1.msra.mxu0 0.0
        %806 = vmatprep.subr.mxu0 0.0
        %807 = vmatpush1.msra.mxu0 0.0
        %808 = vmatprep.subr.mxu0 0.0
        %809 = vmatpush1.msra.mxu0 0.0
        %810 = vmatprep.subr.mxu0 0.0
        %811 = vmatpush1.msra.mxu0 0.0
        %812 = vmatprep.mubr.f32.mxu0 0.0
        %813 = vmatmul.mubr.f32.gmra.mrb[0].mxu0 %v737
        %v814 = vpop.f32.mrb[0].mxu0
        %v815 = vadd.f32 0.0, %v814
        %v816 = vpop.f32.mrb[0].mxu0
        %817 = vmatprep.mubr.f32.mxu0 0.0
        %818 = vmatmul.mubr.f32.gmra.mrb[0].mxu0 %v740
        %v819 = vpop.f32.mrb[0].mxu0
        %v820 = vadd.f32 0.0, %v819
        %v821 = vpop.f32.mrb[0].mxu0
        %822 = vmatprep.mubr.f32.mxu0 0.0
        %823 = vmatmul.mubr.f32.gmra.mrb[0].mxu0 %v743
        %v824 = vpop.f32.mrb[0].mxu0
        %v825 = vadd.f32 0.0, %v824
        %v826 = vpop.f32.mrb[0].mxu0
        %827 = vdwg.mxu0
        %v828 = vld [vmem:[%s5] sm:$0xff]
        %v830 = vsel %vm600, %v815, 0
        %v833 = vsel %vm600, %v820, 0
        %v836 = vsel %vm600, %v825, 0
        %838 = vmatprep.subr.mxu0 0.0
        %839 = vmatpush1.msra.mxu0 %v828
        %840 = vmatprep.subr.mxu0 0.0
        %841 = vmatpush1.msra.mxu0 0.0
        %842 = vmatprep.subr.mxu0 0.0
        %843 = vmatpush1.msra.mxu0 0.0
        %844 = vmatprep.subr.mxu0 0.0
        %845 = vmatpush1.msra.mxu0 0.0
        %846 = vmatprep.subr.mxu0 0.0
        %847 = vmatpush1.msra.mxu0 0.0
        %848 = vmatprep.subr.mxu0 0.0
        %849 = vmatpush1.msra.mxu0 0.0
        %850 = vmatprep.subr.mxu0 0.0
        %851 = vmatpush1.msra.mxu0 0.0
        %852 = vmatprep.subr.mxu0 0.0
        %853 = vmatpush1.msra.mxu0 0.0
        %854 = vmatprep.subr.mxu0 0.0
        %855 = vmatpush1.msra.mxu0 0.0
        %856 = vmatprep.subr.mxu0 0.0
        %857 = vmatpush1.msra.mxu0 0.0
        %858 = vmatprep.subr.mxu0 0.0
        %859 = vmatpush1.msra.mxu0 0.0
        %860 = vmatprep.subr.mxu0 0.0
        %861 = vmatpush1.msra.mxu0 0.0
        %862 = vmatprep.subr.mxu0 0.0
        %863 = vmatpush1.msra.mxu0 0.0
        %864 = vmatprep.subr.mxu0 0.0
        %865 = vmatpush1.msra.mxu0 0.0
        %866 = vmatprep.subr.mxu0 0.0
        %867 = vmatpush1.msra.mxu0 0.0
        %868 = vmatprep.subr.mxu0 0.0
        %869 = vmatpush1.msra.mxu0 0.0
        %870 = vmatprep.subr.mxu0 0.0
        %871 = vmatpush1.msra.mxu0 0.0
        %872 = vmatprep.subr.mxu0 0.0
        %873 = vmatpush1.msra.mxu0 0.0
        %874 = vmatprep.subr.mxu0 0.0
        %875 = vmatpush1.msra.mxu0 0.0
        %876 = vmatprep.subr.mxu0 0.0
        %877 = vmatpush1.msra.mxu0 0.0
        %878 = vmatprep.subr.mxu0 0.0
        %879 = vmatpush1.msra.mxu0 0.0
        %880 = vmatprep.subr.mxu0 0.0
        %881 = vmatpush1.msra.mxu0 0.0
        %882 = vmatprep.subr.mxu0 0.0
        %883 = vmatpush1.msra.mxu0 0.0
        %884 = vmatprep.subr.mxu0 0.0
        %885 = vmatpush1.msra.mxu0 0.0
        %886 = vmatprep.subr.mxu0 0.0
        %887 = vmatpush1.msra.mxu0 0.0
        %888 = vmatprep.subr.mxu0 0.0
        %889 = vmatpush1.msra.mxu0 0.0
        %890 = vmatprep.subr.mxu0 0.0
        %891 = vmatpush1.msra.mxu0 0.0
        %892 = vmatprep.subr.mxu0 0.0
        %893 = vmatpush1.msra.mxu0 0.0
        %894 = vmatprep.subr.mxu0 0.0
        %895 = vmatpush1.msra.mxu0 0.0
        %896 = vmatprep.subr.mxu0 0.0
        %897 = vmatpush1.msra.mxu0 0.0
        %898 = vmatprep.subr.mxu0 0.0
        %899 = vmatpush1.msra.mxu0 0.0
        %900 = vmatprep.subr.mxu0 0.0
        %901 = vmatpush1.msra.mxu0 0.0
        %902 = vmatprep.mubr.f32.mxu0 0.0
        %903 = vmatmul.mubr.f32.gmra.mrb[0].mxu0 %v830
        %v904 = vpop.f32.mrb[0].mxu0
        %v905 = vadd.f32 0.0, %v904
        %v906 = vpop.f32.mrb[0].mxu0
        %907 = vmatprep.mubr.f32.mxu0 0.0
        %908 = vmatmul.mubr.f32.gmra.mrb[0].mxu0 %v833
        %v909 = vpop.f32.mrb[0].mxu0
        %v910 = vadd.f32 0.0, %v909
        %v911 = vpop.f32.mrb[0].mxu0
        %912 = vmatprep.mubr.f32.mxu0 0.0
        %913 = vmatmul.mubr.f32.gmra.mrb[0].mxu0 %v836
        %v914 = vpop.f32.mrb[0].mxu0
        %v915 = vadd.f32 0.0, %v914
        %v916 = vpop.f32.mrb[0].mxu0
        %917 = vdwg.mxu0
        %v918 = vlaneseq
        %v919 = vshrl.u32 %v918, 7
        %v920 = vsub.s32 0, %v919
        %v921 = vrot.slane %v590, %v920
        %v922 = vadd.f32 %v921, %v905
        %v923 = vadd.f32 %v921, %v910
        %v924 = vadd.f32 %v921, %v915
        %925 = vrot.lane.b32.xlu0 %v577, 120
        %v926 = vpop.permute.xlu0 %925
        %927 = vrot.lane.b32.xlu0 %v582, 120
        %v928 = vpop.permute.xlu0 %927
        %929 = vrot.lane.b32.xlu0 %v587, 120
        %v930 = vpop.permute.xlu0 %929
        %931 = vrot.lane.b32.xlu0 %v577, 88
        %v932 = vpop.permute.xlu0 %931
        %933 = vrot.lane.b32.xlu0 %v582, 88
        %v934 = vpop.permute.xlu0 %933
        %935 = vrot.lane.b32.xlu0 %v587, 88
        %v936 = vpop.permute.xlu0 %935
        %v937 = vsel %vm600, %v926, 0
        %v939 = vsel %vm600, %v928, 0
        %v941 = vsel %vm600, %v930, 0
        %v943 = vsel %vm600, %v932, 0
        %v945 = vsel %vm600, %v934, 0
        %v947 = vsel %vm600, %v936, 0
        %949 = vmatprep.subr.mxu0 0.0
        %950 = vmatpush1.xpose.msra.mxu0 %v943
        %951 = vmatprep.subr.mxu0 0.0
        %952 = vmatpush1.xpose.msra.mxu0 %v945
        %953 = vmatprep.subr.mxu0 0.0
        %954 = vmatpush1.xpose.msra.mxu0 %v947
        %955 = vmatprep.subr.mxu0 0.0
        %956 = vmatpush1.xpose.msra.mxu0 0.0
        %957 = vmatprep.subr.mxu0 0.0
        %958 = vmatpush1.xpose.msra.mxu0 0.0
        %959 = vmatprep.subr.mxu0 0.0
        %960 = vmatpush1.xpose.msra.mxu0 0.0
        %961 = vmatprep.subr.mxu0 0.0
        %962 = vmatpush1.xpose.msra.mxu0 0.0
        %963 = vmatprep.subr.mxu0 0.0
        %964 = vmatpush1.xpose.msra.mxu0 0.0
        %965 = vmatprep.subr.mxu0 0.0
        %966 = vmatpush1.xpose.msra.mxu0 0.0
        %967 = vmatprep.subr.mxu0 0.0
        %968 = vmatpush1.xpose.msra.mxu0 0.0
        %969 = vmatprep.subr.mxu0 0.0
        %970 = vmatpush1.xpose.msra.mxu0 0.0
        %971 = vmatprep.subr.mxu0 0.0
        %972 = vmatpush1.xpose.msra.mxu0 0.0
        %973 = vmatprep.subr.mxu0 0.0
        %974 = vmatpush1.xpose.msra.mxu0 0.0
        %975 = vmatprep.subr.mxu0 0.0
        %976 = vmatpush1.xpose.msra.mxu0 0.0
        %977 = vmatprep.subr.mxu0 0.0
        %978 = vmatpush1.xpose.msra.mxu0 0.0
        %979 = vmatprep.subr.mxu0 0.0
        %980 = vmatpush1.xpose.msra.mxu0 0.0
        %981 = vmatprep.subr.mxu0 0.0
        %982 = vmatpush1.xpose.msra.mxu0 0.0
        %983 = vmatprep.subr.mxu0 0.0
        %984 = vmatpush1.xpose.msra.mxu0 0.0
        %985 = vmatprep.subr.mxu0 0.0
        %986 = vmatpush1.xpose.msra.mxu0 0.0
        %987 = vmatprep.subr.mxu0 0.0
        %988 = vmatpush1.xpose.msra.mxu0 0.0
        %989 = vmatprep.subr.mxu0 0.0
        %990 = vmatpush1.xpose.msra.mxu0 0.0
        %991 = vmatprep.subr.mxu0 0.0
        %992 = vmatpush1.xpose.msra.mxu0 0.0
        %993 = vmatprep.subr.mxu0 0.0
        %994 = vmatpush1.xpose.msra.mxu0 0.0
        %995 = vmatprep.subr.mxu0 0.0
        %996 = vmatpush1.xpose.msra.mxu0 0.0
        %997 = vmatprep.subr.mxu0 0.0
        %998 = vmatpush1.xpose.msra.mxu0 0.0
        %999 = vmatprep.subr.mxu0 0.0
        %1000 = vmatpush1.xpose.msra.mxu0 0.0
        %1001 = vmatprep.subr.mxu0 0.0
        %1002 = vmatpush1.xpose.msra.mxu0 0.0
        %1003 = vmatprep.subr.mxu0 0.0
        %1004 = vmatpush1.xpose.msra.mxu0 0.0
        %1005 = vmatprep.subr.mxu0 0.0
        %1006 = vmatpush1.xpose.msra.mxu0 0.0
        %1007 = vmatprep.subr.mxu0 0.0
        %1008 = vmatpush1.xpose.msra.mxu0 0.0
        %1009 = vmatprep.subr.mxu0 0.0
        %1010 = vmatpush1.xpose.msra.mxu0 0.0
        %1011 = vmatprep.subr.mxu0 0.0
        %1012 = vmatpush1.xpose.msra.mxu0 0.0
        %1013 = vmatprep.mubr.f32.mxu0 0.0
        %1014 = vmatmul.mubr.f32.gmra.mrb[0].mxu0 %v937
        %v1015 = vpop.f32.mrb[0].mxu0
        %v1016 = vadd.f32 0.0, %v1015
        %v1017 = vpop.f32.mrb[0].mxu0
        %1018 = vmatprep.mubr.f32.mxu0 0.0
        %1019 = vmatmul.mubr.f32.gmra.mrb[0].mxu0 %v939
        %v1020 = vpop.f32.mrb[0].mxu0
        %v1021 = vadd.f32 0.0, %v1020
        %v1022 = vpop.f32.mrb[0].mxu0
        %1023 = vmatprep.mubr.f32.mxu0 0.0
        %1024 = vmatmul.mubr.f32.gmra.mrb[0].mxu0 %v941
        %v1025 = vpop.f32.mrb[0].mxu0
        %v1026 = vadd.f32 0.0, %v1025
        %v1027 = vpop.f32.mrb[0].mxu0
        %1028 = vdwg.mxu0
        %v1029 = vsel %vm693, %v1016, -inf
        %1030 = vmax.xlane.f32.xlu0 %v1029
        %v1031 = vpop.xlane.xlu0 %1030
        %v1032 = vsel %vm693, %v1021, -inf
        %1033 = vmax.xlane.f32.xlu0 %v1032
        %v1034 = vpop.xlane.xlu0 %1033
        %v1035 = vsel %vm700, %v1026, -inf
        %1036 = vmax.xlane.f32.xlu0 %v1035
        %v1037 = vpop.xlane.xlu0 %1036
        %v1038 = vsub.f32 %v1016, %v1031
        %v1039 = vsub.f32 %v1021, %v1034
        %v1040 = vsub.f32 %v1026, %v1037
        %v1041 = vmul.f32 %v1038, 1.442695
        %v1042 = vpow.pop %v1041
        %v1043 = vmul.f32 %v1039, 1.442695
        %v1044 = vpow.pop %v1043
        %v1045 = vmul.f32 %v1040, 1.442695
        %v1046 = vpow.pop %v1045
        %v1047 = vsel %vm693, %v1042, 0.0
        %1048 = vadd.xlane.f32.xlu0 %v1047
        %v1049 = vpop.xlane.xlu0 %1048
        %v1050 = vsel %vm693, %v1044, 0.0
        %1051 = vadd.xlane.f32.xlu0 %v1050
        %v1052 = vpop.xlane.xlu0 %1051
        %v1053 = vsel %vm700, %v1046, 0.0
        %1054 = vadd.xlane.f32.xlu0 %v1053
        %v1055 = vpop.xlane.xlu0 %1054
        %v1056 = vrcp.pop %v1049
        %v1057 = vrcp.pop %v1052
        %v1058 = vrcp.pop %v1055
        %v1059 = vmul.f32 %v1042, %v1056
        %v1060 = vmul.f32 %v1044, %v1057
        %v1061 = vmul.f32 %v1046, %v1058
        %1062 = vrot.lane.b32.xlu0 %v577, 56
        %v1063 = vpop.permute.xlu0 %1062
        %1064 = vrot.lane.b32.xlu0 %v582, 56
        %v1065 = vpop.permute.xlu0 %1064
        %1066 = vrot.lane.b32.xlu0 %v587, 56
        %v1067 = vpop.permute.xlu0 %1066
        %v1071 = vsel %vm693, %v1059, 0
        %v1074 = vsel %vm693, %v1060, 0
        %v1077 = vsel %vm693, %v1061, 0
        %v1079 = vsel %vm745, %v1067, 0
        %1081 = vmatprep.subr.mxu0 0.0
        %1082 = vmatpush1.msra.mxu0 %v1063
        %1083 = vmatprep.subr.mxu0 0.0
        %1084 = vmatpush1.msra.mxu0 %v1065
        %1085 = vmatprep.subr.mxu0 0.0
        %1086 = vmatpush1.msra.mxu0 %v1079
        %1087 = vmatprep.subr.mxu0 0.0
        %1088 = vmatpush1.msra.mxu0 0.0
        %1089 = vmatprep.subr.mxu0 0.0
        %1090 = vmatpush1.msra.mxu0 0.0
        %1091 = vmatprep.subr.mxu0 0.0
        %1092 = vmatpush1.msra.mxu0 0.0
        %1093 = vmatprep.subr.mxu0 0.0
        %1094 = vmatpush1.msra.mxu0 0.0
        %1095 = vmatprep.subr.mxu0 0.0
        %1096 = vmatpush1.msra.mxu0 0.0
        %1097 = vmatprep.subr.mxu0 0.0
        %1098 = vmatpush1.msra.mxu0 0.0
        %1099 = vmatprep.subr.mxu0 0.0
        %1100 = vmatpush1.msra.mxu0 0.0
        %1101 = vmatprep.subr.mxu0 0.0
        %1102 = vmatpush1.msra.mxu0 0.0
        %1103 = vmatprep.subr.mxu0 0.0
        %1104 = vmatpush1.msra.mxu0 0.0
        %1105 = vmatprep.subr.mxu0 0.0
        %1106 = vmatpush1.msra.mxu0 0.0
        %1107 = vmatprep.subr.mxu0 0.0
        %1108 = vmatpush1.msra.mxu0 0.0
        %1109 = vmatprep.subr.mxu0 0.0
        %1110 = vmatpush1.msra.mxu0 0.0
        %1111 = vmatprep.subr.mxu0 0.0
        %1112 = vmatpush1.msra.mxu0 0.0
        %1113 = vmatprep.subr.mxu0 0.0
        %1114 = vmatpush1.msra.mxu0 0.0
        %1115 = vmatprep.subr.mxu0 0.0
        %1116 = vmatpush1.msra.mxu0 0.0
        %1117 = vmatprep.subr.mxu0 0.0
        %1118 = vmatpush1.msra.mxu0 0.0
        %1119 = vmatprep.subr.mxu0 0.0
        %1120 = vmatpush1.msra.mxu0 0.0
        %1121 = vmatprep.subr.mxu0 0.0
        %1122 = vmatpush1.msra.mxu0 0.0
        %1123 = vmatprep.subr.mxu0 0.0
        %1124 = vmatpush1.msra.mxu0 0.0
        %1125 = vmatprep.subr.mxu0 0.0
        %1126 = vmatpush1.msra.mxu0 0.0
        %1127 = vmatprep.subr.mxu0 0.0
        %1128 = vmatpush1.msra.mxu0 0.0
        %1129 = vmatprep.subr.mxu0 0.0
        %1130 = vmatpush1.msra.mxu0 0.0
        %1131 = vmatprep.subr.mxu0 0.0
        %1132 = vmatpush1.msra.mxu0 0.0
        %1133 = vmatprep.subr.mxu0 0.0
        %1134 = vmatpush1.msra.mxu0 0.0
        %1135 = vmatprep.subr.mxu0 0.0
        %1136 = vmatpush1.msra.mxu0 0.0
        %1137 = vmatprep.subr.mxu0 0.0
        %1138 = vmatpush1.msra.mxu0 0.0
        %1139 = vmatprep.subr.mxu0 0.0
        %1140 = vmatpush1.msra.mxu0 0.0
        %1141 = vmatprep.subr.mxu0 0.0
        %1142 = vmatpush1.msra.mxu0 0.0
        %1143 = vmatprep.subr.mxu0 0.0
        %1144 = vmatpush1.msra.mxu0 0.0
        %1145 = vmatprep.mubr.f32.mxu0 0.0
        %1146 = vmatmul.mubr.f32.gmra.mrb[0].mxu0 %v1071
        %v1147 = vpop.f32.mrb[0].mxu0
        %v1148 = vadd.f32 0.0, %v1147
        %v1149 = vpop.f32.mrb[0].mxu0
        %1150 = vmatprep.mubr.f32.mxu0 0.0
        %1151 = vmatmul.mubr.f32.gmra.mrb[0].mxu0 %v1074
        %v1152 = vpop.f32.mrb[0].mxu0
        %v1153 = vadd.f32 0.0, %v1152
        %v1154 = vpop.f32.mrb[0].mxu0
        %1155 = vmatprep.mubr.f32.mxu0 0.0
        %1156 = vmatmul.mubr.f32.gmra.mrb[0].mxu0 %v1077
        %v1157 = vpop.f32.mrb[0].mxu0
        %v1158 = vadd.f32 0.0, %v1157
        %v1159 = vpop.f32.mrb[0].mxu0
        %1160 = vdwg.mxu0
        %v1161 = vld [vmem:[%s5 + $0x8] sm:$0xff]
        %v1163 = vsel %vm600, %v1148, 0
        %v1166 = vsel %vm600, %v1153, 0
        %v1169 = vsel %vm600, %v1158, 0
        %1171 = vmatprep.subr.mxu0 0.0
        %1172 = vmatpush1.msra.mxu0 %v1161
        %1173 = vmatprep.subr.mxu0 0.0
        %1174 = vmatpush1.msra.mxu0 0.0
        %1175 = vmatprep.subr.mxu0 0.0
        %1176 = vmatpush1.msra.mxu0 0.0
        %1177 = vmatprep.subr.mxu0 0.0
        %1178 = vmatpush1.msra.mxu0 0.0
        %1179 = vmatprep.subr.mxu0 0.0
        %1180 = vmatpush1.msra.mxu0 0.0
        %1181 = vmatprep.subr.mxu0 0.0
        %1182 = vmatpush1.msra.mxu0 0.0
        %1183 = vmatprep.subr.mxu0 0.0
        %1184 = vmatpush1.msra.mxu0 0.0
        %1185 = vmatprep.subr.mxu0 0.0
        %1186 = vmatpush1.msra.mxu0 0.0
        %1187 = vmatprep.subr.mxu0 0.0
        %1188 = vmatpush1.msra.mxu0 0.0
        %1189 = vmatprep.subr.mxu0 0.0
        %1190 = vmatpush1.msra.mxu0 0.0
        %1191 = vmatprep.subr.mxu0 0.0
        %1192 = vmatpush1.msra.mxu0 0.0
        %1193 = vmatprep.subr.mxu0 0.0
        %1194 = vmatpush1.msra.mxu0 0.0
        %1195 = vmatprep.subr.mxu0 0.0
        %1196 = vmatpush1.msra.mxu0 0.0
        %1197 = vmatprep.subr.mxu0 0.0
        %1198 = vmatpush1.msra.mxu0 0.0
        %1199 = vmatprep.subr.mxu0 0.0
        %1200 = vmatpush1.msra.mxu0 0.0
        %1201 = vmatprep.subr.mxu0 0.0
        %1202 = vmatpush1.msra.mxu0 0.0
        %1203 = vmatprep.subr.mxu0 0.0
        %1204 = vmatpush1.msra.mxu0 0.0
        %1205 = vmatprep.subr.mxu0 0.0
        %1206 = vmatpush1.msra.mxu0 0.0
        %1207 = vmatprep.subr.mxu0 0.0
        %1208 = vmatpush1.msra.mxu0 0.0
        %1209 = vmatprep.subr.mxu0 0.0
        %1210 = vmatpush1.msra.mxu0 0.0
        %1211 = vmatprep.subr.mxu0 0.0
        %1212 = vmatpush1.msra.mxu0 0.0
        %1213 = vmatprep.subr.mxu0 0.0
        %1214 = vmatpush1.msra.mxu0 0.0
        %1215 = vmatprep.subr.mxu0 0.0
        %1216 = vmatpush1.msra.mxu0 0.0
        %1217 = vmatprep.subr.mxu0 0.0
        %1218 = vmatpush1.msra.mxu0 0.0
        %1219 = vmatprep.subr.mxu0 0.0
        %1220 = vmatpush1.msra.mxu0 0.0
        %1221 = vmatprep.subr.mxu0 0.0
        %1222 = vmatpush1.msra.mxu0 0.0
        %1223 = vmatprep.subr.mxu0 0.0
        %1224 = vmatpush1.msra.mxu0 0.0
        %1225 = vmatprep.subr.mxu0 0.0
        %1226 = vmatpush1.msra.mxu0 0.0
        %1227 = vmatprep.subr.mxu0 0.0
        %1228 = vmatpush1.msra.mxu0 0.0
        %1229 = vmatprep.subr.mxu0 0.0
        %1230 = vmatpush1.msra.mxu0 0.0
        %1231 = vmatprep.subr.mxu0 0.0
        %1232 = vmatpush1.msra.mxu0 0.0
        %1233 = vmatprep.subr.mxu0 0.0
        %1234 = vmatpush1.msra.mxu0 0.0
        %1235 = vmatprep.mubr.f32.mxu0 0.0
        %1236 = vmatmul.mubr.f32.gmra.mrb[0].mxu0 %v1163
        %v1237 = vpop.f32.mrb[0].mxu0
        %v1238 = vadd.f32 0.0, %v1237
        %v1239 = vpop.f32.mrb[0].mxu0
        %1240 = vmatprep.mubr.f32.mxu0 0.0
        %1241 = vmatmul.mubr.f32.gmra.mrb[0].mxu0 %v1166
        %v1242 = vpop.f32.mrb[0].mxu0
        %v1243 = vadd.f32 0.0, %v1242
        %v1244 = vpop.f32.mrb[0].mxu0
        %1245 = vmatprep.mubr.f32.mxu0 0.0
        %1246 = vmatmul.mubr.f32.gmra.mrb[0].mxu0 %v1169
        %v1247 = vpop.f32.mrb[0].mxu0
        %v1248 = vadd.f32 0.0, %v1247
        %v1249 = vpop.f32.mrb[0].mxu0
        %1250 = vdwg.mxu0
        %v1251 = vadd.f32 %v922, %v1238
        %v1252 = vadd.f32 %v923, %v1243
        %v1253 = vadd.f32 %v924, %v1248
        %1254 = vrot.lane.b32.xlu0 %v577, 112
        %v1255 = vpop.permute.xlu0 %1254
        %1256 = vrot.lane.b32.xlu0 %v582, 112
        %v1257 = vpop.permute.xlu0 %1256
        %1258 = vrot.lane.b32.xlu0 %v587, 112
        %v1259 = vpop.permute.xlu0 %1258
        %1260 = vrot.lane.b32.xlu0 %v577, 80
        %v1261 = vpop.permute.xlu0 %1260
        %1262 = vrot.lane.b32.xlu0 %v582, 80
        %v1263 = vpop.permute.xlu0 %1262
        %1264 = vrot.lane.b32.xlu0 %v587, 80
        %v1265 = vpop.permute.xlu0 %1264
        %v1266 = vsel %vm600, %v1255, 0
        %v1268 = vsel %vm600, %v1257, 0
        %v1270 = vsel %vm600, %v1259, 0
        %v1272 = vsel %vm600, %v1261, 0
        %v1274 = vsel %vm600, %v1263, 0
        %v1276 = vsel %vm600, %v1265, 0
        %1278 = vmatprep.subr.mxu0 0.0
        %1279 = vmatpush1.xpose.msra.mxu0 %v1272
        %1280 = vmatprep.subr.mxu0 0.0
        %1281 = vmatpush1.xpose.msra.mxu0 %v1274
        %1282 = vmatprep.subr.mxu0 0.0
        %1283 = vmatpush1.xpose.msra.mxu0 %v1276
        %1284 = vmatprep.subr.mxu0 0.0
        %1285 = vmatpush1.xpose.msra.mxu0 0.0
        %1286 = vmatprep.subr.mxu0 0.0
        %1287 = vmatpush1.xpose.msra.mxu0 0.0
        %1288 = vmatprep.subr.mxu0 0.0
        %1289 = vmatpush1.xpose.msra.mxu0 0.0
        %1290 = vmatprep.subr.mxu0 0.0
        %1291 = vmatpush1.xpose.msra.mxu0 0.0
        %1292 = vmatprep.subr.mxu0 0.0
        %1293 = vmatpush1.xpose.msra.mxu0 0.0
        %1294 = vmatprep.subr.mxu0 0.0
        %1295 = vmatpush1.xpose.msra.mxu0 0.0
        %1296 = vmatprep.subr.mxu0 0.0
        %1297 = vmatpush1.xpose.msra.mxu0 0.0
        %1298 = vmatprep.subr.mxu0 0.0
        %1299 = vmatpush1.xpose.msra.mxu0 0.0
        %1300 = vmatprep.subr.mxu0 0.0
        %1301 = vmatpush1.xpose.msra.mxu0 0.0
        %1302 = vmatprep.subr.mxu0 0.0
        %1303 = vmatpush1.xpose.msra.mxu0 0.0
        %1304 = vmatprep.subr.mxu0 0.0
        %1305 = vmatpush1.xpose.msra.mxu0 0.0
        %1306 = vmatprep.subr.mxu0 0.0
        %1307 = vmatpush1.xpose.msra.mxu0 0.0
        %1308 = vmatprep.subr.mxu0 0.0
        %1309 = vmatpush1.xpose.msra.mxu0 0.0
        %1310 = vmatprep.subr.mxu0 0.0
        %1311 = vmatpush1.xpose.msra.mxu0 0.0
        %1312 = vmatprep.subr.mxu0 0.0
        %1313 = vmatpush1.xpose.msra.mxu0 0.0
        %1314 = vmatprep.subr.mxu0 0.0
        %1315 = vmatpush1.xpose.msra.mxu0 0.0
        %1316 = vmatprep.subr.mxu0 0.0
        %1317 = vmatpush1.xpose.msra.mxu0 0.0
        %1318 = vmatprep.subr.mxu0 0.0
        %1319 = vmatpush1.xpose.msra.mxu0 0.0
        %1320 = vmatprep.subr.mxu0 0.0
        %1321 = vmatpush1.xpose.msra.mxu0 0.0
        %1322 = vmatprep.subr.mxu0 0.0
        %1323 = vmatpush1.xpose.msra.mxu0 0.0
        %1324 = vmatprep.subr.mxu0 0.0
        %1325 = vmatpush1.xpose.msra.mxu0 0.0
        %1326 = vmatprep.subr.mxu0 0.0
        %1327 = vmatpush1.xpose.msra.mxu0 0.0
        %1328 = vmatprep.subr.mxu0 0.0
        %1329 = vmatpush1.xpose.msra.mxu0 0.0
        %1330 = vmatprep.subr.mxu0 0.0
        %1331 = vmatpush1.xpose.msra.mxu0 0.0
        %1332 = vmatprep.subr.mxu0 0.0
        %1333 = vmatpush1.xpose.msra.mxu0 0.0
        %1334 = vmatprep.subr.mxu0 0.0
        %1335 = vmatpush1.xpose.msra.mxu0 0.0
        %1336 = vmatprep.subr.mxu0 0.0
        %1337 = vmatpush1.xpose.msra.mxu0 0.0
        %1338 = vmatprep.subr.mxu0 0.0
        %1339 = vmatpush1.xpose.msra.mxu0 0.0
        %1340 = vmatprep.subr.mxu0 0.0
        %1341 = vmatpush1.xpose.msra.mxu0 0.0
        %1342 = vmatprep.mubr.f32.mxu0 0.0
        %1343 = vmatmul.mubr.f32.gmra.mrb[0].mxu0 %v1266
        %v1344 = vpop.f32.mrb[0].mxu0
        %v1345 = vadd.f32 0.0, %v1344
        %v1346 = vpop.f32.mrb[0].mxu0
        %1347 = vmatprep.mubr.f32.mxu0 0.0
        %1348 = vmatmul.mubr.f32.gmra.mrb[0].mxu0 %v1268
        %v1349 = vpop.f32.mrb[0].mxu0
        %v1350 = vadd.f32 0.0, %v1349
        %v1351 = vpop.f32.mrb[0].mxu0
        %1352 = vmatprep.mubr.f32.mxu0 0.0
        %1353 = vmatmul.mubr.f32.gmra.mrb[0].mxu0 %v1270
        %v1354 = vpop.f32.mrb[0].mxu0
        %v1355 = vadd.f32 0.0, %v1354
        %v1356 = vpop.f32.mrb[0].mxu0
        %1357 = vdwg.mxu0
        %v1358 = vsel %vm693, %v1345, -inf
        %1359 = vmax.xlane.f32.xlu0 %v1358
        %v1360 = vpop.xlane.xlu0 %1359
        %v1361 = vsel %vm693, %v1350, -inf
        %1362 = vmax.xlane.f32.xlu0 %v1361
        %v1363 = vpop.xlane.xlu0 %1362
        %v1364 = vsel %vm700, %v1355, -inf
        %1365 = vmax.xlane.f32.xlu0 %v1364
        %v1366 = vpop.xlane.xlu0 %1365
        %v1367 = vsub.f32 %v1345, %v1360
        %v1368 = vsub.f32 %v1350, %v1363
        %v1369 = vsub.f32 %v1355, %v1366
        %v1370 = vmul.f32 %v1367, 1.442695
        %v1371 = vpow.pop %v1370
        %v1372 = vmul.f32 %v1368, 1.442695
        %v1373 = vpow.pop %v1372
        %v1374 = vmul.f32 %v1369, 1.442695
        %v1375 = vpow.pop %v1374
        %v1376 = vsel %vm693, %v1371, 0.0
        %1377 = vadd.xlane.f32.xlu0 %v1376
        %v1378 = vpop.xlane.xlu0 %1377
        %v1379 = vsel %vm693, %v1373, 0.0
        %1380 = vadd.xlane.f32.xlu0 %v1379
        %v1381 = vpop.xlane.xlu0 %1380
        %v1382 = vsel %vm700, %v1375, 0.0
        %1383 = vadd.xlane.f32.xlu0 %v1382
        %v1384 = vpop.xlane.xlu0 %1383
        %v1385 = vrcp.pop %v1378
        %v1386 = vrcp.pop %v1381
        %v1387 = vrcp.pop %v1384
        %v1388 = vmul.f32 %v1371, %v1385
        %v1389 = vmul.f32 %v1373, %v1386
        %v1390 = vmul.f32 %v1375, %v1387
        %1391 = vrot.lane.b32.xlu0 %v577, 48
        %v1392 = vpop.permute.xlu0 %1391
        %1393 = vrot.lane.b32.xlu0 %v582, 48
        %v1394 = vpop.permute.xlu0 %1393
        %1395 = vrot.lane.b32.xlu0 %v587, 48
        %v1396 = vpop.permute.xlu0 %1395
        %v1400 = vsel %vm693, %v1388, 0
        %v1403 = vsel %vm693, %v1389, 0
        %v1406 = vsel %vm693, %v1390, 0
        %v1408 = vsel %vm745, %v1396, 0
        %1410 = vmatprep.subr.mxu0 0.0
        %1411 = vmatpush1.msra.mxu0 %v1392
        %1412 = vmatprep.subr.mxu0 0.0
        %1413 = vmatpush1.msra.mxu0 %v1394
        %1414 = vmatprep.subr.mxu0 0.0
        %1415 = vmatpush1.msra.mxu0 %v1408
        %1416 = vmatprep.subr.mxu0 0.0
        %1417 = vmatpush1.msra.mxu0 0.0
        %1418 = vmatprep.subr.mxu0 0.0
        %1419 = vmatpush1.msra.mxu0 0.0
        %1420 = vmatprep.subr.mxu0 0.0
        %1421 = vmatpush1.msra.mxu0 0.0
        %1422 = vmatprep.subr.mxu0 0.0
        %1423 = vmatpush1.msra.mxu0 0.0
        %1424 = vmatprep.subr.mxu0 0.0
        %1425 = vmatpush1.msra.mxu0 0.0
        %1426 = vmatprep.subr.mxu0 0.0
        %1427 = vmatpush1.msra.mxu0 0.0
        %1428 = vmatprep.subr.mxu0 0.0
        %1429 = vmatpush1.msra.mxu0 0.0
        %1430 = vmatprep.subr.mxu0 0.0
        %1431 = vmatpush1.msra.mxu0 0.0
        %1432 = vmatprep.subr.mxu0 0.0
        %1433 = vmatpush1.msra.mxu0 0.0
        %1434 = vmatprep.subr.mxu0 0.0
        %1435 = vmatpush1.msra.mxu0 0.0
        %1436 = vmatprep.subr.mxu0 0.0
        %1437 = vmatpush1.msra.mxu0 0.0
        %1438 = vmatprep.subr.mxu0 0.0
        %1439 = vmatpush1.msra.mxu0 0.0
        %1440 = vmatprep.subr.mxu0 0.0
        %1441 = vmatpush1.msra.mxu0 0.0
        %1442 = vmatprep.subr.mxu0 0.0
        %1443 = vmatpush1.msra.mxu0 0.0
        %1444 = vmatprep.subr.mxu0 0.0
        %1445 = vmatpush1.msra.mxu0 0.0
        %1446 = vmatprep.subr.mxu0 0.0
        %1447 = vmatpush1.msra.mxu0 0.0
        %1448 = vmatprep.subr.mxu0 0.0
        %1449 = vmatpush1.msra.mxu0 0.0
        %1450 = vmatprep.subr.mxu0 0.0
        %1451 = vmatpush1.msra.mxu0 0.0
        %1452 = vmatprep.subr.mxu0 0.0
        %1453 = vmatpush1.msra.mxu0 0.0
        %1454 = vmatprep.subr.mxu0 0.0
        %1455 = vmatpush1.msra.mxu0 0.0
        %1456 = vmatprep.subr.mxu0 0.0
        %1457 = vmatpush1.msra.mxu0 0.0
        %1458 = vmatprep.subr.mxu0 0.0
        %1459 = vmatpush1.msra.mxu0 0.0
        %1460 = vmatprep.subr.mxu0 0.0
        %1461 = vmatpush1.msra.mxu0 0.0
        %1462 = vmatprep.subr.mxu0 0.0
        %1463 = vmatpush1.msra.mxu0 0.0
        %1464 = vmatprep.subr.mxu0 0.0
        %1465 = vmatpush1.msra.mxu0 0.0
        %1466 = vmatprep.subr.mxu0 0.0
        %1467 = vmatpush1.msra.mxu0 0.0
        %1468 = vmatprep.subr.mxu0 0.0
        %1469 = vmatpush1.msra.mxu0 0.0
        %1470 = vmatprep.subr.mxu0 0.0
        %1471 = vmatpush1.msra.mxu0 0.0
        %1472 = vmatprep.subr.mxu0 0.0
        %1473 = vmatpush1.msra.mxu0 0.0
        %1474 = vmatprep.mubr.f32.mxu0 0.0
        %1475 = vmatmul.mubr.f32.gmra.mrb[0].mxu0 %v1400
        %v1476 = vpop.f32.mrb[0].mxu0
        %v1477 = vadd.f32 0.0, %v1476
        %v1478 = vpop.f32.mrb[0].mxu0
        %1479 = vmatprep.mubr.f32.mxu0 0.0
        %1480 = vmatmul.mubr.f32.gmra.mrb[0].mxu0 %v1403
        %v1481 = vpop.f32.mrb[0].mxu0
        %v1482 = vadd.f32 0.0, %v1481
        %v1483 = vpop.f32.mrb[0].mxu0
        %1484 = vmatprep.mubr.f32.mxu0 0.0
        %1485 = vmatmul.mubr.f32.gmra.mrb[0].mxu0 %v1406
        %v1486 = vpop.f32.mrb[0].mxu0
        %v1487 = vadd.f32 0.0, %v1486
        %v1488 = vpop.f32.mrb[0].mxu0
        %1489 = vdwg.mxu0
        %v1490 = vld [vmem:[%s5 + $0x10] sm:$0xff]
        %v1492 = vsel %vm600, %v1477, 0
        %v1495 = vsel %vm600, %v1482, 0
        %v1498 = vsel %vm600, %v1487, 0
        %1500 = vmatprep.subr.mxu0 0.0
        %1501 = vmatpush1.msra.mxu0 %v1490
        %1502 = vmatprep.subr.mxu0 0.0
        %1503 = vmatpush1.msra.mxu0 0.0
        %1504 = vmatprep.subr.mxu0 0.0
        %1505 = vmatpush1.msra.mxu0 0.0
        %1506 = vmatprep.subr.mxu0 0.0
        %1507 = vmatpush1.msra.mxu0 0.0
        %1508 = vmatprep.subr.mxu0 0.0
        %1509 = vmatpush1.msra.mxu0 0.0
        %1510 = vmatprep.subr.mxu0 0.0
        %1511 = vmatpush1.msra.mxu0 0.0
        %1512 = vmatprep.subr.mxu0 0.0
        %1513 = vmatpush1.msra.mxu0 0.0
        %1514 = vmatprep.subr.mxu0 0.0
        %1515 = vmatpush1.msra.mxu0 0.0
        %1516 = vmatprep.subr.mxu0 0.0
        %1517 = vmatpush1.msra.mxu0 0.0
        %1518 = vmatprep.subr.mxu0 0.0
        %1519 = vmatpush1.msra.mxu0 0.0
        %1520 = vmatprep.subr.mxu0 0.0
        %1521 = vmatpush1.msra.mxu0 0.0
        %1522 = vmatprep.subr.mxu0 0.0
        %1523 = vmatpush1.msra.mxu0 0.0
        %1524 = vmatprep.subr.mxu0 0.0
        %1525 = vmatpush1.msra.mxu0 0.0
        %1526 = vmatprep.subr.mxu0 0.0
        %1527 = vmatpush1.msra.mxu0 0.0
        %1528 = vmatprep.subr.mxu0 0.0
        %1529 = vmatpush1.msra.mxu0 0.0
        %1530 = vmatprep.subr.mxu0 0.0
        %1531 = vmatpush1.msra.mxu0 0.0
        %1532 = vmatprep.subr.mxu0 0.0
        %1533 = vmatpush1.msra.mxu0 0.0
        %1534 = vmatprep.subr.mxu0 0.0
        %1535 = vmatpush1.msra.mxu0 0.0
        %1536 = vmatprep.subr.mxu0 0.0
        %1537 = vmatpush1.msra.mxu0 0.0
        %1538 = vmatprep.subr.mxu0 0.0
        %1539 = vmatpush1.msra.mxu0 0.0
        %1540 = vmatprep.subr.mxu0 0.0
        %1541 = vmatpush1.msra.mxu0 0.0
        %1542 = vmatprep.subr.mxu0 0.0
        %1543 = vmatpush1.msra.mxu0 0.0
        %1544 = vmatprep.subr.mxu0 0.0
        %1545 = vmatpush1.msra.mxu0 0.0
        %1546 = vmatprep.subr.mxu0 0.0
        %1547 = vmatpush1.msra.mxu0 0.0
        %1548 = vmatprep.subr.mxu0 0.0
        %1549 = vmatpush1.msra.mxu0 0.0
        %1550 = vmatprep.subr.mxu0 0.0
        %1551 = vmatpush1.msra.mxu0 0.0
        %1552 = vmatprep.subr.mxu0 0.0
        %1553 = vmatpush1.msra.mxu0 0.0
        %1554 = vmatprep.subr.mxu0 0.0
        %1555 = vmatpush1.msra.mxu0 0.0
        %1556 = vmatprep.subr.mxu0 0.0
        %1557 = vmatpush1.msra.mxu0 0.0
        %1558 = vmatprep.subr.mxu0 0.0
        %1559 = vmatpush1.msra.mxu0 0.0
        %1560 = vmatprep.subr.mxu0 0.0
        %1561 = vmatpush1.msra.mxu0 0.0
        %1562 = vmatprep.subr.mxu0 0.0
        %1563 = vmatpush1.msra.mxu0 0.0
        %1564 = vmatprep.mubr.f32.mxu0 0.0
        %1565 = vmatmul.mubr.f32.gmra.mrb[0].mxu0 %v1492
        %v1566 = vpop.f32.mrb[0].mxu0
        %v1567 = vadd.f32 0.0, %v1566
        %v1568 = vpop.f32.mrb[0].mxu0
        %1569 = vmatprep.mubr.f32.mxu0 0.0
        %1570 = vmatmul.mubr.f32.gmra.mrb[0].mxu0 %v1495
        %v1571 = vpop.f32.mrb[0].mxu0
        %v1572 = vadd.f32 0.0, %v1571
        %v1573 = vpop.f32.mrb[0].mxu0
        %1574 = vmatprep.mubr.f32.mxu0 0.0
        %1575 = vmatmul.mubr.f32.gmra.mrb[0].mxu0 %v1498
        %v1576 = vpop.f32.mrb[0].mxu0
        %v1577 = vadd.f32 0.0, %v1576
        %v1578 = vpop.f32.mrb[0].mxu0
        %1579 = vdwg.mxu0
        %v1580 = vadd.f32 %v1251, %v1567
        %v1581 = vadd.f32 %v1252, %v1572
        %v1582 = vadd.f32 %v1253, %v1577
        %1583 = vrot.lane.b32.xlu0 %v577, 104
        %v1584 = vpop.permute.xlu0 %1583
        %1585 = vrot.lane.b32.xlu0 %v582, 104
        %v1586 = vpop.permute.xlu0 %1585
        %1587 = vrot.lane.b32.xlu0 %v587, 104
        %v1588 = vpop.permute.xlu0 %1587
        %1589 = vrot.lane.b32.xlu0 %v577, 72
        %v1590 = vpop.permute.xlu0 %1589
        %1591 = vrot.lane.b32.xlu0 %v582, 72
        %v1592 = vpop.permute.xlu0 %1591
        %1593 = vrot.lane.b32.xlu0 %v587, 72
        %v1594 = vpop.permute.xlu0 %1593
        %v1595 = vsel %vm600, %v1584, 0
        %v1597 = vsel %vm600, %v1586, 0
        %v1599 = vsel %vm600, %v1588, 0
        %v1601 = vsel %vm600, %v1590, 0
        %v1603 = vsel %vm600, %v1592, 0
        %v1605 = vsel %vm600, %v1594, 0
        %1607 = vmatprep.subr.mxu0 0.0
        %1608 = vmatpush1.xpose.msra.mxu0 %v1601
        %1609 = vmatprep.subr.mxu0 0.0
        %1610 = vmatpush1.xpose.msra.mxu0 %v1603
        %1611 = vmatprep.subr.mxu0 0.0
        %1612 = vmatpush1.xpose.msra.mxu0 %v1605
        %1613 = vmatprep.subr.mxu0 0.0
        %1614 = vmatpush1.xpose.msra.mxu0 0.0
        %1615 = vmatprep.subr.mxu0 0.0
        %1616 = vmatpush1.xpose.msra.mxu0 0.0
        %1617 = vmatprep.subr.mxu0 0.0
        %1618 = vmatpush1.xpose.msra.mxu0 0.0
        %1619 = vmatprep.subr.mxu0 0.0
        %1620 = vmatpush1.xpose.msra.mxu0 0.0
        %1621 = vmatprep.subr.mxu0 0.0
        %1622 = vmatpush1.xpose.msra.mxu0 0.0
        %1623 = vmatprep.subr.mxu0 0.0
        %1624 = vmatpush1.xpose.msra.mxu0 0.0
        %1625 = vmatprep.subr.mxu0 0.0
        %1626 = vmatpush1.xpose.msra.mxu0 0.0
        %1627 = vmatprep.subr.mxu0 0.0
        %1628 = vmatpush1.xpose.msra.mxu0 0.0
        %1629 = vmatprep.subr.mxu0 0.0
        %1630 = vmatpush1.xpose.msra.mxu0 0.0
        %1631 = vmatprep.subr.mxu0 0.0
        %1632 = vmatpush1.xpose.msra.mxu0 0.0
        %1633 = vmatprep.subr.mxu0 0.0
        %1634 = vmatpush1.xpose.msra.mxu0 0.0
        %1635 = vmatprep.subr.mxu0 0.0
        %1636 = vmatpush1.xpose.msra.mxu0 0.0
        %1637 = vmatprep.subr.mxu0 0.0
        %1638 = vmatpush1.xpose.msra.mxu0 0.0
        %1639 = vmatprep.subr.mxu0 0.0
        %1640 = vmatpush1.xpose.msra.mxu0 0.0
        %1641 = vmatprep.subr.mxu0 0.0
        %1642 = vmatpush1.xpose.msra.mxu0 0.0
        %1643 = vmatprep.subr.mxu0 0.0
        %1644 = vmatpush1.xpose.msra.mxu0 0.0
        %1645 = vmatprep.subr.mxu0 0.0
        %1646 = vmatpush1.xpose.msra.mxu0 0.0
        %1647 = vmatprep.subr.mxu0 0.0
        %1648 = vmatpush1.xpose.msra.mxu0 0.0
        %1649 = vmatprep.subr.mxu0 0.0
        %1650 = vmatpush1.xpose.msra.mxu0 0.0
        %1651 = vmatprep.subr.mxu0 0.0
        %1652 = vmatpush1.xpose.msra.mxu0 0.0
        %1653 = vmatprep.subr.mxu0 0.0
        %1654 = vmatpush1.xpose.msra.mxu0 0.0
        %1655 = vmatprep.subr.mxu0 0.0
        %1656 = vmatpush1.xpose.msra.mxu0 0.0
        %1657 = vmatprep.subr.mxu0 0.0
        %1658 = vmatpush1.xpose.msra.mxu0 0.0
        %1659 = vmatprep.subr.mxu0 0.0
        %1660 = vmatpush1.xpose.msra.mxu0 0.0
        %1661 = vmatprep.subr.mxu0 0.0
        %1662 = vmatpush1.xpose.msra.mxu0 0.0
        %1663 = vmatprep.subr.mxu0 0.0
        %1664 = vmatpush1.xpose.msra.mxu0 0.0
        %1665 = vmatprep.subr.mxu0 0.0
        %1666 = vmatpush1.xpose.msra.mxu0 0.0
        %1667 = vmatprep.subr.mxu0 0.0
        %1668 = vmatpush1.xpose.msra.mxu0 0.0
        %1669 = vmatprep.subr.mxu0 0.0
        %1670 = vmatpush1.xpose.msra.mxu0 0.0
        %1671 = vmatprep.mubr.f32.mxu0 0.0
        %1672 = vmatmul.mubr.f32.gmra.mrb[0].mxu0 %v1595
        %v1673 = vpop.f32.mrb[0].mxu0
        %v1674 = vadd.f32 0.0, %v1673
        %v1675 = vpop.f32.mrb[0].mxu0
        %1676 = vmatprep.mubr.f32.mxu0 0.0
        %1677 = vmatmul.mubr.f32.gmra.mrb[0].mxu0 %v1597
        %v1678 = vpop.f32.mrb[0].mxu0
        %v1679 = vadd.f32 0.0, %v1678
        %v1680 = vpop.f32.mrb[0].mxu0
        %1681 = vmatprep.mubr.f32.mxu0 0.0
        %1682 = vmatmul.mubr.f32.gmra.mrb[0].mxu0 %v1599
        %v1683 = vpop.f32.mrb[0].mxu0
        %v1684 = vadd.f32 0.0, %v1683
        %v1685 = vpop.f32.mrb[0].mxu0
        %1686 = vdwg.mxu0
        %v1687 = vsel %vm693, %v1674, -inf
        %1688 = vmax.xlane.f32.xlu0 %v1687
        %v1689 = vpop.xlane.xlu0 %1688
        %v1690 = vsel %vm693, %v1679, -inf
        %1691 = vmax.xlane.f32.xlu0 %v1690
        %v1692 = vpop.xlane.xlu0 %1691
        %v1693 = vsel %vm700, %v1684, -inf
        %1694 = vmax.xlane.f32.xlu0 %v1693
        %v1695 = vpop.xlane.xlu0 %1694
        %v1696 = vsub.f32 %v1674, %v1689
        %v1697 = vsub.f32 %v1679, %v1692
        %v1698 = vsub.f32 %v1684, %v1695
        %v1699 = vmul.f32 %v1696, 1.442695
        %v1700 = vpow.pop %v1699
        %v1701 = vmul.f32 %v1697, 1.442695
        %v1702 = vpow.pop %v1701
        %v1703 = vmul.f32 %v1698, 1.442695
        %v1704 = vpow.pop %v1703
        %v1705 = vsel %vm693, %v1700, 0.0
        %1706 = vadd.xlane.f32.xlu0 %v1705
        %v1707 = vpop.xlane.xlu0 %1706
        %v1708 = vsel %vm693, %v1702, 0.0
        %1709 = vadd.xlane.f32.xlu0 %v1708
        %v1710 = vpop.xlane.xlu0 %1709
        %v1711 = vsel %vm700, %v1704, 0.0
        %1712 = vadd.xlane.f32.xlu0 %v1711
        %v1713 = vpop.xlane.xlu0 %1712
        %v1714 = vrcp.pop %v1707
        %v1715 = vrcp.pop %v1710
        %v1716 = vrcp.pop %v1713
        %v1717 = vmul.f32 %v1700, %v1714
        %v1718 = vmul.f32 %v1702, %v1715
        %v1719 = vmul.f32 %v1704, %v1716
        %1720 = vrot.lane.b32.xlu0 %v577, 40
        %v1721 = vpop.permute.xlu0 %1720
        %1722 = vrot.lane.b32.xlu0 %v582, 40
        %v1723 = vpop.permute.xlu0 %1722
        %1724 = vrot.lane.b32.xlu0 %v587, 40
        %v1725 = vpop.permute.xlu0 %1724
        %v1729 = vsel %vm693, %v1717, 0
        %v1732 = vsel %vm693, %v1718, 0
        %v1735 = vsel %vm693, %v1719, 0
        %v1737 = vsel %vm745, %v1725, 0
        %1739 = vmatprep.subr.mxu0 0.0
        %1740 = vmatpush1.msra.mxu0 %v1721
        %1741 = vmatprep.subr.mxu0 0.0
        %1742 = vmatpush1.msra.mxu0 %v1723
        %1743 = vmatprep.subr.mxu0 0.0
        %1744 = vmatpush1.msra.mxu0 %v1737
        %1745 = vmatprep.subr.mxu0 0.0
        %1746 = vmatpush1.msra.mxu0 0.0
        %1747 = vmatprep.subr.mxu0 0.0
        %1748 = vmatpush1.msra.mxu0 0.0
        %1749 = vmatprep.subr.mxu0 0.0
        %1750 = vmatpush1.msra.mxu0 0.0
        %1751 = vmatprep.subr.mxu0 0.0
        %1752 = vmatpush1.msra.mxu0 0.0
        %1753 = vmatprep.subr.mxu0 0.0
        %1754 = vmatpush1.msra.mxu0 0.0
        %1755 = vmatprep.subr.mxu0 0.0
        %1756 = vmatpush1.msra.mxu0 0.0
        %1757 = vmatprep.subr.mxu0 0.0
        %1758 = vmatpush1.msra.mxu0 0.0
        %1759 = vmatprep.subr.mxu0 0.0
        %1760 = vmatpush1.msra.mxu0 0.0
        %1761 = vmatprep.subr.mxu0 0.0
        %1762 = vmatpush1.msra.mxu0 0.0
        %1763 = vmatprep.subr.mxu0 0.0
        %1764 = vmatpush1.msra.mxu0 0.0
        %1765 = vmatprep.subr.mxu0 0.0
        %1766 = vmatpush1.msra.mxu0 0.0
        %1767 = vmatprep.subr.mxu0 0.0
        %1768 = vmatpush1.msra.mxu0 0.0
        %1769 = vmatprep.subr.mxu0 0.0
        %1770 = vmatpush1.msra.mxu0 0.0
        %1771 = vmatprep.subr.mxu0 0.0
        %1772 = vmatpush1.msra.mxu0 0.0
        %1773 = vmatprep.subr.mxu0 0.0
        %1774 = vmatpush1.msra.mxu0 0.0
        %1775 = vmatprep.subr.mxu0 0.0
        %1776 = vmatpush1.msra.mxu0 0.0
        %1777 = vmatprep.subr.mxu0 0.0
        %1778 = vmatpush1.msra.mxu0 0.0
        %1779 = vmatprep.subr.mxu0 0.0
        %1780 = vmatpush1.msra.mxu0 0.0
        %1781 = vmatprep.subr.mxu0 0.0
        %1782 = vmatpush1.msra.mxu0 0.0
        %1783 = vmatprep.subr.mxu0 0.0
        %1784 = vmatpush1.msra.mxu0 0.0
        %1785 = vmatprep.subr.mxu0 0.0
        %1786 = vmatpush1.msra.mxu0 0.0
        %1787 = vmatprep.subr.mxu0 0.0
        %1788 = vmatpush1.msra.mxu0 0.0
        %1789 = vmatprep.subr.mxu0 0.0
        %1790 = vmatpush1.msra.mxu0 0.0
        %1791 = vmatprep.subr.mxu0 0.0
        %1792 = vmatpush1.msra.mxu0 0.0
        %1793 = vmatprep.subr.mxu0 0.0
        %1794 = vmatpush1.msra.mxu0 0.0
        %1795 = vmatprep.subr.mxu0 0.0
        %1796 = vmatpush1.msra.mxu0 0.0
        %1797 = vmatprep.subr.mxu0 0.0
        %1798 = vmatpush1.msra.mxu0 0.0
        %1799 = vmatprep.subr.mxu0 0.0
        %1800 = vmatpush1.msra.mxu0 0.0
        %1801 = vmatprep.subr.mxu0 0.0
        %1802 = vmatpush1.msra.mxu0 0.0
        %1803 = vmatprep.mubr.f32.mxu0 0.0
        %1804 = vmatmul.mubr.f32.gmra.mrb[0].mxu0 %v1729
        %v1805 = vpop.f32.mrb[0].mxu0
        %v1806 = vadd.f32 0.0, %v1805
        %v1807 = vpop.f32.mrb[0].mxu0
        %1808 = vmatprep.mubr.f32.mxu0 0.0
        %1809 = vmatmul.mubr.f32.gmra.mrb[0].mxu0 %v1732
        %v1810 = vpop.f32.mrb[0].mxu0
        %v1811 = vadd.f32 0.0, %v1810
        %v1812 = vpop.f32.mrb[0].mxu0
        %1813 = vmatprep.mubr.f32.mxu0 0.0
        %1814 = vmatmul.mubr.f32.gmra.mrb[0].mxu0 %v1735
        %v1815 = vpop.f32.mrb[0].mxu0
        %v1816 = vadd.f32 0.0, %v1815
        %v1817 = vpop.f32.mrb[0].mxu0
        %1818 = vdwg.mxu0
        %v1819 = vld [vmem:[%s5 + $0x18] sm:$0xff]
        %v1821 = vsel %vm600, %v1806, 0
        %v1824 = vsel %vm600, %v1811, 0
        %v1827 = vsel %vm600, %v1816, 0
        %1829 = vmatprep.subr.mxu0 0.0
        %1830 = vmatpush1.msra.mxu0 %v1819
        %1831 = vmatprep.subr.mxu0 0.0
        %1832 = vmatpush1.msra.mxu0 0.0
        %1833 = vmatprep.subr.mxu0 0.0
        %1834 = vmatpush1.msra.mxu0 0.0
        %1835 = vmatprep.subr.mxu0 0.0
        %1836 = vmatpush1.msra.mxu0 0.0
        %1837 = vmatprep.subr.mxu0 0.0
        %1838 = vmatpush1.msra.mxu0 0.0
        %1839 = vmatprep.subr.mxu0 0.0
        %1840 = vmatpush1.msra.mxu0 0.0
        %1841 = vmatprep.subr.mxu0 0.0
        %1842 = vmatpush1.msra.mxu0 0.0
        %1843 = vmatprep.subr.mxu0 0.0
        %1844 = vmatpush1.msra.mxu0 0.0
        %1845 = vmatprep.subr.mxu0 0.0
        %1846 = vmatpush1.msra.mxu0 0.0
        %1847 = vmatprep.subr.mxu0 0.0
        %1848 = vmatpush1.msra.mxu0 0.0
        %1849 = vmatprep.subr.mxu0 0.0
        %1850 = vmatpush1.msra.mxu0 0.0
        %1851 = vmatprep.subr.mxu0 0.0
        %1852 = vmatpush1.msra.mxu0 0.0
        %1853 = vmatprep.subr.mxu0 0.0
        %1854 = vmatpush1.msra.mxu0 0.0
        %1855 = vmatprep.subr.mxu0 0.0
        %1856 = vmatpush1.msra.mxu0 0.0
        %1857 = vmatprep.subr.mxu0 0.0
        %1858 = vmatpush1.msra.mxu0 0.0
        %1859 = vmatprep.subr.mxu0 0.0
        %1860 = vmatpush1.msra.mxu0 0.0
        %1861 = vmatprep.subr.mxu0 0.0
        %1862 = vmatpush1.msra.mxu0 0.0
        %1863 = vmatprep.subr.mxu0 0.0
        %1864 = vmatpush1.msra.mxu0 0.0
        %1865 = vmatprep.subr.mxu0 0.0
        %1866 = vmatpush1.msra.mxu0 0.0
        %1867 = vmatprep.subr.mxu0 0.0
        %1868 = vmatpush1.msra.mxu0 0.0
        %1869 = vmatprep.subr.mxu0 0.0
        %1870 = vmatpush1.msra.mxu0 0.0
        %1871 = vmatprep.subr.mxu0 0.0
        %1872 = vmatpush1.msra.mxu0 0.0
        %1873 = vmatprep.subr.mxu0 0.0
        %1874 = vmatpush1.msra.mxu0 0.0
        %1875 = vmatprep.subr.mxu0 0.0
        %1876 = vmatpush1.msra.mxu0 0.0
        %1877 = vmatprep.subr.mxu0 0.0
        %1878 = vmatpush1.msra.mxu0 0.0
        %1879 = vmatprep.subr.mxu0 0.0
        %1880 = vmatpush1.msra.mxu0 0.0
        %1881 = vmatprep.subr.mxu0 0.0
        %1882 = vmatpush1.msra.mxu0 0.0
        %1883 = vmatprep.subr.mxu0 0.0
        %1884 = vmatpush1.msra.mxu0 0.0
        %1885 = vmatprep.subr.mxu0 0.0
        %1886 = vmatpush1.msra.mxu0 0.0
        %1887 = vmatprep.subr.mxu0 0.0
        %1888 = vmatpush1.msra.mxu0 0.0
        %1889 = vmatprep.subr.mxu0 0.0
        %1890 = vmatpush1.msra.mxu0 0.0
        %1891 = vmatprep.subr.mxu0 0.0
        %1892 = vmatpush1.msra.mxu0 0.0
        %1893 = vmatprep.mubr.f32.mxu0 0.0
        %1894 = vmatmul.mubr.f32.gmra.mrb[0].mxu0 %v1821
        %v1895 = vpop.f32.mrb[0].mxu0
        %v1896 = vadd.f32 0.0, %v1895
        %v1897 = vpop.f32.mrb[0].mxu0
        %1898 = vmatprep.mubr.f32.mxu0 0.0
        %1899 = vmatmul.mubr.f32.gmra.mrb[0].mxu0 %v1824
        %v1900 = vpop.f32.mrb[0].mxu0
        %v1901 = vadd.f32 0.0, %v1900
        %v1902 = vpop.f32.mrb[0].mxu0
        %1903 = vmatprep.mubr.f32.mxu0 0.0
        %1904 = vmatmul.mubr.f32.gmra.mrb[0].mxu0 %v1827
        %v1905 = vpop.f32.mrb[0].mxu0
        %v1906 = vadd.f32 0.0, %v1905
        %v1907 = vpop.f32.mrb[0].mxu0
        %1908 = vdwg.mxu0
        %v1909 = vadd.f32 %v1580, %v1896
        %v1910 = vadd.f32 %v1581, %v1901
        %v1911 = vadd.f32 %v1582, %v1906
        %v1912 = vadd.f32 %v1909, %v421
        %v1913 = vadd.f32 %v1910, %v426
        %v1914 = vadd.f32 %v1911, %v431
        %v1915 = vld [vmem:[%s3 + $0x2] sm:$0x1]
        %v1916 = vld [vmem:[%s3 + $0x3] sm:$0x1]
        %v1917 = vsel %vm436, %v1912, 0.0
        %1918 = vadd.xlane.f32.xlu0 %v1917
        %v1919 = vpop.xlane.xlu0 %1918
        %v1920 = vsel %vm436, %v1913, 0.0
        %1921 = vadd.xlane.f32.xlu0 %v1920
        %v1922 = vpop.xlane.xlu0 %1921
        %v1923 = vsel %vm443, %v1914, 0.0
        %1924 = vadd.xlane.f32.xlu0 %v1923
        %v1925 = vpop.xlane.xlu0 %1924
        %v1926 = vmul.f32 %v1919, %v447
        %v1927 = vmul.f32 %v1922, %v447
        %v1928 = vmul.f32 %v1925, %v447
        %v1929 = vsub.f32 %v1912, %v1926
        %v1930 = vsub.f32 %v1913, %v1927
        %v1931 = vsub.f32 %v1914, %v1928
        %v1932 = vmul.f32 %v1929, %v1929
        %v1933 = vmul.f32 %v1930, %v1930
        %v1934 = vmul.f32 %v1931, %v1931
        %v1935 = vsel %vm436, %v1932, 0.0
        %1936 = vadd.xlane.f32.xlu0 %v1935
        %v1937 = vpop.xlane.xlu0 %1936
        %v1938 = vsel %vm436, %v1933, 0.0
        %1939 = vadd.xlane.f32.xlu0 %v1938
        %v1940 = vpop.xlane.xlu0 %1939
        %v1941 = vsel %vm443, %v1934, 0.0
        %1942 = vadd.xlane.f32.xlu0 %v1941
        %v1943 = vpop.xlane.xlu0 %1942
        %v1944 = vmul.f32 %v1937, %v447
        %v1945 = vmul.f32 %v1940, %v447
        %v1946 = vmul.f32 %v1943, %v447
        %v1947 = vadd.f32 %v1944, 1e-05
        %v1948 = vadd.f32 %v1945, 1e-05
        %v1949 = vadd.f32 %v1946, 1e-05
        %v1950 = vrsqrt.pop %v1947
        %v1951 = vrsqrt.pop %v1948
        %v1952 = vrsqrt.pop %v1949
        %v1953 = vmul.f32 %v1929, %v1950
        %v1954 = vmul.f32 %v1930, %v1951
        %v1955 = vmul.f32 %v1931, %v1952
        %v1956 = vlaneseq
        %v1957 = vshrl.u32 %v1956, 7
        %v1958 = vsub.s32 0, %v1957
        %v1959 = vrot.slane %v1915, %v1958
        %v1960 = vmul.f32 %v1953, %v1959
        %v1961 = vmul.f32 %v1954, %v1959
        %v1962 = vmul.f32 %v1955, %v1959
        %v1963 = vlaneseq
        %v1964 = vshrl.u32 %v1963, 7
        %v1965 = vsub.s32 0, %v1964
        %v1966 = vrot.slane %v1916, %v1965
        %v1967 = vadd.f32 %v1960, %v1966
        %v1968 = vadd.f32 %v1961, %v1966
        %v1969 = vadd.f32 %v1962, %v1966
        %v1970 = vld [vmem:[%s6] sm:$0xff]
        %v1971 = vld [vmem:[%s6 + $0x8] sm:$0xff]
        %v1972 = vld [vmem:[%s6 + $0x10] sm:$0xff]
        %v1973 = vld [vmem:[%s6 + $0x18] sm:$0xff]
        %v1974 = vld [vmem:[%s6 + $0x20] sm:$0x1]
        %v1975 = vlaneseq
        %v1976 = vshrl.u32 %v1975, 7
        %v1977 = vsub.s32 0, %v1976
        %v1978 = vrot.slane %v1974, %v1977
        %v1980 = vsel %vm436, %v1967, 0
        %v1983 = vsel %vm436, %v1968, 0
        %v1986 = vsel %vm436, %v1969, 0
        %1988 = vmatprep.subr.mxu0 0.0
        %1989 = vmatpush1.msra.mxu0 %v1970
        %1990 = vmatprep.subr.mxu0 0.0
        %1991 = vmatpush1.msra.mxu0 %v1971
        %1992 = vmatprep.subr.mxu0 0.0
        %1993 = vmatpush1.msra.mxu0 %v1972
        %1994 = vmatprep.subr.mxu0 0.0
        %1995 = vmatpush1.msra.mxu0 %v1973
        %1996 = vmatprep.subr.mxu0 0.0
        %1997 = vmatpush1.msra.mxu0 0.0
        %1998 = vmatprep.subr.mxu0 0.0
        %1999 = vmatpush1.msra.mxu0 0.0
        %2000 = vmatprep.subr.mxu0 0.0
        %2001 = vmatpush1.msra.mxu0 0.0
        %2002 = vmatprep.subr.mxu0 0.0
        %2003 = vmatpush1.msra.mxu0 0.0
        %2004 = vmatprep.subr.mxu0 0.0
        %2005 = vmatpush1.msra.mxu0 0.0
        %2006 = vmatprep.subr.mxu0 0.0
        %2007 = vmatpush1.msra.mxu0 0.0
        %2008 = vmatprep.subr.mxu0 0.0
        %2009 = vmatpush1.msra.mxu0 0.0
        %2010 = vmatprep.subr.mxu0 0.0
        %2011 = vmatpush1.msra.mxu0 0.0
        %2012 = vmatprep.subr.mxu0 0.0
        %2013 = vmatpush1.msra.mxu0 0.0
        %2014 = vmatprep.subr.mxu0 0.0
        %2015 = vmatpush1.msra.mxu0 0.0
        %2016 = vmatprep.subr.mxu0 0.0
        %2017 = vmatpush1.msra.mxu0 0.0
        %2018 = vmatprep.subr.mxu0 0.0
        %2019 = vmatpush1.msra.mxu0 0.0
        %2020 = vmatprep.subr.mxu0 0.0
        %2021 = vmatpush1.msra.mxu0 0.0
        %2022 = vmatprep.subr.mxu0 0.0
        %2023 = vmatpush1.msra.mxu0 0.0
        %2024 = vmatprep.subr.mxu0 0.0
        %2025 = vmatpush1.msra.mxu0 0.0
        %2026 = vmatprep.subr.mxu0 0.0
        %2027 = vmatpush1.msra.mxu0 0.0
        %2028 = vmatprep.subr.mxu0 0.0
        %2029 = vmatpush1.msra.mxu0 0.0
        %2030 = vmatprep.subr.mxu0 0.0
        %2031 = vmatpush1.msra.mxu0 0.0
        %2032 = vmatprep.subr.mxu0 0.0
        %2033 = vmatpush1.msra.mxu0 0.0
        %2034 = vmatprep.subr.mxu0 0.0
        %2035 = vmatpush1.msra.mxu0 0.0
        %2036 = vmatprep.subr.mxu0 0.0
        %2037 = vmatpush1.msra.mxu0 0.0
        %2038 = vmatprep.subr.mxu0 0.0
        %2039 = vmatpush1.msra.mxu0 0.0
        %2040 = vmatprep.subr.mxu0 0.0
        %2041 = vmatpush1.msra.mxu0 0.0
        %2042 = vmatprep.subr.mxu0 0.0
        %2043 = vmatpush1.msra.mxu0 0.0
        %2044 = vmatprep.subr.mxu0 0.0
        %2045 = vmatpush1.msra.mxu0 0.0
        %2046 = vmatprep.subr.mxu0 0.0
        %2047 = vmatpush1.msra.mxu0 0.0
        %2048 = vmatprep.subr.mxu0 0.0
        %2049 = vmatpush1.msra.mxu0 0.0
        %2050 = vmatprep.subr.mxu0 0.0
        %2051 = vmatpush1.msra.mxu0 0.0
        %2052 = vmatprep.mubr.f32.mxu0 0.0
        %2053 = vmatmul.mubr.f32.gmra.mrb[0].mxu0 %v1980
        %v2054 = vpop.f32.mrb[0].mxu0
        %v2055 = vadd.f32 %v1978, %v2054
        %v2056 = vpop.f32.mrb[0].mxu0
        %2057 = vmatprep.mubr.f32.mxu0 0.0
        %2058 = vmatmul.mubr.f32.gmra.mrb[0].mxu0 %v1983
        %v2059 = vpop.f32.mrb[0].mxu0
        %v2060 = vadd.f32 %v1978, %v2059
        %v2061 = vpop.f32.mrb[0].mxu0
        %2062 = vmatprep.mubr.f32.mxu0 0.0
        %2063 = vmatmul.mubr.f32.gmra.mrb[0].mxu0 %v1986
        %v2064 = vpop.f32.mrb[0].mxu0
        %v2065 = vadd.f32 %v1978, %v2064
        %v2066 = vpop.f32.mrb[0].mxu0
        %2067 = vdwg.mxu0
        %v2068 = vmul.f32 %v2055, 0.5
        %v2069 = vmul.f32 %v2060, 0.5
        %v2070 = vmul.f32 %v2065, 0.5
        %v2071 = vmul.f32 %v2055, 0.70710677
        %v2072 = vmul.f32 %v2060, 0.70710677
        %v2073 = vmul.f32 %v2065, 0.70710677
        %v2074 = verf.f32.pop %v2071
        %v2075 = verf.f32.pop %v2072
        %v2076 = verf.f32.pop %v2073
        %v2077 = vadd.f32 %v2074, 1.0
        %v2078 = vadd.f32 %v2075, 1.0
        %v2079 = vadd.f32 %v2076, 1.0
        %v2080 = vmul.f32 %v2068, %v2077
        %v2081 = vmul.f32 %v2069, %v2078
        %v2082 = vmul.f32 %v2070, %v2079
        %v2083 = vld [vmem:[%s7] sm:$0xff]
        %v2084 = vld [vmem:[%s7 + $0x8] sm:$0xff]
        %v2085 = vld [vmem:[%s7 + $0x10] sm:$0xff]
        %v2086 = vld [vmem:[%s7 + $0x18] sm:$0xff]
        %v2087 = vld [vmem:[%s7 + $0x20] sm:$0xff]
        %v2088 = vld [vmem:[%s7 + $0x28] sm:$0xff]
        %v2089 = vld [vmem:[%s7 + $0x30] sm:$0xff]
        %v2090 = vld [vmem:[%s7 + $0x38] sm:$0xff]
        %v2091 = vld [vmem:[%s7 + $0x40] sm:$0xff]
        %v2092 = vld [vmem:[%s7 + $0x48] sm:$0xff]
        %v2093 = vld [vmem:[%s7 + $0x50] sm:$0xff]
        %v2094 = vld [vmem:[%s7 + $0x58] sm:$0xff]
        %v2095 = vld [vmem:[%s7 + $0x60] sm:$0xff]
        %v2096 = vld [vmem:[%s7 + $0x68] sm:$0xff]
        %v2097 = vld [vmem:[%s7 + $0x70] sm:$0xff]
        %v2098 = vld [vmem:[%s7 + $0x78] sm:$0xff]
        %v2099 = vld [vmem:[%s7 + $0x80] sm:$0x1]
        %v2100 = vlaneseq
        %v2101 = vshrl.u32 %v2100, 7
        %v2102 = vsub.s32 0, %v2101
        %v2103 = vrot.slane %v2099, %v2102
        %2104 = vmatprep.subr.mxu0 0.0
        %2105 = vmatpush1.msra.mxu0 %v2083
        %2106 = vmatprep.subr.mxu0 0.0
        %2107 = vmatpush1.msra.mxu0 %v2084
        %2108 = vmatprep.subr.mxu0 0.0
        %2109 = vmatpush1.msra.mxu0 %v2085
        %2110 = vmatprep.subr.mxu0 0.0
        %2111 = vmatpush1.msra.mxu0 %v2086
        %2112 = vmatprep.subr.mxu0 0.0
        %2113 = vmatpush1.msra.mxu0 %v2087
        %2114 = vmatprep.subr.mxu0 0.0
        %2115 = vmatpush1.msra.mxu0 %v2088
        %2116 = vmatprep.subr.mxu0 0.0
        %2117 = vmatpush1.msra.mxu0 %v2089
        %2118 = vmatprep.subr.mxu0 0.0
        %2119 = vmatpush1.msra.mxu0 %v2090
        %2120 = vmatprep.subr.mxu0 0.0
        %2121 = vmatpush1.msra.mxu0 %v2091
        %2122 = vmatprep.subr.mxu0 0.0
        %2123 = vmatpush1.msra.mxu0 %v2092
        %2124 = vmatprep.subr.mxu0 0.0
        %2125 = vmatpush1.msra.mxu0 %v2093
        %2126 = vmatprep.subr.mxu0 0.0
        %2127 = vmatpush1.msra.mxu0 %v2094
        %2128 = vmatprep.subr.mxu0 0.0
        %2129 = vmatpush1.msra.mxu0 %v2095
        %2130 = vmatprep.subr.mxu0 0.0
        %2131 = vmatpush1.msra.mxu0 %v2096
        %2132 = vmatprep.subr.mxu0 0.0
        %2133 = vmatpush1.msra.mxu0 %v2097
        %2134 = vmatprep.subr.mxu0 0.0
        %2135 = vmatpush1.msra.mxu0 %v2098
        %2136 = vmatprep.subr.mxu0 0.0
        %2137 = vmatpush1.msra.mxu0 0.0
        %2138 = vmatprep.subr.mxu0 0.0
        %2139 = vmatpush1.msra.mxu0 0.0
        %2140 = vmatprep.subr.mxu0 0.0
        %2141 = vmatpush1.msra.mxu0 0.0
        %2142 = vmatprep.subr.mxu0 0.0
        %2143 = vmatpush1.msra.mxu0 0.0
        %2144 = vmatprep.subr.mxu0 0.0
        %2145 = vmatpush1.msra.mxu0 0.0
        %2146 = vmatprep.subr.mxu0 0.0
        %2147 = vmatpush1.msra.mxu0 0.0
        %2148 = vmatprep.subr.mxu0 0.0
        %2149 = vmatpush1.msra.mxu0 0.0
        %2150 = vmatprep.subr.mxu0 0.0
        %2151 = vmatpush1.msra.mxu0 0.0
        %2152 = vmatprep.subr.mxu0 0.0
        %2153 = vmatpush1.msra.mxu0 0.0
        %2154 = vmatprep.subr.mxu0 0.0
        %2155 = vmatpush1.msra.mxu0 0.0
        %2156 = vmatprep.subr.mxu0 0.0
        %2157 = vmatpush1.msra.mxu0 0.0
        %2158 = vmatprep.subr.mxu0 0.0
        %2159 = vmatpush1.msra.mxu0 0.0
        %2160 = vmatprep.subr.mxu0 0.0
        %2161 = vmatpush1.msra.mxu0 0.0
        %2162 = vmatprep.subr.mxu0 0.0
        %2163 = vmatpush1.msra.mxu0 0.0
        %2164 = vmatprep.subr.mxu0 0.0
        %2165 = vmatpush1.msra.mxu0 0.0
        %2166 = vmatprep.subr.mxu0 0.0
        %2167 = vmatpush1.msra.mxu0 0.0
        %2168 = vmatprep.mubr.f32.mxu0 0.0
        %2169 = vmatmul.mubr.f32.gmra.mrb[0].mxu0 %v2080
        %v2170 = vpop.f32.mrb[0].mxu0
        %v2171 = vadd.f32 %v2103, %v2170
        %v2172 = vpop.f32.mrb[0].mxu0
        %2173 = vmatprep.mubr.f32.mxu0 0.0
        %2174 = vmatmul.mubr.f32.gmra.mrb[0].mxu0 %v2081
        %v2175 = vpop.f32.mrb[0].mxu0
        %v2176 = vadd.f32 %v2103, %v2175
        %v2177 = vpop.f32.mrb[0].mxu0
        %2178 = vmatprep.mubr.f32.mxu0 0.0
        %2179 = vmatmul.mubr.f32.gmra.mrb[0].mxu0 %v2082
        %v2180 = vpop.f32.mrb[0].mxu0
        %v2181 = vadd.f32 %v2103, %v2180
        %v2182 = vpop.f32.mrb[0].mxu0
        %2183 = vdwg.mxu0
        %v2184 = vadd.f32 %v2171, %v1967
        %v2185 = vadd.f32 %v2176, %v1968
        %v2186 = vadd.f32 %v2181, %v1969
        %s2187 = scalar_lea.vmem %s3, 4
        %v2188 = vld [vmem:[%s2187] sm:$0x1]
        %v2189 = vld [vmem:[%s2187 + $0x1] sm:$0x1]
        %v2190 = vsel %vm436, %v2184, 0.0
        %2191 = vadd.xlane.f32.xlu0 %v2190
        %v2192 = vpop.xlane.xlu0 %2191
        %v2193 = vsel %vm436, %v2185, 0.0
        %2194 = vadd.xlane.f32.xlu0 %v2193
        %v2195 = vpop.xlane.xlu0 %2194
        %v2196 = vsel %vm443, %v2186, 0.0
        %2197 = vadd.xlane.f32.xlu0 %v2196
        %v2198 = vpop.xlane.xlu0 %2197
        %v2199 = vmul.f32 %v2192, %v447
        %v2200 = vmul.f32 %v2195, %v447
        %v2201 = vmul.f32 %v2198, %v447
        %v2202 = vsub.f32 %v2184, %v2199
        %v2203 = vsub.f32 %v2185, %v2200
        %v2204 = vsub.f32 %v2186, %v2201
        %v2205 = vmul.f32 %v2202, %v2202
        %v2206 = vmul.f32 %v2203, %v2203
        %v2207 = vmul.f32 %v2204, %v2204
        %v2208 = vsel %vm436, %v2205, 0.0
        %2209 = vadd.xlane.f32.xlu0 %v2208
        %v2210 = vpop.xlane.xlu0 %2209
        %v2211 = vsel %vm436, %v2206, 0.0
        %2212 = vadd.xlane.f32.xlu0 %v2211
        %v2213 = vpop.xlane.xlu0 %2212
        %v2214 = vsel %vm443, %v2207, 0.0
        %2215 = vadd.xlane.f32.xlu0 %v2214
        %v2216 = vpop.xlane.xlu0 %2215
        %v2217 = vmul.f32 %v2210, %v447
        %v2218 = vmul.f32 %v2213, %v447
        %v2219 = vmul.f32 %v2216, %v447
        %v2220 = vadd.f32 %v2217, 1e-05
        %v2221 = vadd.f32 %v2218, 1e-05
        %v2222 = vadd.f32 %v2219, 1e-05
        %v2223 = vrsqrt.pop %v2220
        %v2224 = vrsqrt.pop %v2221
        %v2225 = vrsqrt.pop %v2222
        %v2226 = vmul.f32 %v2202, %v2223
        %v2227 = vmul.f32 %v2203, %v2224
        %v2228 = vmul.f32 %v2204, %v2225
        %v2229 = vlaneseq
        %v2230 = vshrl.u32 %v2229, 7
        %v2231 = vsub.s32 0, %v2230
        %v2232 = vrot.slane %v2188, %v2231
        %v2233 = vmul.f32 %v2226, %v2232
        %v2234 = vmul.f32 %v2227, %v2232
        %v2235 = vmul.f32 %v2228, %v2232
        %v2236 = vlaneseq
        %v2237 = vshrl.u32 %v2236, 7
        %v2238 = vsub.s32 0, %v2237
        %v2239 = vrot.slane %v2189, %v2238
        %v2240 = vadd.f32 %v2233, %v2239
        %v2241 = vadd.f32 %v2234, %v2239
        %v2242 = vadd.f32 %v2235, %v2239
        %s2243 = scalar_lea.vmem %s4, 40
        %v2244 = vld [vmem:[%s2243] sm:$0xff]
        %v2245 = vld [vmem:[%s2243 + $0x8] sm:$0xff]
        %v2246 = vld [vmem:[%s2243 + $0x10] sm:$0xff]
        %v2247 = vld [vmem:[%s2243 + $0x18] sm:$0xff]
        %v2248 = vld [vmem:[%s2243 + $0x20] sm:$0x1]
        %v2249 = vlaneseq
        %v2250 = vshrl.u32 %v2249, 7
        %v2251 = vsub.s32 0, %v2250
        %v2252 = vrot.slane %v2248, %v2251
        %v2254 = vsel %vm436, %v2240, 0
        %v2257 = vsel %vm436, %v2241, 0
        %v2260 = vsel %vm436, %v2242, 0
        %2262 = vmatprep.subr.mxu0 0.0
        %2263 = vmatpush1.msra.mxu0 %v2244
        %2264 = vmatprep.subr.mxu0 0.0
        %2265 = vmatpush1.msra.mxu0 %v2245
        %2266 = vmatprep.subr.mxu0 0.0
        %2267 = vmatpush1.msra.mxu0 %v2246
        %2268 = vmatprep.subr.mxu0 0.0
        %2269 = vmatpush1.msra.mxu0 %v2247
        %2270 = vmatprep.subr.mxu0 0.0
        %2271 = vmatpush1.msra.mxu0 0.0
        %2272 = vmatprep.subr.mxu0 0.0
        %2273 = vmatpush1.msra.mxu0 0.0
        %2274 = vmatprep.subr.mxu0 0.0
        %2275 = vmatpush1.msra.mxu0 0.0
        %2276 = vmatprep.subr.mxu0 0.0
        %2277 = vmatpush1.msra.mxu0 0.0
        %2278 = vmatprep.subr.mxu0 0.0
        %2279 = vmatpush1.msra.mxu0 0.0
        %2280 = vmatprep.subr.mxu0 0.0
        %2281 = vmatpush1.msra.mxu0 0.0
        %2282 = vmatprep.subr.mxu0 0.0
        %2283 = vmatpush1.msra.mxu0 0.0
        %2284 = vmatprep.subr.mxu0 0.0
        %2285 = vmatpush1.msra.mxu0 0.0
        %2286 = vmatprep.subr.mxu0 0.0
        %2287 = vmatpush1.msra.mxu0 0.0
        %2288 = vmatprep.subr.mxu0 0.0
        %2289 = vmatpush1.msra.mxu0 0.0
        %2290 = vmatprep.subr.mxu0 0.0
        %2291 = vmatpush1.msra.mxu0 0.0
        %2292 = vmatprep.subr.mxu0 0.0
        %2293 = vmatpush1.msra.mxu0 0.0
        %2294 = vmatprep.subr.mxu0 0.0
        %2295 = vmatpush1.msra.mxu0 0.0
        %2296 = vmatprep.subr.mxu0 0.0
        %2297 = vmatpush1.msra.mxu0 0.0
        %2298 = vmatprep.subr.mxu0 0.0
        %2299 = vmatpush1.msra.mxu0 0.0
        %2300 = vmatprep.subr.mxu0 0.0
        %2301 = vmatpush1.msra.mxu0 0.0
        %2302 = vmatprep.subr.mxu0 0.0
        %2303 = vmatpush1.msra.mxu0 0.0
        %2304 = vmatprep.subr.mxu0 0.0
        %2305 = vmatpush1.msra.mxu0 0.0
        %2306 = vmatprep.subr.mxu0 0.0
        %2307 = vmatpush1.msra.mxu0 0.0
        %2308 = vmatprep.subr.mxu0 0.0
        %2309 = vmatpush1.msra.mxu0 0.0
        %2310 = vmatprep.subr.mxu0 0.0
        %2311 = vmatpush1.msra.mxu0 0.0
        %2312 = vmatprep.subr.mxu0 0.0
        %2313 = vmatpush1.msra.mxu0 0.0
        %2314 = vmatprep.subr.mxu0 0.0
        %2315 = vmatpush1.msra.mxu0 0.0
        %2316 = vmatprep.subr.mxu0 0.0
        %2317 = vmatpush1.msra.mxu0 0.0
        %2318 = vmatprep.subr.mxu0 0.0
        %2319 = vmatpush1.msra.mxu0 0.0
        %2320 = vmatprep.subr.mxu0 0.0
        %2321 = vmatpush1.msra.mxu0 0.0
        %2322 = vmatprep.subr.mxu0 0.0
        %2323 = vmatpush1.msra.mxu0 0.0
        %2324 = vmatprep.subr.mxu0 0.0
        %2325 = vmatpush1.msra.mxu0 0.0
        %2326 = vmatprep.mubr.f32.mxu0 0.0
        %2327 = vmatmul.mubr.f32.gmra.mrb[0].mxu0 %v2254
        %v2328 = vpop.f32.mrb[0].mxu0
        %v2329 = vadd.f32 %v2252, %v2328
        %v2330 = vpop.f32.mrb[0].mxu0
        %2331 = vmatprep.mubr.f32.mxu0 0.0
        %2332 = vmatmul.mubr.f32.gmra.mrb[0].mxu0 %v2257
        %v2333 = vpop.f32.mrb[0].mxu0
        %v2334 = vadd.f32 %v2252, %v2333
        %v2335 = vpop.f32.mrb[0].mxu0
        %2336 = vmatprep.mubr.f32.mxu0 0.0
        %2337 = vmatmul.mubr.f32.gmra.mrb[0].mxu0 %v2260
        %v2338 = vpop.f32.mrb[0].mxu0
        %v2339 = vadd.f32 %v2252, %v2338
        %v2340 = vpop.f32.mrb[0].mxu0
        %2341 = vdwg.mxu0
        %s2342 = scalar_lea.vmem %s5, 40
        %v2343 = vld [vmem:[%s2342 + $0x20] sm:$0x1]
        %2347 = vrot.lane.b32.xlu0 %v2329, 96
        %v2348 = vpop.permute.xlu0 %2347
        %2349 = vrot.lane.b32.xlu0 %v2334, 96
        %v2350 = vpop.permute.xlu0 %2349
        %2351 = vrot.lane.b32.xlu0 %v2339, 96
        %v2352 = vpop.permute.xlu0 %2351
        %v2353 = vsel %vm600, %v2329, 0
        %v2355 = vsel %vm600, %v2334, 0
        %v2357 = vsel %vm600, %v2339, 0
        %v2359 = vsel %vm600, %v2348, 0
        %v2361 = vsel %vm600, %v2350, 0
        %v2363 = vsel %vm600, %v2352, 0
        %2365 = vmatprep.subr.mxu0 0.0
        %2366 = vmatpush1.xpose.msra.mxu0 %v2359
        %2367 = vmatprep.subr.mxu0 0.0
        %2368 = vmatpush1.xpose.msra.mxu0 %v2361
        %2369 = vmatprep.subr.mxu0 0.0
        %2370 = vmatpush1.xpose.msra.mxu0 %v2363
        %2371 = vmatprep.subr.mxu0 0.0
        %2372 = vmatpush1.xpose.msra.mxu0 0.0
        %2373 = vmatprep.subr.mxu0 0.0
        %2374 = vmatpush1.xpose.msra.mxu0 0.0
        %2375 = vmatprep.subr.mxu0 0.0
        %2376 = vmatpush1.xpose.msra.mxu0 0.0
        %2377 = vmatprep.subr.mxu0 0.0
        %2378 = vmatpush1.xpose.msra.mxu0 0.0
        %2379 = vmatprep.subr.mxu0 0.0
        %2380 = vmatpush1.xpose.msra.mxu0 0.0
        %2381 = vmatprep.subr.mxu0 0.0
        %2382 = vmatpush1.xpose.msra.mxu0 0.0
        %2383 = vmatprep.subr.mxu0 0.0
        %2384 = vmatpush1.xpose.msra.mxu0 0.0
        %2385 = vmatprep.subr.mxu0 0.0
        %2386 = vmatpush1.xpose.msra.mxu0 0.0
        %2387 = vmatprep.subr.mxu0 0.0
        %2388 = vmatpush1.xpose.msra.mxu0 0.0
        %2389 = vmatprep.subr.mxu0 0.0
        %2390 = vmatpush1.xpose.msra.mxu0 0.0
        %2391 = vmatprep.subr.mxu0 0.0
        %2392 = vmatpush1.xpose.msra.mxu0 0.0
        %2393 = vmatprep.subr.mxu0 0.0
        %2394 = vmatpush1.xpose.msra.mxu0 0.0
        %2395 = vmatprep.subr.mxu0 0.0
        %2396 = vmatpush1.xpose.msra.mxu0 0.0
        %2397 = vmatprep.subr.mxu0 0.0
        %2398 = vmatpush1.xpose.msra.mxu0 0.0
        %2399 = vmatprep.subr.mxu0 0.0
        %2400 = vmatpush1.xpose.msra.mxu0 0.0
        %2401 = vmatprep.subr.mxu0 0.0
        %2402 = vmatpush1.xpose.msra.mxu0 0.0
        %2403 = vmatprep.subr.mxu0 0.0
        %2404 = vmatpush1.xpose.msra.mxu0 0.0
        %2405 = vmatprep.subr.mxu0 0.0
        %2406 = vmatpush1.xpose.msra.mxu0 0.0
        %2407 = vmatprep.subr.mxu0 0.0
        %2408 = vmatpush1.xpose.msra.mxu0 0.0
        %2409 = vmatprep.subr.mxu0 0.0
        %2410 = vmatpush1.xpose.msra.mxu0 0.0
        %2411 = vmatprep.subr.mxu0 0.0
        %2412 = vmatpush1.xpose.msra.mxu0 0.0
        %2413 = vmatprep.subr.mxu0 0.0
        %2414 = vmatpush1.xpose.msra.mxu0 0.0
        %2415 = vmatprep.subr.mxu0 0.0
        %2416 = vmatpush1.xpose.msra.mxu0 0.0
        %2417 = vmatprep.subr.mxu0 0.0
        %2418 = vmatpush1.xpose.msra.mxu0 0.0
        %2419 = vmatprep.subr.mxu0 0.0
        %2420 = vmatpush1.xpose.msra.mxu0 0.0
        %2421 = vmatprep.subr.mxu0 0.0
        %2422 = vmatpush1.xpose.msra.mxu0 0.0
        %2423 = vmatprep.subr.mxu0 0.0
        %2424 = vmatpush1.xpose.msra.mxu0 0.0
        %2425 = vmatprep.subr.mxu0 0.0
        %2426 = vmatpush1.xpose.msra.mxu0 0.0
        %2427 = vmatprep.subr.mxu0 0.0
        %2428 = vmatpush1.xpose.msra.mxu0 0.0
        %2429 = vmatprep.mubr.f32.mxu0 0.0
        %2430 = vmatmul.mubr.f32.gmra.mrb[0].mxu0 %v2353
        %v2431 = vpop.f32.mrb[0].mxu0
        %v2432 = vadd.f32 0.0, %v2431
        %v2433 = vpop.f32.mrb[0].mxu0
        %2434 = vmatprep.mubr.f32.mxu0 0.0
        %2435 = vmatmul.mubr.f32.gmra.mrb[0].mxu0 %v2355
        %v2436 = vpop.f32.mrb[0].mxu0
        %v2437 = vadd.f32 0.0, %v2436
        %v2438 = vpop.f32.mrb[0].mxu0
        %2439 = vmatprep.mubr.f32.mxu0 0.0
        %2440 = vmatmul.mubr.f32.gmra.mrb[0].mxu0 %v2357
        %v2441 = vpop.f32.mrb[0].mxu0
        %v2442 = vadd.f32 0.0, %v2441
        %v2443 = vpop.f32.mrb[0].mxu0
        %2444 = vdwg.mxu0
        %v2445 = vsel %vm693, %v2432, -inf
        %2446 = vmax.xlane.f32.xlu0 %v2445
        %v2447 = vpop.xlane.xlu0 %2446
        %v2448 = vsel %vm693, %v2437, -inf
        %2449 = vmax.xlane.f32.xlu0 %v2448
        %v2450 = vpop.xlane.xlu0 %2449
        %v2451 = vsel %vm700, %v2442, -inf
        %2452 = vmax.xlane.f32.xlu0 %v2451
        %v2453 = vpop.xlane.xlu0 %2452
        %v2454 = vsub.f32 %v2432, %v2447
        %v2455 = vsub.f32 %v2437, %v2450
        %v2456 = vsub.f32 %v2442, %v2453
        %v2457 = vmul.f32 %v2454, 1.442695
        %v2458 = vpow.pop %v2457
        %v2459 = vmul.f32 %v2455, 1.442695
        %v2460 = vpow.pop %v2459
        %v2461 = vmul.f32 %v2456, 1.442695
        %v2462 = vpow.pop %v2461
        %v2463 = vsel %vm693, %v2458, 0.0
        %2464 = vadd.xlane.f32.xlu0 %v2463
        %v2465 = vpop.xlane.xlu0 %2464
        %v2466 = vsel %vm693, %v2460, 0.0
        %2467 = vadd.xlane.f32.xlu0 %v2466
        %v2468 = vpop.xlane.xlu0 %2467
        %v2469 = vsel %vm700, %v2462, 0.0
        %2470 = vadd.xlane.f32.xlu0 %v2469
        %v2471 = vpop.xlane.xlu0 %2470
        %v2472 = vrcp.pop %v2465
        %v2473 = vrcp.pop %v2468
        %v2474 = vrcp.pop %v2471
        %v2475 = vmul.f32 %v2458, %v2472
        %v2476 = vmul.f32 %v2460, %v2473
        %v2477 = vmul.f32 %v2462, %v2474
        %2478 = vrot.lane.b32.xlu0 %v2329, 64
        %v2479 = vpop.permute.xlu0 %2478
        %2480 = vrot.lane.b32.xlu0 %v2334, 64
        %v2481 = vpop.permute.xlu0 %2480
        %2482 = vrot.lane.b32.xlu0 %v2339, 64
        %v2483 = vpop.permute.xlu0 %2482
        %v2487 = vsel %vm693, %v2475, 0
        %v2490 = vsel %vm693, %v2476, 0
        %v2493 = vsel %vm693, %v2477, 0
        %v2495 = vsel %vm745, %v2483, 0
        %2497 = vmatprep.subr.mxu0 0.0
        %2498 = vmatpush1.msra.mxu0 %v2479
        %2499 = vmatprep.subr.mxu0 0.0
        %2500 = vmatpush1.msra.mxu0 %v2481
        %2501 = vmatprep.subr.mxu0 0.0
        %2502 = vmatpush1.msra.mxu0 %v2495
        %2503 = vmatprep.subr.mxu0 0.0
        %2504 = vmatpush1.msra.mxu0 0.0
        %2505 = vmatprep.subr.mxu0 0.0
        %2506 = vmatpush1.msra.mxu0 0.0
        %2507 = vmatprep.subr.mxu0 0.0
        %2508 = vmatpush1.msra.mxu0 0.0
        %2509 = vmatprep.subr.mxu0 0.0
        %2510 = vmatpush1.msra.mxu0 0.0
        %2511 = vmatprep.subr.mxu0 0.0
        %2512 = vmatpush1.msra.mxu0 0.0
        %2513 = vmatprep.subr.mxu0 0.0
        %2514 = vmatpush1.msra.mxu0 0.0
        %2515 = vmatprep.subr.mxu0 0.0
        %2516 = vmatpush1.msra.mxu0 0.0
        %2517 = vmatprep.subr.mxu0 0.0
        %2518 = vmatpush1.msra.mxu0 0.0
        %2519 = vmatprep.subr.mxu0 0.0
        %2520 = vmatpush1.msra.mxu0 0.0
        %2521 = vmatprep.subr.mxu0 0.0
        %2522 = vmatpush1.msra.mxu0 0.0
        %2523 = vmatprep.subr.mxu0 0.0
        %2524 = vmatpush1.msra.mxu0 0.0
        %2525 = vmatprep.subr.mxu0 0.0
        %2526 = vmatpush1.msra.mxu0 0.0
        %2527 = vmatprep.subr.mxu0 0.0
        %2528 = vmatpush1.msra.mxu0 0.0
        %2529 = vmatprep.subr.mxu0 0.0
        %2530 = vmatpush1.msra.mxu0 0.0
        %2531 = vmatprep.subr.mxu0 0.0
        %2532 = vmatpush1.msra.mxu0 0.0
        %2533 = vmatprep.subr.mxu0 0.0
        %2534 = vmatpush1.msra.mxu0 0.0
        %2535 = vmatprep.subr.mxu0 0.0
        %2536 = vmatpush1.msra.mxu0 0.0
        %2537 = vmatprep.subr.mxu0 0.0
        %2538 = vmatpush1.msra.mxu0 0.0
        %2539 = vmatprep.subr.mxu0 0.0
        %2540 = vmatpush1.msra.mxu0 0.0
        %2541 = vmatprep.subr.mxu0 0.0
        %2542 = vmatpush1.msra.mxu0 0.0
        %2543 = vmatprep.subr.mxu0 0.0
        %2544 = vmatpush1.msra.mxu0 0.0
        %2545 = vmatprep.subr.mxu0 0.0
        %2546 = vmatpush1.msra.mxu0 0.0
        %2547 = vmatprep.subr.mxu0 0.0
        %2548 = vmatpush1.msra.mxu0 0.0
        %2549 = vmatprep.subr.mxu0 0.0
        %2550 = vmatpush1.msra.mxu0 0.0
        %2551 = vmatprep.subr.mxu0 0.0
        %2552 = vmatpush1.msra.mxu0 0.0
        %2553 = vmatprep.subr.mxu0 0.0
        %2554 = vmatpush1.msra.mxu0 0.0
        %2555 = vmatprep.subr.mxu0 0.0
        %2556 = vmatpush1.msra.mxu0 0.0
        %2557 = vmatprep.subr.mxu0 0.0
        %2558 = vmatpush1.msra.mxu0 0.0
        %2559 = vmatprep.subr.mxu0 0.0
        %2560 = vmatpush1.msra.mxu0 0.0
        %2561 = vmatprep.mubr.f32.mxu0 0.0
        %2562 = vmatmul.mubr.f32.gmra.mrb[0].mxu0 %v2487
        %v2563 = vpop.f32.mrb[0].mxu0
        %v2564 = vadd.f32 0.0, %v2563
        %v2565 = vpop.f32.mrb[0].mxu0
        %2566 = vmatprep.mubr.f32.mxu0 0.0
        %2567 = vmatmul.mubr.f32.gmra.mrb[0].mxu0 %v2490
        %v2568 = vpop.f32.mrb[0].mxu0
        %v2569 = vadd.f32 0.0, %v2568
        %v2570 = vpop.f32.mrb[0].mxu0
        %2571 = vmatprep.mubr.f32.mxu0 0.0
        %2572 = vmatmul.mubr.f32.gmra.mrb[0].mxu0 %v2493
        %v2573 = vpop.f32.mrb[0].mxu0
        %v2574 = vadd.f32 0.0, %v2573
        %v2575 = vpop.f32.mrb[0].mxu0
        %2576 = vdwg.mxu0
        %v2577 = vld [vmem:[%s2342] sm:$0xff]
        %v2579 = vsel %vm600, %v2564, 0
        %v2582 = vsel %vm600, %v2569, 0
        %v2585 = vsel %vm600, %v2574, 0
        %2587 = vmatprep.subr.mxu0 0.0
        %2588 = vmatpush1.msra.mxu0 %v2577
        %2589 = vmatprep.subr.mxu0 0.0
        %2590 = vmatpush1.msra.mxu0 0.0
        %2591 = vmatprep.subr.mxu0 0.0
        %2592 = vmatpush1.msra.mxu0 0.0
        %2593 = vmatprep.subr.mxu0 0.0
        %2594 = vmatpush1.msra.mxu0 0.0
        %2595 = vmatprep.subr.mxu0 0.0
        %2596 = vmatpush1.msra.mxu0 0.0
        %2597 = vmatprep.subr.mxu0 0.0
        %2598 = vmatpush1.msra.mxu0 0.0
        %2599 = vmatprep.subr.mxu0 0.0
        %2600 = vmatpush1.msra.mxu0 0.0
        %2601 = vmatprep.subr.mxu0 0.0
        %2602 = vmatpush1.msra.mxu0 0.0
        %2603 = vmatprep.subr.mxu0 0.0
        %2604 = vmatpush1.msra.mxu0 0.0
        %2605 = vmatprep.subr.mxu0 0.0
        %2606 = vmatpush1.msra.mxu0 0.0
        %2607 = vmatprep.subr.mxu0 0.0
        %2608 = vmatpush1.msra.mxu0 0.0
        %2609 = vmatprep.subr.mxu0 0.0
        %2610 = vmatpush1.msra.mxu0 0.0
        %2611 = vmatprep.subr.mxu0 0.0
        %2612 = vmatpush1.msra.mxu0 0.0
        %2613 = vmatprep.subr.mxu0 0.0
        %2614 = vmatpush1.msra.mxu0 0.0
        %2615 = vmatprep.subr.mxu0 0.0
        %2616 = vmatpush1.msra.mxu0 0.0
        %2617 = vmatprep.subr.mxu0 0.0
        %2618 = vmatpush1.msra.mxu0 0.0
        %2619 = vmatprep.subr.mxu0 0.0
        %2620 = vmatpush1.msra.mxu0 0.0
        %2621 = vmatprep.subr.mxu0 0.0
        %2622 = vmatpush1.msra.mxu0 0.0
        %2623 = vmatprep.subr.mxu0 0.0
        %2624 = vmatpush1.msra.mxu0 0.0
        %2625 = vmatprep.subr.mxu0 0.0
        %2626 = vmatpush1.msra.mxu0 0.0
        %2627 = vmatprep.subr.mxu0 0.0
        %2628 = vmatpush1.msra.mxu0 0.0
        %2629 = vmatprep.subr.mxu0 0.0
        %2630 = vmatpush1.msra.mxu0 0.0
        %2631 = vmatprep.subr.mxu0 0.0
        %2632 = vmatpush1.msra.mxu0 0.0
        %2633 = vmatprep.subr.mxu0 0.0
        %2634 = vmatpush1.msra.mxu0 0.0
        %2635 = vmatprep.subr.mxu0 0.0
        %2636 = vmatpush1.msra.mxu0 0.0
        %2637 = vmatprep.subr.mxu0 0.0
        %2638 = vmatpush1.msra.mxu0 0.0
        %2639 = vmatprep.subr.mxu0 0.0
        %2640 = vmatpush1.msra.mxu0 0.0
        %2641 = vmatprep.subr.mxu0 0.0
        %2642 = vmatpush1.msra.mxu0 0.0
        %2643 = vmatprep.subr.mxu0 0.0
        %2644 = vmatpush1.msra.mxu0 0.0
        %2645 = vmatprep.subr.mxu0 0.0
        %2646 = vmatpush1.msra.mxu0 0.0
        %2647 = vmatprep.subr.mxu0 0.0
        %2648 = vmatpush1.msra.mxu0 0.0
        %2649 = vmatprep.subr.mxu0 0.0
        %2650 = vmatpush1.msra.mxu0 0.0
        %2651 = vmatprep.mubr.f32.mxu0 0.0
        %2652 = vmatmul.mubr.f32.gmra.mrb[0].mxu0 %v2579
        %v2653 = vpop.f32.mrb[0].mxu0
        %v2654 = vadd.f32 0.0, %v2653
        %v2655 = vpop.f32.mrb[0].mxu0
        %2656 = vmatprep.mubr.f32.mxu0 0.0
        %2657 = vmatmul.mubr.f32.gmra.mrb[0].mxu0 %v2582
        %v2658 = vpop.f32.mrb[0].mxu0
        %v2659 = vadd.f32 0.0, %v2658
        %v2660 = vpop.f32.mrb[0].mxu0
        %2661 = vmatprep.mubr.f32.mxu0 0.0
        %2662 = vmatmul.mubr.f32.gmra.mrb[0].mxu0 %v2585
        %v2663 = vpop.f32.mrb[0].mxu0
        %v2664 = vadd.f32 0.0, %v2663
        %v2665 = vpop.f32.mrb[0].mxu0
        %2666 = vdwg.mxu0
        %v2667 = vlaneseq
        %v2668 = vshrl.u32 %v2667, 7
        %v2669 = vsub.s32 0, %v2668
        %v2670 = vrot.slane %v2343, %v2669
        %v2671 = vadd.f32 %v2670, %v2654
        %v2672 = vadd.f32 %v2670, %v2659
        %v2673 = vadd.f32 %v2670, %v2664
        %2674 = vrot.lane.b32.xlu0 %v2329, 120
        %v2675 = vpop.permute.xlu0 %2674
        %2676 = vrot.lane.b32.xlu0 %v2334, 120
        %v2677 = vpop.permute.xlu0 %2676
        %2678 = vrot.lane.b32.xlu0 %v2339, 120
        %v2679 = vpop.permute.xlu0 %2678
        %2680 = vrot.lane.b32.xlu0 %v2329, 88
        %v2681 = vpop.permute.xlu0 %2680
        %2682 = vrot.lane.b32.xlu0 %v2334, 88
        %v2683 = vpop.permute.xlu0 %2682
        %2684 = vrot.lane.b32.xlu0 %v2339, 88
        %v2685 = vpop.permute.xlu0 %2684
        %v2686 = vsel %vm600, %v2675, 0
        %v2688 = vsel %vm600, %v2677, 0
        %v2690 = vsel %vm600, %v2679, 0
        %v2692 = vsel %vm600, %v2681, 0
        %v2694 = vsel %vm600, %v2683, 0
        %v2696 = vsel %vm600, %v2685, 0
        %2698 = vmatprep.subr.mxu0 0.0
        %2699 = vmatpush1.xpose.msra.mxu0 %v2692
        %2700 = vmatprep.subr.mxu0 0.0
        %2701 = vmatpush1.xpose.msra.mxu0 %v2694
        %2702 = vmatprep.subr.mxu0 0.0
        %2703 = vmatpush1.xpose.msra.mxu0 %v2696
        %2704 = vmatprep.subr.mxu0 0.0
        %2705 = vmatpush1.xpose.msra.mxu0 0.0
        %2706 = vmatprep.subr.mxu0 0.0
        %2707 = vmatpush1.xpose.msra.mxu0 0.0
        %2708 = vmatprep.subr.mxu0 0.0
        %2709 = vmatpush1.xpose.msra.mxu0 0.0
        %2710 = vmatprep.subr.mxu0 0.0
        %2711 = vmatpush1.xpose.msra.mxu0 0.0
        %2712 = vmatprep.subr.mxu0 0.0
        %2713 = vmatpush1.xpose.msra.mxu0 0.0
        %2714 = vmatprep.subr.mxu0 0.0
        %2715 = vmatpush1.xpose.msra.mxu0 0.0
        %2716 = vmatprep.subr.mxu0 0.0
        %2717 = vmatpush1.xpose.msra.mxu0 0.0
        %2718 = vmatprep.subr.mxu0 0.0
        %2719 = vmatpush1.xpose.msra.mxu0 0.0
        %2720 = vmatprep.subr.mxu0 0.0
        %2721 = vmatpush1.xpose.msra.mxu0 0.0
        %2722 = vmatprep.subr.mxu0 0.0
        %2723 = vmatpush1.xpose.msra.mxu0 0.0
        %2724 = vmatprep.subr.mxu0 0.0
        %2725 = vmatpush1.xpose.msra.mxu0 0.0
        %2726 = vmatprep.subr.mxu0 0.0
        %2727 = vmatpush1.xpose.msra.mxu0 0.0
        %2728 = vmatprep.subr.mxu0 0.0
        %2729 = vmatpush1.xpose.msra.mxu0 0.0
        %2730 = vmatprep.subr.mxu0 0.0
        %2731 = vmatpush1.xpose.msra.mxu0 0.0
        %2732 = vmatprep.subr.mxu0 0.0
        %2733 = vmatpush1.xpose.msra.mxu0 0.0
        %2734 = vmatprep.subr.mxu0 0.0
        %2735 = vmatpush1.xpose.msra.mxu0 0.0
        %2736 = vmatprep.subr.mxu0 0.0
        %2737 = vmatpush1.xpose.msra.mxu0 0.0
        %2738 = vmatprep.subr.mxu0 0.0
        %2739 = vmatpush1.xpose.msra.mxu0 0.0
        %2740 = vmatprep.subr.mxu0 0.0
        %2741 = vmatpush1.xpose.msra.mxu0 0.0
        %2742 = vmatprep.subr.mxu0 0.0
        %2743 = vmatpush1.xpose.msra.mxu0 0.0
        %2744 = vmatprep.subr.mxu0 0.0
        %2745 = vmatpush1.xpose.msra.mxu0 0.0
        %2746 = vmatprep.subr.mxu0 0.0
        %2747 = vmatpush1.xpose.msra.mxu0 0.0
        %2748 = vmatprep.subr.mxu0 0.0
        %2749 = vmatpush1.xpose.msra.mxu0 0.0
        %2750 = vmatprep.subr.mxu0 0.0
        %2751 = vmatpush1.xpose.msra.mxu0 0.0
        %2752 = vmatprep.subr.mxu0 0.0
        %2753 = vmatpush1.xpose.msra.mxu0 0.0
        %2754 = vmatprep.subr.mxu0 0.0
        %2755 = vmatpush1.xpose.msra.mxu0 0.0
        %2756 = vmatprep.subr.mxu0 0.0
        %2757 = vmatpush1.xpose.msra.mxu0 0.0
        %2758 = vmatprep.subr.mxu0 0.0
        %2759 = vmatpush1.xpose.msra.mxu0 0.0
        %2760 = vmatprep.subr.mxu0 0.0
        %2761 = vmatpush1.xpose.msra.mxu0 0.0
        %2762 = vmatprep.mubr.f32.mxu0 0.0
        %2763 = vmatmul.mubr.f32.gmra.mrb[0].mxu0 %v2686
        %v2764 = vpop.f32.mrb[0].mxu0
        %v2765 = vadd.f32 0.0, %v2764
        %v2766 = vpop.f32.mrb[0].mxu0
        %2767 = vmatprep.mubr.f32.mxu0 0.0
        %2768 = vmatmul.mubr.f32.gmra.mrb[0].mxu0 %v2688
        %v2769 = vpop.f32.mrb[0].mxu0
        %v2770 = vadd.f32 0.0, %v2769
        %v2771 = vpop.f32.mrb[0].mxu0
        %2772 = vmatprep.mubr.f32.mxu0 0.0
        %2773 = vmatmul.mubr.f32.gmra.mrb[0].mxu0 %v2690
        %v2774 = vpop.f32.mrb[0].mxu0
        %v2775 = vadd.f32 0.0, %v2774
        %v2776 = vpop.f32.mrb[0].mxu0
        %2777 = vdwg.mxu0
        %v2778 = vsel %vm693, %v2765, -inf
        %2779 = vmax.xlane.f32.xlu0 %v2778
        %v2780 = vpop.xlane.xlu0 %2779
        %v2781 = vsel %vm693, %v2770, -inf
        %2782 = vmax.xlane.f32.xlu0 %v2781
        %v2783 = vpop.xlane.xlu0 %2782
        %v2784 = vsel %vm700, %v2775, -inf
        %2785 = vmax.xlane.f32.xlu0 %v2784
        %v2786 = vpop.xlane.xlu0 %2785
        %v2787 = vsub.f32 %v2765, %v2780
        %v2788 = vsub.f32 %v2770, %v2783
        %v2789 = vsub.f32 %v2775, %v2786
        %v2790 = vmul.f32 %v2787, 1.442695
        %v2791 = vpow.pop %v2790
        %v2792 = vmul.f32 %v2788, 1.442695
        %v2793 = vpow.pop %v2792
        %v2794 = vmul.f32 %v2789, 1.442695
        %v2795 = vpow.pop %v2794
        %v2796 = vsel %vm693, %v2791, 0.0
        %2797 = vadd.xlane.f32.xlu0 %v2796
        %v2798 = vpop.xlane.xlu0 %2797
        %v2799 = vsel %vm693, %v2793, 0.0
        %2800 = vadd.xlane.f32.xlu0 %v2799
        %v2801 = vpop.xlane.xlu0 %2800
        %v2802 = vsel %vm700, %v2795, 0.0
        %2803 = vadd.xlane.f32.xlu0 %v2802
        %v2804 = vpop.xlane.xlu0 %2803
        %v2805 = vrcp.pop %v2798
        %v2806 = vrcp.pop %v2801
        %v2807 = vrcp.pop %v2804
        %v2808 = vmul.f32 %v2791, %v2805
        %v2809 = vmul.f32 %v2793, %v2806
        %v2810 = vmul.f32 %v2795, %v2807
        %2811 = vrot.lane.b32.xlu0 %v2329, 56
        %v2812 = vpop.permute.xlu0 %2811
        %2813 = vrot.lane.b32.xlu0 %v2334, 56
        %v2814 = vpop.permute.xlu0 %2813
        %2815 = vrot.lane.b32.xlu0 %v2339, 56
        %v2816 = vpop.permute.xlu0 %2815
        %v2820 = vsel %vm693, %v2808, 0
        %v2823 = vsel %vm693, %v2809, 0
        %v2826 = vsel %vm693, %v2810, 0
        %v2828 = vsel %vm745, %v2816, 0
        %2830 = vmatprep.subr.mxu0 0.0
        %2831 = vmatpush1.msra.mxu0 %v2812
        %2832 = vmatprep.subr.mxu0 0.0
        %2833 = vmatpush1.msra.mxu0 %v2814
        %2834 = vmatprep.subr.mxu0 0.0
        %2835 = vmatpush1.msra.mxu0 %v2828
        %2836 = vmatprep.subr.mxu0 0.0
        %2837 = vmatpush1.msra.mxu0 0.0
        %2838 = vmatprep.subr.mxu0 0.0
        %2839 = vmatpush1.msra.mxu0 0.0
        %2840 = vmatprep.subr.mxu0 0.0
        %2841 = vmatpush1.msra.mxu0 0.0
        %2842 = vmatprep.subr.mxu0 0.0
        %2843 = vmatpush1.msra.mxu0 0.0
        %2844 = vmatprep.subr.mxu0 0.0
        %2845 = vmatpush1.msra.mxu0 0.0
        %2846 = vmatprep.subr.mxu0 0.0
        %2847 = vmatpush1.msra.mxu0 0.0
        %2848 = vmatprep.subr.mxu0 0.0
        %2849 = vmatpush1.msra.mxu0 0.0
        %2850 = vmatprep.subr.mxu0 0.0
        %2851 = vmatpush1.msra.mxu0 0.0
        %2852 = vmatprep.subr.mxu0 0.0
        %2853 = vmatpush1.msra.mxu0 0.0
        %2854 = vmatprep.subr.mxu0 0.0
        %2855 = vmatpush1.msra.mxu0 0.0
        %2856 = vmatprep.subr.mxu0 0.0
        %2857 = vmatpush1.msra.mxu0 0.0
        %2858 = vmatprep.subr.mxu0 0.0
        %2859 = vmatpush1.msra.mxu0 0.0
        %2860 = vmatprep.subr.mxu0 0.0
        %2861 = vmatpush1.msra.mxu0 0.0
        %2862 = vmatprep.subr.mxu0 0.0
        %2863 = vmatpush1.msra.mxu0 0.0
        %2864 = vmatprep.subr.mxu0 0.0
        %2865 = vmatpush1.msra.mxu0 0.0
        %2866 = vmatprep.subr.mxu0 0.0
        %2867 = vmatpush1.msra.mxu0 0.0
        %2868 = vmatprep.subr.mxu0 0.0
        %2869 = vmatpush1.msra.mxu0 0.0
        %2870 = vmatprep.subr.mxu0 0.0
        %2871 = vmatpush1.msra.mxu0 0.0
        %2872 = vmatprep.subr.mxu0 0.0
        %2873 = vmatpush1.msra.mxu0 0.0
        %2874 = vmatprep.subr.mxu0 0.0
        %2875 = vmatpush1.msra.mxu0 0.0
        %2876 = vmatprep.subr.mxu0 0.0
        %2877 = vmatpush1.msra.mxu0 0.0
        %2878 = vmatprep.subr.mxu0 0.0
        %2879 = vmatpush1.msra.mxu0 0.0
        %2880 = vmatprep.subr.mxu0 0.0
        %2881 = vmatpush1.msra.mxu0 0.0
        %2882 = vmatprep.subr.mxu0 0.0
        %2883 = vmatpush1.msra.mxu0 0.0
        %2884 = vmatprep.subr.mxu0 0.0
        %2885 = vmatpush1.msra.mxu0 0.0
        %2886 = vmatprep.subr.mxu0 0.0
        %2887 = vmatpush1.msra.mxu0 0.0
        %2888 = vmatprep.subr.mxu0 0.0
        %2889 = vmatpush1.msra.mxu0 0.0
        %2890 = vmatprep.subr.mxu0 0.0
        %2891 = vmatpush1.msra.mxu0 0.0
        %2892 = vmatprep.subr.mxu0 0.0
        %2893 = vmatpush1.msra.mxu0 0.0
        %2894 = vmatprep.mubr.f32.mxu0 0.0
        %2895 = vmatmul.mubr.f32.gmra.mrb[0].mxu0 %v2820
        %v2896 = vpop.f32.mrb[0].mxu0
        %v2897 = vadd.f32 0.0, %v2896
        %v2898 = vpop.f32.mrb[0].mxu0
        %2899 = vmatprep.mubr.f32.mxu0 0.0
        %2900 = vmatmul.mubr.f32.gmra.mrb[0].mxu0 %v2823
        %v2901 = vpop.f32.mrb[0].mxu0
        %v2902 = vadd.f32 0.0, %v2901
        %v2903 = vpop.f32.mrb[0].mxu0
        %2904 = vmatprep.mubr.f32.mxu0 0.0
        %2905 = vmatmul.mubr.f32.gmra.mrb[0].mxu0 %v2826
        %v2906 = vpop.f32.mrb[0].mxu0
        %v2907 = vadd.f32 0.0, %v2906
        %v2908 = vpop.f32.mrb[0].mxu0
        %2909 = vdwg.mxu0
        %v2910 = vld [vmem:[%s2342 + $0x8] sm:$0xff]
        %v2912 = vsel %vm600, %v2897, 0
        %v2915 = vsel %vm600, %v2902, 0
        %v2918 = vsel %vm600, %v2907, 0
        %2920 = vmatprep.subr.mxu0 0.0
        %2921 = vmatpush1.msra.mxu0 %v2910
        %2922 = vmatprep.subr.mxu0 0.0
        %2923 = vmatpush1.msra.mxu0 0.0
        %2924 = vmatprep.subr.mxu0 0.0
        %2925 = vmatpush1.msra.mxu0 0.0
        %2926 = vmatprep.subr.mxu0 0.0
        %2927 = vmatpush1.msra.mxu0 0.0
        %2928 = vmatprep.subr.mxu0 0.0
        %2929 = vmatpush1.msra.mxu0 0.0
        %2930 = vmatprep.subr.mxu0 0.0
        %2931 = vmatpush1.msra.mxu0 0.0
        %2932 = vmatprep.subr.mxu0 0.0
        %2933 = vmatpush1.msra.mxu0 0.0
        %2934 = vmatprep.subr.mxu0 0.0
        %2935 = vmatpush1.msra.mxu0 0.0
        %2936 = vmatprep.subr.mxu0 0.0
        %2937 = vmatpush1.msra.mxu0 0.0
        %2938 = vmatprep.subr.mxu0 0.0
        %2939 = vmatpush1.msra.mxu0 0.0
        %2940 = vmatprep.subr.mxu0 0.0
        %2941 = vmatpush1.msra.mxu0 0.0
        %2942 = vmatprep.subr.mxu0 0.0
        %2943 = vmatpush1.msra.mxu0 0.0
        %2944 = vmatprep.subr.mxu0 0.0
        %2945 = vmatpush1.msra.mxu0 0.0
        %2946 = vmatprep.subr.mxu0 0.0
        %2947 = vmatpush1.msra.mxu0 0.0
        %2948 = vmatprep.subr.mxu0 0.0
        %2949 = vmatpush1.msra.mxu0 0.0
        %2950 = vmatprep.subr.mxu0 0.0
        %2951 = vmatpush1.msra.mxu0 0.0
        %2952 = vmatprep.subr.mxu0 0.0
        %2953 = vmatpush1.msra.mxu0 0.0
        %2954 = vmatprep.subr.mxu0 0.0
        %2955 = vmatpush1.msra.mxu0 0.0
        %2956 = vmatprep.subr.mxu0 0.0
        %2957 = vmatpush1.msra.mxu0 0.0
        %2958 = vmatprep.subr.mxu0 0.0
        %2959 = vmatpush1.msra.mxu0 0.0
        %2960 = vmatprep.subr.mxu0 0.0
        %2961 = vmatpush1.msra.mxu0 0.0
        %2962 = vmatprep.subr.mxu0 0.0
        %2963 = vmatpush1.msra.mxu0 0.0
        %2964 = vmatprep.subr.mxu0 0.0
        %2965 = vmatpush1.msra.mxu0 0.0
        %2966 = vmatprep.subr.mxu0 0.0
        %2967 = vmatpush1.msra.mxu0 0.0
        %2968 = vmatprep.subr.mxu0 0.0
        %2969 = vmatpush1.msra.mxu0 0.0
        %2970 = vmatprep.subr.mxu0 0.0
        %2971 = vmatpush1.msra.mxu0 0.0
        %2972 = vmatprep.subr.mxu0 0.0
        %2973 = vmatpush1.msra.mxu0 0.0
        %2974 = vmatprep.subr.mxu0 0.0
        %2975 = vmatpush1.msra.mxu0 0.0
        %2976 = vmatprep.subr.mxu0 0.0
        %2977 = vmatpush1.msra.mxu0 0.0
        %2978 = vmatprep.subr.mxu0 0.0
        %2979 = vmatpush1.msra.mxu0 0.0
        %2980 = vmatprep.subr.mxu0 0.0
        %2981 = vmatpush1.msra.mxu0 0.0
        %2982 = vmatprep.subr.mxu0 0.0
        %2983 = vmatpush1.msra.mxu0 0.0
        %2984 = vmatprep.mubr.f32.mxu0 0.0
        %2985 = vmatmul.mubr.f32.gmra.mrb[0].mxu0 %v2912
        %v2986 = vpop.f32.mrb[0].mxu0
        %v2987 = vadd.f32 0.0, %v2986
        %v2988 = vpop.f32.mrb[0].mxu0
        %2989 = vmatprep.mubr.f32.mxu0 0.0
        %2990 = vmatmul.mubr.f32.gmra.mrb[0].mxu0 %v2915
        %v2991 = vpop.f32.mrb[0].mxu0
        %v2992 = vadd.f32 0.0, %v2991
        %v2993 = vpop.f32.mrb[0].mxu0
        %2994 = vmatprep.mubr.f32.mxu0 0.0
        %2995 = vmatmul.mubr.f32.gmra.mrb[0].mxu0 %v2918
        %v2996 = vpop.f32.mrb[0].mxu0
        %v2997 = vadd.f32 0.0, %v2996
        %v2998 = vpop.f32.mrb[0].mxu0
        %2999 = vdwg.mxu0
        %v3000 = vadd.f32 %v2671, %v2987
        %v3001 = vadd.f32 %v2672, %v2992
        %v3002 = vadd.f32 %v2673, %v2997
        %3003 = vrot.lane.b32.xlu0 %v2329, 112
        %v3004 = vpop.permute.xlu0 %3003
        %3005 = vrot.lane.b32.xlu0 %v2334, 112
        %v3006 = vpop.permute.xlu0 %3005
        %3007 = vrot.lane.b32.xlu0 %v2339, 112
        %v3008 = vpop.permute.xlu0 %3007
        %3009 = vrot.lane.b32.xlu0 %v2329, 80
        %v3010 = vpop.permute.xlu0 %3009
        %3011 = vrot.lane.b32.xlu0 %v2334, 80
        %v3012 = vpop.permute.xlu0 %3011
        %3013 = vrot.lane.b32.xlu0 %v2339, 80
        %v3014 = vpop.permute.xlu0 %3013
        %v3015 = vsel %vm600, %v3004, 0
        %v3017 = vsel %vm600, %v3006, 0
        %v3019 = vsel %vm600, %v3008, 0
        %v3021 = vsel %vm600, %v3010, 0
        %v3023 = vsel %vm600, %v3012, 0
        %v3025 = vsel %vm600, %v3014, 0
        %3027 = vmatprep.subr.mxu0 0.0
        %3028 = vmatpush1.xpose.msra.mxu0 %v3021
        %3029 = vmatprep.subr.mxu0 0.0
        %3030 = vmatpush1.xpose.msra.mxu0 %v3023
        %3031 = vmatprep.subr.mxu0 0.0
        %3032 = vmatpush1.xpose.msra.mxu0 %v3025
        %3033 = vmatprep.subr.mxu0 0.0
        %3034 = vmatpush1.xpose.msra.mxu0 0.0
        %3035 = vmatprep.subr.mxu0 0.0
        %3036 = vmatpush1.xpose.msra.mxu0 0.0
        %3037 = vmatprep.subr.mxu0 0.0
        %3038 = vmatpush1.xpose.msra.mxu0 0.0
        %3039 = vmatprep.subr.mxu0 0.0
        %3040 = vmatpush1.xpose.msra.mxu0 0.0
        %3041 = vmatprep.subr.mxu0 0.0
        %3042 = vmatpush1.xpose.msra.mxu0 0.0
        %3043 = vmatprep.subr.mxu0 0.0
        %3044 = vmatpush1.xpose.msra.mxu0 0.0
        %3045 = vmatprep.subr.mxu0 0.0
        %3046 = vmatpush1.xpose.msra.mxu0 0.0
        %3047 = vmatprep.subr.mxu0 0.0
        %3048 = vmatpush1.xpose.msra.mxu0 0.0
        %3049 = vmatprep.subr.mxu0 0.0
        %3050 = vmatpush1.xpose.msra.mxu0 0.0
        %3051 = vmatprep.subr.mxu0 0.0
        %3052 = vmatpush1.xpose.msra.mxu0 0.0
        %3053 = vmatprep.subr.mxu0 0.0
        %3054 = vmatpush1.xpose.msra.mxu0 0.0
        %3055 = vmatprep.subr.mxu0 0.0
        %3056 = vmatpush1.xpose.msra.mxu0 0.0
        %3057 = vmatprep.subr.mxu0 0.0
        %3058 = vmatpush1.xpose.msra.mxu0 0.0
        %3059 = vmatprep.subr.mxu0 0.0
        %3060 = vmatpush1.xpose.msra.mxu0 0.0
        %3061 = vmatprep.subr.mxu0 0.0
        %3062 = vmatpush1.xpose.msra.mxu0 0.0
        %3063 = vmatprep.subr.mxu0 0.0
        %3064 = vmatpush1.xpose.msra.mxu0 0.0
        %3065 = vmatprep.subr.mxu0 0.0
        %3066 = vmatpush1.xpose.msra.mxu0 0.0
        %3067 = vmatprep.subr.mxu0 0.0
        %3068 = vmatpush1.xpose.msra.mxu0 0.0
        %3069 = vmatprep.subr.mxu0 0.0
        %3070 = vmatpush1.xpose.msra.mxu0 0.0
        %3071 = vmatprep.subr.mxu0 0.0
        %3072 = vmatpush1.xpose.msra.mxu0 0.0
        %3073 = vmatprep.subr.mxu0 0.0
        %3074 = vmatpush1.xpose.msra.mxu0 0.0
        %3075 = vmatprep.subr.mxu0 0.0
        %3076 = vmatpush1.xpose.msra.mxu0 0.0
        %3077 = vmatprep.subr.mxu0 0.0
        %3078 = vmatpush1.xpose.msra.mxu0 0.0
        %3079 = vmatprep.subr.mxu0 0.0
        %3080 = vmatpush1.xpose.msra.mxu0 0.0
        %3081 = vmatprep.subr.mxu0 0.0
        %3082 = vmatpush1.xpose.msra.mxu0 0.0
        %3083 = vmatprep.subr.mxu0 0.0
        %3084 = vmatpush1.xpose.msra.mxu0 0.0
        %3085 = vmatprep.subr.mxu0 0.0
        %3086 = vmatpush1.xpose.msra.mxu0 0.0
        %3087 = vmatprep.subr.mxu0 0.0
        %3088 = vmatpush1.xpose.msra.mxu0 0.0
        %3089 = vmatprep.subr.mxu0 0.0
        %3090 = vmatpush1.xpose.msra.mxu0 0.0
        %3091 = vmatprep.mubr.f32.mxu0 0.0
        %3092 = vmatmul.mubr.f32.gmra.mrb[0].mxu0 %v3015
        %v3093 = vpop.f32.mrb[0].mxu0
        %v3094 = vadd.f32 0.0, %v3093
        %v3095 = vpop.f32.mrb[0].mxu0
        %3096 = vmatprep.mubr.f32.mxu0 0.0
        %3097 = vmatmul.mubr.f32.gmra.mrb[0].mxu0 %v3017
        %v3098 = vpop.f32.mrb[0].mxu0
        %v3099 = vadd.f32 0.0, %v3098
        %v3100 = vpop.f32.mrb[0].mxu0
        %3101 = vmatprep.mubr.f32.mxu0 0.0
        %3102 = vmatmul.mubr.f32.gmra.mrb[0].mxu0 %v3019
        %v3103 = vpop.f32.mrb[0].mxu0
        %v3104 = vadd.f32 0.0, %v3103
        %v3105 = vpop.f32.mrb[0].mxu0
        %3106 = vdwg.mxu0
        %v3107 = vsel %vm693, %v3094, -inf
        %3108 = vmax.xlane.f32.xlu0 %v3107
        %v3109 = vpop.xlane.xlu0 %3108
        %v3110 = vsel %vm693, %v3099, -inf
        %3111 = vmax.xlane.f32.xlu0 %v3110
        %v3112 = vpop.xlane.xlu0 %3111
        %v3113 = vsel %vm700, %v3104, -inf
        %3114 = vmax.xlane.f32.xlu0 %v3113
        %v3115 = vpop.xlane.xlu0 %3114
        %v3116 = vsub.f32 %v3094, %v3109
        %v3117 = vsub.f32 %v3099, %v3112
        %v3118 = vsub.f32 %v3104, %v3115
        %v3119 = vmul.f32 %v3116, 1.442695
        %v3120 = vpow.pop %v3119
        %v3121 = vmul.f32 %v3117, 1.442695
        %v3122 = vpow.pop %v3121
        %v3123 = vmul.f32 %v3118, 1.442695
        %v3124 = vpow.pop %v3123
        %v3125 = vsel %vm693, %v3120, 0.0
        %3126 = vadd.xlane.f32.xlu0 %v3125
        %v3127 = vpop.xlane.xlu0 %3126
        %v3128 = vsel %vm693, %v3122, 0.0
        %3129 = vadd.xlane.f32.xlu0 %v3128
        %v3130 = vpop.xlane.xlu0 %3129
        %v3131 = vsel %vm700, %v3124, 0.0
        %3132 = vadd.xlane.f32.xlu0 %v3131
        %v3133 = vpop.xlane.xlu0 %3132
        %v3134 = vrcp.pop %v3127
        %v3135 = vrcp.pop %v3130
        %v3136 = vrcp.pop %v3133
        %v3137 = vmul.f32 %v3120, %v3134
        %v3138 = vmul.f32 %v3122, %v3135
        %v3139 = vmul.f32 %v3124, %v3136
        %3140 = vrot.lane.b32.xlu0 %v2329, 48
        %v3141 = vpop.permute.xlu0 %3140
        %3142 = vrot.lane.b32.xlu0 %v2334, 48
        %v3143 = vpop.permute.xlu0 %3142
        %3144 = vrot.lane.b32.xlu0 %v2339, 48
        %v3145 = vpop.permute.xlu0 %3144
        %v3149 = vsel %vm693, %v3137, 0
        %v3152 = vsel %vm693, %v3138, 0
        %v3155 = vsel %vm693, %v3139, 0
        %v3157 = vsel %vm745, %v3145, 0
        %3159 = vmatprep.subr.mxu0 0.0
        %3160 = vmatpush1.msra.mxu0 %v3141
        %3161 = vmatprep.subr.mxu0 0.0
        %3162 = vmatpush1.msra.mxu0 %v3143
        %3163 = vmatprep.subr.mxu0 0.0
        %3164 = vmatpush1.msra.mxu0 %v3157
        %3165 = vmatprep.subr.mxu0 0.0
        %3166 = vmatpush1.msra.mxu0 0.0
        %3167 = vmatprep.subr.mxu0 0.0
        %3168 = vmatpush1.msra.mxu0 0.0
        %3169 = vmatprep.subr.mxu0 0.0
        %3170 = vmatpush1.msra.mxu0 0.0
        %3171 = vmatprep.subr.mxu0 0.0
        %3172 = vmatpush1.msra.mxu0 0.0
        %3173 = vmatprep.subr.mxu0 0.0
        %3174 = vmatpush1.msra.mxu0 0.0
        %3175 = vmatprep.subr.mxu0 0.0
        %3176 = vmatpush1.msra.mxu0 0.0
        %3177 = vmatprep.subr.mxu0 0.0
        %3178 = vmatpush1.msra.mxu0 0.0
        %3179 = vmatprep.subr.mxu0 0.0
        %3180 = vmatpush1.msra.mxu0 0.0
        %3181 = vmatprep.subr.mxu0 0.0
        %3182 = vmatpush1.msra.mxu0 0.0
        %3183 = vmatprep.subr.mxu0 0.0
        %3184 = vmatpush1.msra.mxu0 0.0
        %3185 = vmatprep.subr.mxu0 0.0
        %3186 = vmatpush1.msra.mxu0 0.0
        %3187 = vmatprep.subr.mxu0 0.0
        %3188 = vmatpush1.msra.mxu0 0.0
        %3189 = vmatprep.subr.mxu0 0.0
        %3190 = vmatpush1.msra.mxu0 0.0
        %3191 = vmatprep.subr.mxu0 0.0
        %3192 = vmatpush1.msra.mxu0 0.0
        %3193 = vmatprep.subr.mxu0 0.0
        %3194 = vmatpush1.msra.mxu0 0.0
        %3195 = vmatprep.subr.mxu0 0.0
        %3196 = vmatpush1.msra.mxu0 0.0
        %3197 = vmatprep.subr.mxu0 0.0
        %3198 = vmatpush1.msra.mxu0 0.0
        %3199 = vmatprep.subr.mxu0 0.0
        %3200 = vmatpush1.msra.mxu0 0.0
        %3201 = vmatprep.subr.mxu0 0.0
        %3202 = vmatpush1.msra.mxu0 0.0
        %3203 = vmatprep.subr.mxu0 0.0
        %3204 = vmatpush1.msra.mxu0 0.0
        %3205 = vmatprep.subr.mxu0 0.0
        %3206 = vmatpush1.msra.mxu0 0.0
        %3207 = vmatprep.subr.mxu0 0.0
        %3208 = vmatpush1.msra.mxu0 0.0
        %3209 = vmatprep.subr.mxu0 0.0
        %3210 = vmatpush1.msra.mxu0 0.0
        %3211 = vmatprep.subr.mxu0 0.0
        %3212 = vmatpush1.msra.mxu0 0.0
        %3213 = vmatprep.subr.mxu0 0.0
        %3214 = vmatpush1.msra.mxu0 0.0
        %3215 = vmatprep.subr.mxu0 0.0
        %3216 = vmatpush1.msra.mxu0 0.0
        %3217 = vmatprep.subr.mxu0 0.0
        %3218 = vmatpush1.msra.mxu0 0.0
        %3219 = vmatprep.subr.mxu0 0.0
        %3220 = vmatpush1.msra.mxu0 0.0
        %3221 = vmatprep.subr.mxu0 0.0
        %3222 = vmatpush1.msra.mxu0 0.0
        %3223 = vmatprep.mubr.f32.mxu0 0.0
        %3224 = vmatmul.mubr.f32.gmra.mrb[0].mxu0 %v3149
        %v3225 = vpop.f32.mrb[0].mxu0
        %v3226 = vadd.f32 0.0, %v3225
        %v3227 = vpop.f32.mrb[0].mxu0
        %3228 = vmatprep.mubr.f32.mxu0 0.0
        %3229 = vmatmul.mubr.f32.gmra.mrb[0].mxu0 %v3152
        %v3230 = vpop.f32.mrb[0].mxu0
        %v3231 = vadd.f32 0.0, %v3230
        %v3232 = vpop.f32.mrb[0].mxu0
        %3233 = vmatprep.mubr.f32.mxu0 0.0
        %3234 = vmatmul.mubr.f32.gmra.mrb[0].mxu0 %v3155
        %v3235 = vpop.f32.mrb[0].mxu0
        %v3236 = vadd.f32 0.0, %v3235
        %v3237 = vpop.f32.mrb[0].mxu0
        %3238 = vdwg.mxu0
        %v3239 = vld [vmem:[%s2342 + $0x10] sm:$0xff]
        %v3241 = vsel %vm600, %v3226, 0
        %v3244 = vsel %vm600, %v3231, 0
        %v3247 = vsel %vm600, %v3236, 0
        %3249 = vmatprep.subr.mxu0 0.0
        %3250 = vmatpush1.msra.mxu0 %v3239
        %3251 = vmatprep.subr.mxu0 0.0
        %3252 = vmatpush1.msra.mxu0 0.0
        %3253 = vmatprep.subr.mxu0 0.0
        %3254 = vmatpush1.msra.mxu0 0.0
        %3255 = vmatprep.subr.mxu0 0.0
        %3256 = vmatpush1.msra.mxu0 0.0
        %3257 = vmatprep.subr.mxu0 0.0
        %3258 = vmatpush1.msra.mxu0 0.0
        %3259 = vmatprep.subr.mxu0 0.0
        %3260 = vmatpush1.msra.mxu0 0.0
        %3261 = vmatprep.subr.mxu0 0.0
        %3262 = vmatpush1.msra.mxu0 0.0
        %3263 = vmatprep.subr.mxu0 0.0
        %3264 = vmatpush1.msra.mxu0 0.0
        %3265 = vmatprep.subr.mxu0 0.0
        %3266 = vmatpush1.msra.mxu0 0.0
        %3267 = vmatprep.subr.mxu0 0.0
        %3268 = vmatpush1.msra.mxu0 0.0
        %3269 = vmatprep.subr.mxu0 0.0
        %3270 = vmatpush1.msra.mxu0 0.0
        %3271 = vmatprep.subr.mxu0 0.0
        %3272 = vmatpush1.msra.mxu0 0.0
        %3273 = vmatprep.subr.mxu0 0.0
        %3274 = vmatpush1.msra.mxu0 0.0
        %3275 = vmatprep.subr.mxu0 0.0
        %3276 = vmatpush1.msra.mxu0 0.0
        %3277 = vmatprep.subr.mxu0 0.0
        %3278 = vmatpush1.msra.mxu0 0.0
        %3279 = vmatprep.subr.mxu0 0.0
        %3280 = vmatpush1.msra.mxu0 0.0
        %3281 = vmatprep.subr.mxu0 0.0
        %3282 = vmatpush1.msra.mxu0 0.0
        %3283 = vmatprep.subr.mxu0 0.0
        %3284 = vmatpush1.msra.mxu0 0.0
        %3285 = vmatprep.subr.mxu0 0.0
        %3286 = vmatpush1.msra.mxu0 0.0
        %3287 = vmatprep.subr.mxu0 0.0
        %3288 = vmatpush1.msra.mxu0 0.0
        %3289 = vmatprep.subr.mxu0 0.0
        %3290 = vmatpush1.msra.mxu0 0.0
        %3291 = vmatprep.subr.mxu0 0.0
        %3292 = vmatpush1.msra.mxu0 0.0
        %3293 = vmatprep.subr.mxu0 0.0
        %3294 = vmatpush1.msra.mxu0 0.0
        %3295 = vmatprep.subr.mxu0 0.0
        %3296 = vmatpush1.msra.mxu0 0.0
        %3297 = vmatprep.subr.mxu0 0.0
        %3298 = vmatpush1.msra.mxu0 0.0
        %3299 = vmatprep.subr.mxu0 0.0
        %3300 = vmatpush1.msra.mxu0 0.0
        %3301 = vmatprep.subr.mxu0 0.0
        %3302 = vmatpush1.msra.mxu0 0.0
        %3303 = vmatprep.subr.mxu0 0.0
        %3304 = vmatpush1.msra.mxu0 0.0
        %3305 = vmatprep.subr.mxu0 0.0
        %3306 = vmatpush1.msra.mxu0 0.0
        %3307 = vmatprep.subr.mxu0 0.0
        %3308 = vmatpush1.msra.mxu0 0.0
        %3309 = vmatprep.subr.mxu0 0.0
        %3310 = vmatpush1.msra.mxu0 0.0
        %3311 = vmatprep.subr.mxu0 0.0
        %3312 = vmatpush1.msra.mxu0 0.0
        %3313 = vmatprep.mubr.f32.mxu0 0.0
        %3314 = vmatmul.mubr.f32.gmra.mrb[0].mxu0 %v3241
        %v3315 = vpop.f32.mrb[0].mxu0
        %v3316 = vadd.f32 0.0, %v3315
        %v3317 = vpop.f32.mrb[0].mxu0
        %3318 = vmatprep.mubr.f32.mxu0 0.0
        %3319 = vmatmul.mubr.f32.gmra.mrb[0].mxu0 %v3244
        %v3320 = vpop.f32.mrb[0].mxu0
        %v3321 = vadd.f32 0.0, %v3320
        %v3322 = vpop.f32.mrb[0].mxu0
        %3323 = vmatprep.mubr.f32.mxu0 0.0
        %3324 = vmatmul.mubr.f32.gmra.mrb[0].mxu0 %v3247
        %v3325 = vpop.f32.mrb[0].mxu0
        %v3326 = vadd.f32 0.0, %v3325
        %v3327 = vpop.f32.mrb[0].mxu0
        %3328 = vdwg.mxu0
        %v3329 = vadd.f32 %v3000, %v3316
        %v3330 = vadd.f32 %v3001, %v3321
        %v3331 = vadd.f32 %v3002, %v3326
        %3332 = vrot.lane.b32.xlu0 %v2329, 104
        %v3333 = vpop.permute.xlu0 %3332
        %3334 = vrot.lane.b32.xlu0 %v2334, 104
        %v3335 = vpop.permute.xlu0 %3334
        %3336 = vrot.lane.b32.xlu0 %v2339, 104
        %v3337 = vpop.permute.xlu0 %3336
        %3338 = vrot.lane.b32.xlu0 %v2329, 72
        %v3339 = vpop.permute.xlu0 %3338
        %3340 = vrot.lane.b32.xlu0 %v2334, 72
        %v3341 = vpop.permute.xlu0 %3340
        %3342 = vrot.lane.b32.xlu0 %v2339, 72
        %v3343 = vpop.permute.xlu0 %3342
        %v3344 = vsel %vm600, %v3333, 0
        %v3346 = vsel %vm600, %v3335, 0
        %v3348 = vsel %vm600, %v3337, 0
        %v3350 = vsel %vm600, %v3339, 0
        %v3352 = vsel %vm600, %v3341, 0
        %v3354 = vsel %vm600, %v3343, 0
        %3356 = vmatprep.subr.mxu0 0.0
        %3357 = vmatpush1.xpose.msra.mxu0 %v3350
        %3358 = vmatprep.subr.mxu0 0.0
        %3359 = vmatpush1.xpose.msra.mxu0 %v3352
        %3360 = vmatprep.subr.mxu0 0.0
        %3361 = vmatpush1.xpose.msra.mxu0 %v3354
        %3362 = vmatprep.subr.mxu0 0.0
        %3363 = vmatpush1.xpose.msra.mxu0 0.0
        %3364 = vmatprep.subr.mxu0 0.0
        %3365 = vmatpush1.xpose.msra.mxu0 0.0
        %3366 = vmatprep.subr.mxu0 0.0
        %3367 = vmatpush1.xpose.msra.mxu0 0.0
        %3368 = vmatprep.subr.mxu0 0.0
        %3369 = vmatpush1.xpose.msra.mxu0 0.0
        %3370 = vmatprep.subr.mxu0 0.0
        %3371 = vmatpush1.xpose.msra.mxu0 0.0
        %3372 = vmatprep.subr.mxu0 0.0
        %3373 = vmatpush1.xpose.msra.mxu0 0.0
        %3374 = vmatprep.subr.mxu0 0.0
        %3375 = vmatpush1.xpose.msra.mxu0 0.0
        %3376 = vmatprep.subr.mxu0 0.0
        %3377 = vmatpush1.xpose.msra.mxu0 0.0
        %3378 = vmatprep.subr.mxu0 0.0
        %3379 = vmatpush1.xpose.msra.mxu0 0.0
        %3380 = vmatprep.subr.mxu0 0.0
        %3381 = vmatpush1.xpose.msra.mxu0 0.0
        %3382 = vmatprep.subr.mxu0 0.0
        %3383 = vmatpush1.xpose.msra.mxu0 0.0
        %3384 = vmatprep.subr.mxu0 0.0
        %3385 = vmatpush1.xpose.msra.mxu0 0.0
        %3386 = vmatprep.subr.mxu0 0.0
        %3387 = vmatpush1.xpose.msra.mxu0 0.0
        %3388 = vmatprep.subr.mxu0 0.0
        %3389 = vmatpush1.xpose.msra.mxu0 0.0
        %3390 = vmatprep.subr.mxu0 0.0
        %3391 = vmatpush1.xpose.msra.mxu0 0.0
        %3392 = vmatprep.subr.mxu0 0.0
        %3393 = vmatpush1.xpose.msra.mxu0 0.0
        %3394 = vmatprep.subr.mxu0 0.0
        %3395 = vmatpush1.xpose.msra.mxu0 0.0
        %3396 = vmatprep.subr.mxu0 0.0
        %3397 = vmatpush1.xpose.msra.mxu0 0.0
        %3398 = vmatprep.subr.mxu0 0.0
        %3399 = vmatpush1.xpose.msra.mxu0 0.0
        %3400 = vmatprep.subr.mxu0 0.0
        %3401 = vmatpush1.xpose.msra.mxu0 0.0
        %3402 = vmatprep.subr.mxu0 0.0
        %3403 = vmatpush1.xpose.msra.mxu0 0.0
        %3404 = vmatprep.subr.mxu0 0.0
        %3405 = vmatpush1.xpose.msra.mxu0 0.0
        %3406 = vmatprep.subr.mxu0 0.0
        %3407 = vmatpush1.xpose.msra.mxu0 0.0
        %3408 = vmatprep.subr.mxu0 0.0
        %3409 = vmatpush1.xpose.msra.mxu0 0.0
        %3410 = vmatprep.subr.mxu0 0.0
        %3411 = vmatpush1.xpose.msra.mxu0 0.0
        %3412 = vmatprep.subr.mxu0 0.0
        %3413 = vmatpush1.xpose.msra.mxu0 0.0
        %3414 = vmatprep.subr.mxu0 0.0
        %3415 = vmatpush1.xpose.msra.mxu0 0.0
        %3416 = vmatprep.subr.mxu0 0.0
        %3417 = vmatpush1.xpose.msra.mxu0 0.0
        %3418 = vmatprep.subr.mxu0 0.0
        %3419 = vmatpush1.xpose.msra.mxu0 0.0
        %3420 = vmatprep.mubr.f32.mxu0 0.0
        %3421 = vmatmul.mubr.f32.gmra.mrb[0].mxu0 %v3344
        %v3422 = vpop.f32.mrb[0].mxu0
        %v3423 = vadd.f32 0.0, %v3422
        %v3424 = vpop.f32.mrb[0].mxu0
        %3425 = vmatprep.mubr.f32.mxu0 0.0
        %3426 = vmatmul.mubr.f32.gmra.mrb[0].mxu0 %v3346
        %v3427 = vpop.f32.mrb[0].mxu0
        %v3428 = vadd.f32 0.0, %v3427
        %v3429 = vpop.f32.mrb[0].mxu0
        %3430 = vmatprep.mubr.f32.mxu0 0.0
        %3431 = vmatmul.mubr.f32.gmra.mrb[0].mxu0 %v3348
        %v3432 = vpop.f32.mrb[0].mxu0
        %v3433 = vadd.f32 0.0, %v3432
        %v3434 = vpop.f32.mrb[0].mxu0
        %3435 = vdwg.mxu0
        %v3436 = vsel %vm693, %v3423, -inf
        %3437 = vmax.xlane.f32.xlu0 %v3436
        %v3438 = vpop.xlane.xlu0 %3437
        %v3439 = vsel %vm693, %v3428, -inf
        %3440 = vmax.xlane.f32.xlu0 %v3439
        %v3441 = vpop.xlane.xlu0 %3440
        %v3442 = vsel %vm700, %v3433, -inf
        %3443 = vmax.xlane.f32.xlu0 %v3442
        %v3444 = vpop.xlane.xlu0 %3443
        %v3445 = vsub.f32 %v3423, %v3438
        %v3446 = vsub.f32 %v3428, %v3441
        %v3447 = vsub.f32 %v3433, %v3444
        %v3448 = vmul.f32 %v3445, 1.442695
        %v3449 = vpow.pop %v3448
        %v3450 = vmul.f32 %v3446, 1.442695
        %v3451 = vpow.pop %v3450
        %v3452 = vmul.f32 %v3447, 1.442695
        %v3453 = vpow.pop %v3452
        %v3454 = vsel %vm693, %v3449, 0.0
        %3455 = vadd.xlane.f32.xlu0 %v3454
        %v3456 = vpop.xlane.xlu0 %3455
        %v3457 = vsel %vm693, %v3451, 0.0
        %3458 = vadd.xlane.f32.xlu0 %v3457
        %v3459 = vpop.xlane.xlu0 %3458
        %v3460 = vsel %vm700, %v3453, 0.0
        %3461 = vadd.xlane.f32.xlu0 %v3460
        %v3462 = vpop.xlane.xlu0 %3461
        %v3463 = vrcp.pop %v3456
        %v3464 = vrcp.pop %v3459
        %v3465 = vrcp.pop %v3462
        %v3466 = vmul.f32 %v3449, %v3463
        %v3467 = vmul.f32 %v3451, %v3464
        %v3468 = vmul.f32 %v3453, %v3465
        %3469 = vrot.lane.b32.xlu0 %v2329, 40
        %v3470 = vpop.permute.xlu0 %3469
        %3471 = vrot.lane.b32.xlu0 %v2334, 40
        %v3472 = vpop.permute.xlu0 %3471
        %3473 = vrot.lane.b32.xlu0 %v2339, 40
        %v3474 = vpop.permute.xlu0 %3473
        %v3478 = vsel %vm693, %v3466, 0
        %v3481 = vsel %vm693, %v3467, 0
        %v3484 = vsel %vm693, %v3468, 0
        %v3486 = vsel %vm745, %v3474, 0
        %3488 = vmatprep.subr.mxu0 0.0
        %3489 = vmatpush1.msra.mxu0 %v3470
        %3490 = vmatprep.subr.mxu0 0.0
        %3491 = vmatpush1.msra.mxu0 %v3472
        %3492 = vmatprep.subr.mxu0 0.0
        %3493 = vmatpush1.msra.mxu0 %v3486
        %3494 = vmatprep.subr.mxu0 0.0
        %3495 = vmatpush1.msra.mxu0 0.0
        %3496 = vmatprep.subr.mxu0 0.0
        %3497 = vmatpush1.msra.mxu0 0.0
        %3498 = vmatprep.subr.mxu0 0.0
        %3499 = vmatpush1.msra.mxu0 0.0
        %3500 = vmatprep.subr.mxu0 0.0
        %3501 = vmatpush1.msra.mxu0 0.0
        %3502 = vmatprep.subr.mxu0 0.0
        %3503 = vmatpush1.msra.mxu0 0.0
        %3504 = vmatprep.subr.mxu0 0.0
        %3505 = vmatpush1.msra.mxu0 0.0
        %3506 = vmatprep.subr.mxu0 0.0
        %3507 = vmatpush1.msra.mxu0 0.0
        %3508 = vmatprep.subr.mxu0 0.0
        %3509 = vmatpush1.msra.mxu0 0.0
        %3510 = vmatprep.subr.mxu0 0.0
        %3511 = vmatpush1.msra.mxu0 0.0
        %3512 = vmatprep.subr.mxu0 0.0
        %3513 = vmatpush1.msra.mxu0 0.0
        %3514 = vmatprep.subr.mxu0 0.0
        %3515 = vmatpush1.msra.mxu0 0.0
        %3516 = vmatprep.subr.mxu0 0.0
        %3517 = vmatpush1.msra.mxu0 0.0
        %3518 = vmatprep.subr.mxu0 0.0
        %3519 = vmatpush1.msra.mxu0 0.0
        %3520 = vmatprep.subr.mxu0 0.0
        %3521 = vmatpush1.msra.mxu0 0.0
        %3522 = vmatprep.subr.mxu0 0.0
        %3523 = vmatpush1.msra.mxu0 0.0
        %3524 = vmatprep.subr.mxu0 0.0
        %3525 = vmatpush1.msra.mxu0 0.0
        %3526 = vmatprep.subr.mxu0 0.0
        %3527 = vmatpush1.msra.mxu0 0.0
        %3528 = vmatprep.subr.mxu0 0.0
        %3529 = vmatpush1.msra.mxu0 0.0
        %3530 = vmatprep.subr.mxu0 0.0
        %3531 = vmatpush1.msra.mxu0 0.0
        %3532 = vmatprep.subr.mxu0 0.0
        %3533 = vmatpush1.msra.mxu0 0.0
        %3534 = vmatprep.subr.mxu0 0.0
        %3535 = vmatpush1.msra.mxu0 0.0
        %3536 = vmatprep.subr.mxu0 0.0
        %3537 = vmatpush1.msra.mxu0 0.0
        %3538 = vmatprep.subr.mxu0 0.0
        %3539 = vmatpush1.msra.mxu0 0.0
        %3540 = vmatprep.subr.mxu0 0.0
        %3541 = vmatpush1.msra.mxu0 0.0
        %3542 = vmatprep.subr.mxu0 0.0
        %3543 = vmatpush1.msra.mxu0 0.0
        %3544 = vmatprep.subr.mxu0 0.0
        %3545 = vmatpush1.msra.mxu0 0.0
        %3546 = vmatprep.subr.mxu0 0.0
        %3547 = vmatpush1.msra.mxu0 0.0
        %3548 = vmatprep.subr.mxu0 0.0
        %3549 = vmatpush1.msra.mxu0 0.0
        %3550 = vmatprep.subr.mxu0 0.0
        %3551 = vmatpush1.msra.mxu0 0.0
        %3552 = vmatprep.mubr.f32.mxu0 0.0
        %3553 = vmatmul.mubr.f32.gmra.mrb[0].mxu0 %v3478
        %v3554 = vpop.f32.mrb[0].mxu0
        %v3555 = vadd.f32 0.0, %v3554
        %v3556 = vpop.f32.mrb[0].mxu0
        %3557 = vmatprep.mubr.f32.mxu0 0.0
        %3558 = vmatmul.mubr.f32.gmra.mrb[0].mxu0 %v3481
        %v3559 = vpop.f32.mrb[0].mxu0
        %v3560 = vadd.f32 0.0, %v3559
        %v3561 = vpop.f32.mrb[0].mxu0
        %3562 = vmatprep.mubr.f32.mxu0 0.0
        %3563 = vmatmul.mubr.f32.gmra.mrb[0].mxu0 %v3484
        %v3564 = vpop.f32.mrb[0].mxu0
        %v3565 = vadd.f32 0.0, %v3564
        %v3566 = vpop.f32.mrb[0].mxu0
        %3567 = vdwg.mxu0
        %v3568 = vld [vmem:[%s2342 + $0x18] sm:$0xff]
        %v3570 = vsel %vm600, %v3555, 0
        %v3573 = vsel %vm600, %v3560, 0
        %v3576 = vsel %vm600, %v3565, 0
        %3578 = vmatprep.subr.mxu0 0.0
        %3579 = vmatpush1.msra.mxu0 %v3568
        %3580 = vmatprep.subr.mxu0 0.0
        %3581 = vmatpush1.msra.mxu0 0.0
        %3582 = vmatprep.subr.mxu0 0.0
        %3583 = vmatpush1.msra.mxu0 0.0
        %3584 = vmatprep.subr.mxu0 0.0
        %3585 = vmatpush1.msra.mxu0 0.0
        %3586 = vmatprep.subr.mxu0 0.0
        %3587 = vmatpush1.msra.mxu0 0.0
        %3588 = vmatprep.subr.mxu0 0.0
        %3589 = vmatpush1.msra.mxu0 0.0
        %3590 = vmatprep.subr.mxu0 0.0
        %3591 = vmatpush1.msra.mxu0 0.0
        %3592 = vmatprep.subr.mxu0 0.0
        %3593 = vmatpush1.msra.mxu0 0.0
        %3594 = vmatprep.subr.mxu0 0.0
        %3595 = vmatpush1.msra.mxu0 0.0
        %3596 = vmatprep.subr.mxu0 0.0
        %3597 = vmatpush1.msra.mxu0 0.0
        %3598 = vmatprep.subr.mxu0 0.0
        %3599 = vmatpush1.msra.mxu0 0.0
        %3600 = vmatprep.subr.mxu0 0.0
        %3601 = vmatpush1.msra.mxu0 0.0
        %3602 = vmatprep.subr.mxu0 0.0
        %3603 = vmatpush1.msra.mxu0 0.0
        %3604 = vmatprep.subr.mxu0 0.0
        %3605 = vmatpush1.msra.mxu0 0.0
        %3606 = vmatprep.subr.mxu0 0.0
        %3607 = vmatpush1.msra.mxu0 0.0
        %3608 = vmatprep.subr.mxu0 0.0
        %3609 = vmatpush1.msra.mxu0 0.0
        %3610 = vmatprep.subr.mxu0 0.0
        %3611 = vmatpush1.msra.mxu0 0.0
        %3612 = vmatprep.subr.mxu0 0.0
        %3613 = vmatpush1.msra.mxu0 0.0
        %3614 = vmatprep.subr.mxu0 0.0
        %3615 = vmatpush1.msra.mxu0 0.0
        %3616 = vmatprep.subr.mxu0 0.0
        %3617 = vmatpush1.msra.mxu0 0.0
        %3618 = vmatprep.subr.mxu0 0.0
        %3619 = vmatpush1.msra.mxu0 0.0
        %3620 = vmatprep.subr.mxu0 0.0
        %3621 = vmatpush1.msra.mxu0 0.0
        %3622 = vmatprep.subr.mxu0 0.0
        %3623 = vmatpush1.msra.mxu0 0.0
        %3624 = vmatprep.subr.mxu0 0.0
        %3625 = vmatpush1.msra.mxu0 0.0
        %3626 = vmatprep.subr.mxu0 0.0
        %3627 = vmatpush1.msra.mxu0 0.0
        %3628 = vmatprep.subr.mxu0 0.0
        %3629 = vmatpush1.msra.mxu0 0.0
        %3630 = vmatprep.subr.mxu0 0.0
        %3631 = vmatpush1.msra.mxu0 0.0
        %3632 = vmatprep.subr.mxu0 0.0
        %3633 = vmatpush1.msra.mxu0 0.0
        %3634 = vmatprep.subr.mxu0 0.0
        %3635 = vmatpush1.msra.mxu0 0.0
        %3636 = vmatprep.subr.mxu0 0.0
        %3637 = vmatpush1.msra.mxu0 0.0
        %3638 = vmatprep.subr.mxu0 0.0
        %3639 = vmatpush1.msra.mxu0 0.0
        %3640 = vmatprep.subr.mxu0 0.0
        %3641 = vmatpush1.msra.mxu0 0.0
        %3642 = vmatprep.mubr.f32.mxu0 0.0
        %3643 = vmatmul.mubr.f32.gmra.mrb[0].mxu0 %v3570
        %v3644 = vpop.f32.mrb[0].mxu0
        %v3645 = vadd.f32 0.0, %v3644
        %v3646 = vpop.f32.mrb[0].mxu0
        %3647 = vmatprep.mubr.f32.mxu0 0.0
        %3648 = vmatmul.mubr.f32.gmra.mrb[0].mxu0 %v3573
        %v3649 = vpop.f32.mrb[0].mxu0
        %v3650 = vadd.f32 0.0, %v3649
        %v3651 = vpop.f32.mrb[0].mxu0
        %3652 = vmatprep.mubr.f32.mxu0 0.0
        %3653 = vmatmul.mubr.f32.gmra.mrb[0].mxu0 %v3576
        %v3654 = vpop.f32.mrb[0].mxu0
        %v3655 = vadd.f32 0.0, %v3654
        %v3656 = vpop.f32.mrb[0].mxu0
        %3657 = vdwg.mxu0
        %v3658 = vadd.f32 %v3329, %v3645
        %v3659 = vadd.f32 %v3330, %v3650
        %v3660 = vadd.f32 %v3331, %v3655
        %v3661 = vadd.f32 %v3658, %v2184
        %v3662 = vadd.f32 %v3659, %v2185
        %v3663 = vadd.f32 %v3660, %v2186
        %v3664 = vld [vmem:[%s2187 + $0x2] sm:$0x1]
        %v3665 = vld [vmem:[%s2187 + $0x3] sm:$0x1]
        %v3666 = vsel %vm436, %v3661, 0.0
        %3667 = vadd.xlane.f32.xlu0 %v3666
        %v3668 = vpop.xlane.xlu0 %3667
        %v3669 = vsel %vm436, %v3662, 0.0
        %3670 = vadd.xlane.f32.xlu0 %v3669
        %v3671 = vpop.xlane.xlu0 %3670
        %v3672 = vsel %vm443, %v3663, 0.0
        %3673 = vadd.xlane.f32.xlu0 %v3672
        %v3674 = vpop.xlane.xlu0 %3673
        %v3675 = vmul.f32 %v3668, %v447
        %v3676 = vmul.f32 %v3671, %v447
        %v3677 = vmul.f32 %v3674, %v447
        %v3678 = vsub.f32 %v3661, %v3675
        %v3679 = vsub.f32 %v3662, %v3676
        %v3680 = vsub.f32 %v3663, %v3677
        %v3681 = vmul.f32 %v3678, %v3678
        %v3682 = vmul.f32 %v3679, %v3679
        %v3683 = vmul.f32 %v3680, %v3680
        %v3684 = vsel %vm436, %v3681, 0.0
        %3685 = vadd.xlane.f32.xlu0 %v3684
        %v3686 = vpop.xlane.xlu0 %3685
        %v3687 = vsel %vm436, %v3682, 0.0
        %3688 = vadd.xlane.f32.xlu0 %v3687
        %v3689 = vpop.xlane.xlu0 %3688
        %v3690 = vsel %vm443, %v3683, 0.0
        %3691 = vadd.xlane.f32.xlu0 %v3690
        %v3692 = vpop.xlane.xlu0 %3691
        %v3693 = vmul.f32 %v3686, %v447
        %v3694 = vmul.f32 %v3689, %v447
        %v3695 = vmul.f32 %v3692, %v447
        %v3696 = vadd.f32 %v3693, 1e-05
        %v3697 = vadd.f32 %v3694, 1e-05
        %v3698 = vadd.f32 %v3695, 1e-05
        %v3699 = vrsqrt.pop %v3696
        %v3700 = vrsqrt.pop %v3697
        %v3701 = vrsqrt.pop %v3698
        %v3702 = vmul.f32 %v3678, %v3699
        %v3703 = vmul.f32 %v3679, %v3700
        %v3704 = vmul.f32 %v3680, %v3701
        %v3705 = vlaneseq
        %v3706 = vshrl.u32 %v3705, 7
        %v3707 = vsub.s32 0, %v3706
        %v3708 = vrot.slane %v3664, %v3707
        %v3709 = vmul.f32 %v3702, %v3708
        %v3710 = vmul.f32 %v3703, %v3708
        %v3711 = vmul.f32 %v3704, %v3708
        %v3712 = vlaneseq
        %v3713 = vshrl.u32 %v3712, 7
        %v3714 = vsub.s32 0, %v3713
        %v3715 = vrot.slane %v3665, %v3714
        %v3716 = vadd.f32 %v3709, %v3715
        %v3717 = vadd.f32 %v3710, %v3715
        %v3718 = vadd.f32 %v3711, %v3715
        %s3719 = scalar_lea.vmem %s6, 40
        %v3720 = vld [vmem:[%s3719] sm:$0xff]
        %v3721 = vld [vmem:[%s3719 + $0x8] sm:$0xff]
        %v3722 = vld [vmem:[%s3719 + $0x10] sm:$0xff]
        %v3723 = vld [vmem:[%s3719 + $0x18] sm:$0xff]
        %v3724 = vld [vmem:[%s3719 + $0x20] sm:$0x1]
        %v3725 = vlaneseq
        %v3726 = vshrl.u32 %v3725, 7
        %v3727 = vsub.s32 0, %v3726
        %v3728 = vrot.slane %v3724, %v3727
        %v3730 = vsel %vm436, %v3716, 0
        %v3733 = vsel %vm436, %v3717, 0
        %v3736 = vsel %vm436, %v3718, 0
        %3738 = vmatprep.subr.mxu0 0.0
        %3739 = vmatpush1.msra.mxu0 %v3720
        %3740 = vmatprep.subr.mxu0 0.0
        %3741 = vmatpush1.msra.mxu0 %v3721
        %3742 = vmatprep.subr.mxu0 0.0
        %3743 = vmatpush1.msra.mxu0 %v3722
        %3744 = vmatprep.subr.mxu0 0.0
        %3745 = vmatpush1.msra.mxu0 %v3723
        %3746 = vmatprep.subr.mxu0 0.0
        %3747 = vmatpush1.msra.mxu0 0.0
        %3748 = vmatprep.subr.mxu0 0.0
        %3749 = vmatpush1.msra.mxu0 0.0
        %3750 = vmatprep.subr.mxu0 0.0
        %3751 = vmatpush1.msra.mxu0 0.0
        %3752 = vmatprep.subr.mxu0 0.0
        %3753 = vmatpush1.msra.mxu0 0.0
        %3754 = vmatprep.subr.mxu0 0.0
        %3755 = vmatpush1.msra.mxu0 0.0
        %3756 = vmatprep.subr.mxu0 0.0
        %3757 = vmatpush1.msra.mxu0 0.0
        %3758 = vmatprep.subr.mxu0 0.0
        %3759 = vmatpush1.msra.mxu0 0.0
        %3760 = vmatprep.subr.mxu0 0.0
        %3761 = vmatpush1.msra.mxu0 0.0
        %3762 = vmatprep.subr.mxu0 0.0
        %3763 = vmatpush1.msra.mxu0 0.0
        %3764 = vmatprep.subr.mxu0 0.0
        %3765 = vmatpush1.msra.mxu0 0.0
        %3766 = vmatprep.subr.mxu0 0.0
        %3767 = vmatpush1.msra.mxu0 0.0
        %3768 = vmatprep.subr.mxu0 0.0
        %3769 = vmatpush1.msra.mxu0 0.0
        %3770 = vmatprep.subr.mxu0 0.0
        %3771 = vmatpush1.msra.mxu0 0.0
        %3772 = vmatprep.subr.mxu0 0.0
        %3773 = vmatpush1.msra.mxu0 0.0
        %3774 = vmatprep.subr.mxu0 0.0
        %3775 = vmatpush1.msra.mxu0 0.0
        %3776 = vmatprep.subr.mxu0 0.0
        %3777 = vmatpush1.msra.mxu0 0.0
        %3778 = vmatprep.subr.mxu0 0.0
        %3779 = vmatpush1.msra.mxu0 0.0
        %3780 = vmatprep.subr.mxu0 0.0
        %3781 = vmatpush1.msra.mxu0 0.0
        %3782 = vmatprep.subr.mxu0 0.0
        %3783 = vmatpush1.msra.mxu0 0.0
        %3784 = vmatprep.subr.mxu0 0.0
        %3785 = vmatpush1.msra.mxu0 0.0
        %3786 = vmatprep.subr.mxu0 0.0
        %3787 = vmatpush1.msra.mxu0 0.0
        %3788 = vmatprep.subr.mxu0 0.0
        %3789 = vmatpush1.msra.mxu0 0.0
        %3790 = vmatprep.subr.mxu0 0.0
        %3791 = vmatpush1.msra.mxu0 0.0
        %3792 = vmatprep.subr.mxu0 0.0
        %3793 = vmatpush1.msra.mxu0 0.0
        %3794 = vmatprep.subr.mxu0 0.0
        %3795 = vmatpush1.msra.mxu0 0.0
        %3796 = vmatprep.subr.mxu0 0.0
        %3797 = vmatpush1.msra.mxu0 0.0
        %3798 = vmatprep.subr.mxu0 0.0
        %3799 = vmatpush1.msra.mxu0 0.0
        %3800 = vmatprep.subr.mxu0 0.0
        %3801 = vmatpush1.msra.mxu0 0.0
        %3802 = vmatprep.mubr.f32.mxu0 0.0
        %3803 = vmatmul.mubr.f32.gmra.mrb[0].mxu0 %v3730
        %v3804 = vpop.f32.mrb[0].mxu0
        %v3805 = vadd.f32 %v3728, %v3804
        %v3806 = vpop.f32.mrb[0].mxu0
        %3807 = vmatprep.mubr.f32.mxu0 0.0
        %3808 = vmatmul.mubr.f32.gmra.mrb[0].mxu0 %v3733
        %v3809 = vpop.f32.mrb[0].mxu0
        %v3810 = vadd.f32 %v3728, %v3809
        %v3811 = vpop.f32.mrb[0].mxu0
        %3812 = vmatprep.mubr.f32.mxu0 0.0
        %3813 = vmatmul.mubr.f32.gmra.mrb[0].mxu0 %v3736
        %v3814 = vpop.f32.mrb[0].mxu0
        %v3815 = vadd.f32 %v3728, %v3814
        %v3816 = vpop.f32.mrb[0].mxu0
        %3817 = vdwg.mxu0
        %v3818 = vmul.f32 %v3805, 0.5
        %v3819 = vmul.f32 %v3810, 0.5
        %v3820 = vmul.f32 %v3815, 0.5
        %v3821 = vmul.f32 %v3805, 0.70710677
        %v3822 = vmul.f32 %v3810, 0.70710677
        %v3823 = vmul.f32 %v3815, 0.70710677
        %v3824 = verf.f32.pop %v3821
        %v3825 = verf.f32.pop %v3822
        %v3826 = verf.f32.pop %v3823
        %v3827 = vadd.f32 %v3824, 1.0
        %v3828 = vadd.f32 %v3825, 1.0
        %v3829 = vadd.f32 %v3826, 1.0
        %v3830 = vmul.f32 %v3818, %v3827
        %v3831 = vmul.f32 %v3819, %v3828
        %v3832 = vmul.f32 %v3820, %v3829
        %s3833 = scalar_lea.vmem %s7, 136
        %v3834 = vld [vmem:[%s3833] sm:$0xff]
        %v3835 = vld [vmem:[%s3833 + $0x8] sm:$0xff]
        %v3836 = vld [vmem:[%s3833 + $0x10] sm:$0xff]
        %v3837 = vld [vmem:[%s3833 + $0x18] sm:$0xff]
        %v3838 = vld [vmem:[%s3833 + $0x20] sm:$0xff]
        %v3839 = vld [vmem:[%s3833 + $0x28] sm:$0xff]
        %v3840 = vld [vmem:[%s3833 + $0x30] sm:$0xff]
        %v3841 = vld [vmem:[%s3833 + $0x38] sm:$0xff]
        %v3842 = vld [vmem:[%s3833 + $0x40] sm:$0xff]
        %v3843 = vld [vmem:[%s3833 + $0x48] sm:$0xff]
        %v3844 = vld [vmem:[%s3833 + $0x50] sm:$0xff]
        %v3845 = vld [vmem:[%s3833 + $0x58] sm:$0xff]
        %v3846 = vld [vmem:[%s3833 + $0x60] sm:$0xff]
        %v3847 = vld [vmem:[%s3833 + $0x68] sm:$0xff]
        %v3848 = vld [vmem:[%s3833 + $0x70] sm:$0xff]
        %v3849 = vld [vmem:[%s3833 + $0x78] sm:$0xff]
        %v3850 = vld [vmem:[%s3833 + $0x80] sm:$0x1]
        %v3851 = vlaneseq
        %v3852 = vshrl.u32 %v3851, 7
        %v3853 = vsub.s32 0, %v3852
        %v3854 = vrot.slane %v3850, %v3853
        %3855 = vmatprep.subr.mxu0 0.0
        %3856 = vmatpush1.msra.mxu0 %v3834
        %3857 = vmatprep.subr.mxu0 0.0
        %3858 = vmatpush1.msra.mxu0 %v3835
        %3859 = vmatprep.subr.mxu0 0.0
        %3860 = vmatpush1.msra.mxu0 %v3836
        %3861 = vmatprep.subr.mxu0 0.0
        %3862 = vmatpush1.msra.mxu0 %v3837
        %3863 = vmatprep.subr.mxu0 0.0
        %3864 = vmatpush1.msra.mxu0 %v3838
        %3865 = vmatprep.subr.mxu0 0.0
        %3866 = vmatpush1.msra.mxu0 %v3839
        %3867 = vmatprep.subr.mxu0 0.0
        %3868 = vmatpush1.msra.mxu0 %v3840
        %3869 = vmatprep.subr.mxu0 0.0
        %3870 = vmatpush1.msra.mxu0 %v3841
        %3871 = vmatprep.subr.mxu0 0.0
        %3872 = vmatpush1.msra.mxu0 %v3842
        %3873 = vmatprep.subr.mxu0 0.0
        %3874 = vmatpush1.msra.mxu0 %v3843
        %3875 = vmatprep.subr.mxu0 0.0
        %3876 = vmatpush1.msra.mxu0 %v3844
        %3877 = vmatprep.subr.mxu0 0.0
        %3878 = vmatpush1.msra.mxu0 %v3845
        %3879 = vmatprep.subr.mxu0 0.0
        %3880 = vmatpush1.msra.mxu0 %v3846
        %3881 = vmatprep.subr.mxu0 0.0
        %3882 = vmatpush1.msra.mxu0 %v3847
        %3883 = vmatprep.subr.mxu0 0.0
        %3884 = vmatpush1.msra.mxu0 %v3848
        %3885 = vmatprep.subr.mxu0 0.0
        %3886 = vmatpush1.msra.mxu0 %v3849
        %3887 = vmatprep.subr.mxu0 0.0
        %3888 = vmatpush1.msra.mxu0 0.0
        %3889 = vmatprep.subr.mxu0 0.0
        %3890 = vmatpush1.msra.mxu0 0.0
        %3891 = vmatprep.subr.mxu0 0.0
        %3892 = vmatpush1.msra.mxu0 0.0
        %3893 = vmatprep.subr.mxu0 0.0
        %3894 = vmatpush1.msra.mxu0 0.0
        %3895 = vmatprep.subr.mxu0 0.0
        %3896 = vmatpush1.msra.mxu0 0.0
        %3897 = vmatprep.subr.mxu0 0.0
        %3898 = vmatpush1.msra.mxu0 0.0
        %3899 = vmatprep.subr.mxu0 0.0
        %3900 = vmatpush1.msra.mxu0 0.0
        %3901 = vmatprep.subr.mxu0 0.0
        %3902 = vmatpush1.msra.mxu0 0.0
        %3903 = vmatprep.subr.mxu0 0.0
        %3904 = vmatpush1.msra.mxu0 0.0
        %3905 = vmatprep.subr.mxu0 0.0
        %3906 = vmatpush1.msra.mxu0 0.0
        %3907 = vmatprep.subr.mxu0 0.0
        %3908 = vmatpush1.msra.mxu0 0.0
        %3909 = vmatprep.subr.mxu0 0.0
        %3910 = vmatpush1.msra.mxu0 0.0
        %3911 = vmatprep.subr.mxu0 0.0
        %3912 = vmatpush1.msra.mxu0 0.0
        %3913 = vmatprep.subr.mxu0 0.0
        %3914 = vmatpush1.msra.mxu0 0.0
        %3915 = vmatprep.subr.mxu0 0.0
        %3916 = vmatpush1.msra.mxu0 0.0
        %3917 = vmatprep.subr.mxu0 0.0
        %3918 = vmatpush1.msra.mxu0 0.0
        %3919 = vmatprep.mubr.f32.mxu0 0.0
        %3920 = vmatmul.mubr.f32.gmra.mrb[0].mxu0 %v3830
        %v3921 = vpop.f32.mrb[0].mxu0
        %v3922 = vadd.f32 %v3854, %v3921
        %v3923 = vpop.f32.mrb[0].mxu0
        %3924 = vmatprep.mubr.f32.mxu0 0.0
        %3925 = vmatmul.mubr.f32.gmra.mrb[0].mxu0 %v3831
        %v3926 = vpop.f32.mrb[0].mxu0
        %v3927 = vpop.f32.mrb[0].mxu0
        %3928 = vmatprep.mubr.f32.mxu0 0.0
        %3929 = vmatmul.mubr.f32.gmra.mrb[0].mxu0 %v3832
        %v3930 = vpop.f32.mrb[0].mxu0
        %v3931 = vpop.f32.mrb[0].mxu0
        %3932 = vdwg.mxu0
        %v3933 = vadd.f32 %v3922, %v3716
        %v3934 = vld [vmem:[%s8] sm:$0xff]
        %v3935 = vld [vmem:[%s8 + $0x8] sm:$0xff]
        %v3936 = vld [vmem:[%s8 + $0x10] sm:$0xff]
        %v3937 = vld [vmem:[%s8 + $0x18] sm:$0xff]
        %v3938 = vld [vmem:[%s8 + $0x20] sm:$0x1]
        %v3940 = vsel %vm436, %v3933, 0
        %3942 = vmatprep.subr.mxu0 0.0
        %3943 = vmatpush1.msra.mxu0 %v3934
        %3944 = vmatprep.subr.mxu0 0.0
        %3945 = vmatpush1.msra.mxu0 %v3935
        %3946 = vmatprep.subr.mxu0 0.0
        %3947 = vmatpush1.msra.mxu0 %v3936
        %3948 = vmatprep.subr.mxu0 0.0
        %3949 = vmatpush1.msra.mxu0 %v3937
        %3950 = vmatprep.subr.mxu0 0.0
        %3951 = vmatpush1.msra.mxu0 0.0
        %3952 = vmatprep.subr.mxu0 0.0
        %3953 = vmatpush1.msra.mxu0 0.0
        %3954 = vmatprep.subr.mxu0 0.0
        %3955 = vmatpush1.msra.mxu0 0.0
        %3956 = vmatprep.subr.mxu0 0.0
        %3957 = vmatpush1.msra.mxu0 0.0
        %3958 = vmatprep.subr.mxu0 0.0
        %3959 = vmatpush1.msra.mxu0 0.0
        %3960 = vmatprep.subr.mxu0 0.0
        %3961 = vmatpush1.msra.mxu0 0.0
        %3962 = vmatprep.subr.mxu0 0.0
        %3963 = vmatpush1.msra.mxu0 0.0
        %3964 = vmatprep.subr.mxu0 0.0
        %3965 = vmatpush1.msra.mxu0 0.0
        %3966 = vmatprep.subr.mxu0 0.0
        %3967 = vmatpush1.msra.mxu0 0.0
        %3968 = vmatprep.subr.mxu0 0.0
        %3969 = vmatpush1.msra.mxu0 0.0
        %3970 = vmatprep.subr.mxu0 0.0
        %3971 = vmatpush1.msra.mxu0 0.0
        %3972 = vmatprep.subr.mxu0 0.0
        %3973 = vmatpush1.msra.mxu0 0.0
        %3974 = vmatprep.subr.mxu0 0.0
        %3975 = vmatpush1.msra.mxu0 0.0
        %3976 = vmatprep.subr.mxu0 0.0
        %3977 = vmatpush1.msra.mxu0 0.0
        %3978 = vmatprep.subr.mxu0 0.0
        %3979 = vmatpush1.msra.mxu0 0.0
        %3980 = vmatprep.subr.mxu0 0.0
        %3981 = vmatpush1.msra.mxu0 0.0
        %3982 = vmatprep.subr.mxu0 0.0
        %3983 = vmatpush1.msra.mxu0 0.0
        %3984 = vmatprep.subr.mxu0 0.0
        %3985 = vmatpush1.msra.mxu0 0.0
        %3986 = vmatprep.subr.mxu0 0.0
        %3987 = vmatpush1.msra.mxu0 0.0
        %3988 = vmatprep.subr.mxu0 0.0
        %3989 = vmatpush1.msra.mxu0 0.0
        %3990 = vmatprep.subr.mxu0 0.0
        %3991 = vmatpush1.msra.mxu0 0.0
        %3992 = vmatprep.subr.mxu0 0.0
        %3993 = vmatpush1.msra.mxu0 0.0
        %3994 = vmatprep.subr.mxu0 0.0
        %3995 = vmatpush1.msra.mxu0 0.0
        %3996 = vmatprep.subr.mxu0 0.0
        %3997 = vmatpush1.msra.mxu0 0.0
        %3998 = vmatprep.subr.mxu0 0.0
        %3999 = vmatpush1.msra.mxu0 0.0
        %4000 = vmatprep.subr.mxu0 0.0
        %4001 = vmatpush1.msra.mxu0 0.0
        %4002 = vmatprep.subr.mxu0 0.0
        %4003 = vmatpush1.msra.mxu0 0.0
        %4004 = vmatprep.subr.mxu0 0.0
        %4005 = vmatpush1.msra.mxu0 0.0
        %4006 = vmatprep.mubr.f32.mxu0 0.0
        %4007 = vmatmul.mubr.f32.gmra.mrb[0].mxu0 %v3940
        %v4008 = vpop.f32.mrb[0].mxu0
        %v4009 = vadd.f32 %v3938, %v4008
        %v4010 = vpop.f32.mrb[0].mxu0
        %4011 = vdwg.mxu0
        %vm4012 = vcmask 73728
        %v4013 = vsel %vm4012, %v4009, -inf
        %4014 = vmax.xlane.f32.xlu0 %v4013
        %v4015 = vpop.xlane.xlu0 %4014
        %v4016 = vsub.f32 %v4009, %v4015
        %v4017 = vmul.f32 %v4016, 1.442695
        %v4018 = vpow.pop %v4017
        %v4019 = vsel %vm4012, %v4018, 0.0
        %4020 = vadd.xlane.f32.xlu0 %v4019
        %v4021 = vpop.xlane.xlu0 %4020
        %v4022 = vrcp.pop %v4021
        %v4023 = vmul.f32 %v4018, %v4022
        %4024 = vst.msk [vmem:[%s324] sm:$0x1] %vm4012, %v4023
        %s4025 = sand.u32 %s225, 1
        %s4026 = scalar_lea.sflag [#allocation3], %s4025
        %s4027 = sand.u32 %s225, 1
        %s4028 = scalar_lea.vmem [#allocation2], %s4027
        // Predicated region
        $region57: #{tpu_custom_call.1} parent=55 // pred_check
          %p4029 = pneg %p235
        $region58: #{tpu_custom_call.1} parent=55 // pred_check_branch
          %4031 = sbr.rel (%p4029) target = $region60
        $region59: #{tpu_custom_call.1} parent=55 // pred_region
          %s4033 = ssub.s32 16, 16
          %4034 = vsyncadd %s4026, %s4033
          %s4035 = smul.addr %s23, 16
          %s4036 = scalar_lea.hbm %s9, %s4035
          %s4038 = sshll.u32 %s4028, 4
          %s4039 = int_to_ptr.vmem [resolvable:$true] %s4038
          %4041 = dma.vmem_to_hbm [thread:$0]  %s4039, 16, %s4036, %s4026
        $region60: #{tpu_custom_call.1} parent=55 // pred_fallthru
          _
      $region56: #{tpu_custom_call.1} parent=5 // pred_fallthru
        _
      %p4042 = scmp.le.s32.totalorder 2, %s18
      // Predicated region
      $region61: #{tpu_custom_call.1} parent=5 // pred_check
        %p4043 = pneg %p4042
      $region62: #{tpu_custom_call.1} parent=5 // pred_check_branch
        %4045 = sbr.rel (%p4043) target = $region64
      $region63: #{tpu_custom_call.1} parent=5 // pred_region
        %s4046 = ssub.s32 %s18, 2
        // Predicated region
        $region65: #{tpu_custom_call.1} parent=63 // pred_check
          %p4047 = pneg %p241
        $region66: #{tpu_custom_call.1} parent=63 // pred_check_branch
          %4049 = sbr.rel (%p4047) target = $region68
        $region67: #{tpu_custom_call.1} parent=63 // pred_region
          %s4050 = sand.u32 %s226, 1
          %s4051 = scalar_lea.sflag [#allocation3], %s4050
          %s4052 = sand.u32 %s226, 1
          %s4053 = scalar_lea.vmem [#allocation2], %s4052
          %4054 = dma.done %s4051, 16
        $region68: #{tpu_custom_call.1} parent=63 // pred_fallthru
          _
      $region64: #{tpu_custom_call.1} parent=5 // pred_fallthru
        _
    $region6: #{tpu_custom_call.1} parent=1 // loop_footer
      %s22 = sadd.s32 1, %s18
    $region7: #{tpu_custom_call.1} parent=1 // loop_footer_branch
      %17 = sbr.rel target = $region3
    $region8: #{tpu_custom_call.1} parent=1 // loop_exit
      _
    %4055 = vsyncpa [#allocation3], 1
    %s4056 = scalar_lea.sflag [#allocation3], 1
    %4057 = vsyncpa %s4056, 1

</llo_original>
